<compile_context>
chip_gen: v5e
topology: v5e:2x2
jax: 0.10.0
libtpu: 0.0.40
codegen_flags: <defaults>
</compile_context>

<pallas_src>
import numpy as np
import jax
import jax.numpy as jnp
from jax.experimental import pallas as pl
from jax.experimental.pallas import tpu as pltpu

EPS = 1e-5
S1, S2, S3 = 40, 8, 4   # per-sample slab heights in the batch-stacked buffers


# ------------------------------- fused kernel -------------------------------

def _fused_kernel(x_ref, rr_ref, m1_ref, m2_ref, m3_ref, sh_ref, head_ref,
                  o_ref, p1_ref, p2_ref, p3_ref):
    TB = rr_ref.shape[0]
    bf16 = jnp.bfloat16

    # ---- stage 0: zero-pad buffers, place conv1 input (one store per sample) ----
    p1_ref[...] = jnp.zeros(p1_ref.shape, p1_ref.dtype)
    p2_ref[...] = jnp.zeros(p2_ref.shape, p2_ref.dtype)
    p3_ref[...] = jnp.zeros(p3_ref.shape, p3_ref.dtype)
    for b in range(TB):
        # slab b of p1: rows 0-3 zero, 4-33 data, 34-39 zero (even sublane start)
        p1_ref[S1 * b + 4:S1 * b + 34, 0:30] = x_ref[b, 0, :, :].astype(bf16)

    # ---- conv1 + bn1 + relu : 7 batch-stacked dots (M = S1*TB, N = 512) ----
    M1 = S1 * TB
    acc = jnp.dot(p1_ref[0:M1, :], m1_ref[0], preferred_element_type=jnp.float32)
    for i in range(1, 7):
        acc = acc + jnp.dot(p1_ref[i:i + M1, :], m1_ref[i],
                            preferred_element_type=jnp.float32)
    y1 = jnp.maximum(acc + sh_ref[0:1, 0:512], 0.0)      # lanes = (w<32, c<16)
    # valid rows of sample b: S1*b + 1 + r, r in [0,30)

    # ---- MaxPool2d(5) -> padded conv2 input ----
    # W-direction max (bulk):  a[:, 16w+c] = max_{t<5} y1[:, 16(w+t)+c]
    a = jnp.maximum(y1[:, 0:496], y1[:, 16:512])
    a = jnp.maximum(a[:, 0:464], a[:, 32:496])
    a = jnp.maximum(a[:, 0:448], y1[:, 64:512])
    wm1 = jnp.concatenate([a[:, 80 * wp:80 * wp + 16] for wp in range(6)], axis=1)
    # H-direction running max (bulk): rm1[r] = max_{t<5} wm1[r+t]
    rm1 = wm1[0:M1 - 4, :]
    for t in range(1, 5):
        rm1 = jnp.maximum(rm1, wm1[t:t + M1 - 4, :])
    for b in range(TB):
        rows = [rm1[S1 * b + 1 + 5 * hp:S1 * b + 2 + 5 * hp, :] for hp in range(6)]
        p2_ref[S2 * b + 2:S2 * b + 8, 0:96] = jnp.concatenate(rows, axis=0).astype(bf16)

    # ---- conv2 + bn2 + relu : 3 batch-stacked dots (M = S2*TB, N = 256) ----
    M2 = S2 * TB
    acc = jnp.dot(p2_ref[0:M2, :], m2_ref[0], preferred_element_type=jnp.float32)
    for i in range(1, 3):
        acc = acc + jnp.dot(p2_ref[i:i + M2, :], m2_ref[i],
                            preferred_element_type=jnp.float32)
    y2 = jnp.maximum(acc + sh_ref[1:2, 0:256], 0.0)       # lanes = (w<8, c<32)
    # valid rows of sample b: S2*b + 1 + r, r in [0,6)

    # ---- MaxPool2d(3) -> padded conv3 input ----
    a = jnp.maximum(y2[:, 0:192], y2[:, 32:224])
    a = jnp.maximum(a[:, 0:160], y2[:, 64:224])
    wm2 = jnp.concatenate([a[:, 96 * wp:96 * wp + 32] for wp in range(2)], axis=1)
    rm2 = jnp.maximum(jnp.maximum(wm2[0:M2 - 2, :], wm2[1:M2 - 1, :]), wm2[2:M2, :])
    for b in range(TB):
        blk = jnp.concatenate([rm2[S2 * b + 1:S2 * b + 2, :],
                               rm2[S2 * b + 4:S2 * b + 5, :]], axis=0)     # (2, 64)
        p3_ref[S3 * b + 2:S3 * b + 4, 0:64] = blk.astype(bf16)

    # ---- conv3 + bn3 + relu : 3 batch-stacked dots (M = S3*TB, N = 128) ----
    M3 = S3 * TB
    acc = jnp.dot(p3_ref[0:M3, :], m3_ref[0], preferred_element_type=jnp.float32)
    for i in range(1, 3):
        acc = acc + jnp.dot(p3_ref[i:i + M3, :], m3_ref[i],
                            preferred_element_type=jnp.float32)
    y3 = jnp.maximum(acc + sh_ref[2:3, 0:128], 0.0)       # lanes = (w<2, c<64)
    # valid rows of sample b: S3*b + 1 + r, r in {0,1}

    # ---- AdaptiveMaxPool2d((1,1)) -> x1 (TB, 64) ----
    g = jnp.maximum(y3[:, 0:64], y3[:, 64:128])
    x1 = jnp.concatenate(
        [jnp.max(g[S3 * b + 1:S3 * b + 3, :], axis=0, keepdims=True)
         for b in range(TB)], axis=0)

    # ---- head: rr_fc1/relu + concat + fc1/relu + (dropout = identity) + fc2 ----
    head = head_ref[...]
    x2 = jnp.maximum(
        jnp.dot(rr_ref[...], head[80:84, 0:16], preferred_element_type=jnp.float32)
        + head[84:85, 0:16], 0.0)
    xc = jnp.concatenate([x1, x2], axis=1)                                  # (TB, 80)
    h = jnp.maximum(
        jnp.dot(xc, head[0:80, 32:64], preferred_element_type=jnp.float32)
        + head[85:86, 32:64], 0.0)
    o_ref[...] = (jnp.dot(h, head[0:32, 64:66], preferred_element_type=jnp.float32)
                  + head[86:87, 64:66])


# ------------------------------ forward wrapper ------------------------------

def lie_detection_forward(cwt, rr, q, *, block_b=8):
    B, C, H, W = cwt.shape
    assert (C, H, W) == (1, 30, 30), "kernel is specialized to (1, 30, 30) CWT inputs"
    TB = B if B <= block_b else block_b
    Bp = ((B + TB - 1) // TB) * TB
    cwt = cwt.astype(jnp.float32)
    rr = rr.astype(jnp.float32)
    if Bp != B:
        cwt = jnp.pad(cwt, ((0, Bp - B), (0, 0), (0, 0), (0, 0)))
        rr = jnp.pad(rr, ((0, Bp - B), (0, 0)))
    nb = Bp // TB

    out = pl.pallas_call(
        _fused_kernel,
        out_shape=jax.ShapeDtypeStruct((Bp, 2), jnp.float32),
        grid_spec=pltpu.PrefetchScalarGridSpec(
            num_scalar_prefetch=0,
            grid=(nb,),
            in_specs=[
                pl.BlockSpec((TB, 1, 30, 30), lambda i: (i, 0, 0, 0)),   # cwt tile
                pl.BlockSpec((TB, 4), lambda i: (i, 0)),                  # rr tile
                pl.BlockSpec((7, 32, 512), lambda i: (0, 0, 0)),          # conv1 bands
                pl.BlockSpec((3, 128, 256), lambda i: (0, 0, 0)),         # conv2 bands
                pl.BlockSpec((3, 128, 128), lambda i: (0, 0, 0)),         # conv3 bands
                pl.BlockSpec((3, 512), lambda i: (0, 0)),                 # packed BN shifts
                pl.BlockSpec((96, 128), lambda i: (0, 0)),                # packed head weights
            ],
            out_specs=pl.BlockSpec((TB, 2), lambda i: (i, 0)),
            scratch_shapes=[
                pltpu.VMEM((S1 * TB + 8, 32), jnp.bfloat16),   # padded conv1 input
                pltpu.VMEM((S2 * TB + 8, 128), jnp.bfloat16),  # padded conv2 input
                pltpu.VMEM((S3 * TB + 8, 128), jnp.bfloat16),  # padded conv3 input
            ],
        ),
        compiler_params=pltpu.CompilerParams(dimension_semantics=("parallel",)),
    )(cwt, rr, q["m1"], q["m2"], q["m3"], q["sh"], q["head"])
    return out[:B]


# ------------------------------ parameter prep -------------------------------

def _band_weights(w_fold, win, wout, u_alloc, w_alloc, pad):
    """Banded matrices: M[i][(u,ci),(w,co)] = W[i, u-w+pad, ci, co] (0 elsewhere)."""
    w = np.asarray(jax.device_get(w_fold), np.float32)      # (K, K, Cin, Cout)
    K, _, cin, cout = w.shape
    m = np.zeros((K, u_alloc, cin, w_alloc, cout), np.float32)
    for i in range(K):
        for ww in range(wout):
            for j in range(K):
                u = ww + j - pad
                if 0 <= u < win:
                    m[i, u, :, ww, :] = w[i, j]
    return jnp.asarray(m.reshape(K, u_alloc * cin, w_alloc * cout), jnp.bfloat16)


def prepare_params(p):
    """Fold BN (running stats) into conv weights, build band matrices, pack operands."""
    def fold(ws, bias, gamma, beta, rmean, rvar):
        scale = gamma / jnp.sqrt(rvar + EPS)
        return ws * scale, (bias - rmean) * scale + beta

    zeros, ones = (lambda n: jnp.zeros((n,), jnp.float32)), (lambda n: jnp.ones((n,), jnp.float32))
    w1f, sh1 = fold(p["w1s"], p["b1c"], p["g1"], p["be1"], p.get("rm1", zeros(16)), p.get("rv1", ones(16)))
    w2f, sh2 = fold(p["w2s"], p["b2c"], p["g2"], p["be2"], p.get("rm2", zeros(32)), p.get("rv2", ones(32)))
    w3f, sh3 = fold(p["w3s"], p["b3c"], p["g3"], p["be3"], p.get("rm3", zeros(64)), p.get("rv3", ones(64)))

    sh = np.zeros((3, 512), np.float32)
    sh[0, 0:512] = np.tile(np.asarray(jax.device_get(sh1), np.float32), 32)
    sh[1, 0:256] = np.tile(np.asarray(jax.device_get(sh2), np.float32), 8)
    sh[2, 0:128] = np.tile(np.asarray(jax.device_get(sh3), np.float32), 2)

    head = np.zeros((96, 128), np.float32)
    head[0:80, 32:64] = np.asarray(jax.device_get(p["wfc1"]), np.float32)
    head[80:84, 0:16] = np.asarray(jax.device_get(p["wrr"]), np.float32)
    head[84, 0:16] = np.asarray(jax.device_get(p["brr"]), np.float32)
    head[85, 32:64] = np.asarray(jax.device_get(p["bfc1"]), np.float32)
    head[0:32, 64:66] = np.asarray(jax.device_get(p["wfc2"]), np.float32)
    head[86, 64:66] = np.asarray(jax.device_get(p["bfc2"]), np.float32)

    return {
        "m1": _band_weights(w1f, win=30, wout=30, u_alloc=32, w_alloc=32, pad=3),  # (7,32,512)
        "m2": _band_weights(w2f, win=6, wout=6, u_alloc=8, w_alloc=8, pad=1),      # (3,128,256)
        "m3": _band_weights(w3f, win=2, wout=2, u_alloc=4, w_alloc=2, pad=1),      # (3,128,128)
        "sh": jnp.asarray(sh),
        "head": jnp.asarray(head),
    }


def init_params(key):
    ks = jax.random.split(key, 24)
    rnd = lambda k, shape, s: jax.random.normal(k, shape, jnp.float32) * s
    p = {}
    p["w1s"] = rnd(ks[0], (7, 7, 1, 16), 0.1);   p["b1c"] = rnd(ks[1], (16,), 0.01)
    p["g1"] = 1.0 + rnd(ks[2], (16,), 0.01);     p["be1"] = rnd(ks[3], (16,), 0.01)
    p["rm1"] = rnd(ks[18], (16,), 0.05);         p["rv1"] = 1.0 + 0.1 * jnp.abs(rnd(ks[19], (16,), 1.0))
    p["w2s"] = rnd(ks[4], (3, 3, 16, 32), 0.05); p["b2c"] = rnd(ks[5], (32,), 0.01)
    p["g2"] = 1.0 + rnd(ks[6], (32,), 0.01);     p["be2"] = rnd(ks[7], (32,), 0.01)
    p["rm2"] = rnd(ks[20], (32,), 0.05);         p["rv2"] = 1.0 + 0.1 * jnp.abs(rnd(ks[21], (32,), 1.0))
    p["w3s"] = rnd(ks[8], (3, 3, 32, 64), 0.05); p["b3c"] = rnd(ks[9], (64,), 0.01)
    p["g3"] = 1.0 + rnd(ks[10], (64,), 0.01);    p["be3"] = rnd(ks[11], (64,), 0.01)
    p["rm3"] = rnd(ks[22], (64,), 0.05);         p["rv3"] = 1.0 + 0.1 * jnp.abs(rnd(ks[23], (64,), 1.0))
    p["wrr"] = rnd(ks[12], (4, 16), 0.2);        p["brr"] = rnd(ks[13], (16,), 0.01)
    p["wfc1"] = rnd(ks[14], (80, 32), 0.1);      p["bfc1"] = rnd(ks[15], (32,), 0.01)
    p["wfc2"] = rnd(ks[16], (32, 2), 0.1);       p["bfc2"] = rnd(ks[17], (2,), 0.01)
    return p


# ---------------------------- pure-JAX reference -----------------------------

def reference_forward(cwt, rr, p):
    """Float32 reference of LieDetectionModel.forward (inference mode)."""
    x = jnp.transpose(cwt, (0, 2, 3, 1)).astype(jnp.float32)      # NHWC

    def conv_bn_relu(x, w, bias, gamma, beta, rmean, rvar, pad):
        y = jax.lax.conv_general_dilated(
            x, w, window_strides=(1, 1), padding=((pad, pad), (pad, pad)),
            dimension_numbers=("NHWC", "HWIO", "NHWC"))
        scale = gamma / jnp.sqrt(rvar + EPS)
        return jnp.maximum((y + bias - rmean) * scale + beta, 0.0)

    B = x.shape[0]
    y = conv_bn_relu(x, p["w1s"], p["b1c"], p["g1"], p["be1"], p["rm1"], p["rv1"], 3)
    y = y.reshape(B, 6, 5, 6, 5, 16).max(axis=(2, 4))              # MaxPool2d(5)
    y = conv_bn_relu(y, p["w2s"], p["b2c"], p["g2"], p["be2"], p["rm2"], p["rv2"], 1)
    y = y.reshape(B, 2, 3, 2, 3, 32).max(axis=(2, 4))              # MaxPool2d(3)
    y = conv_bn_relu(y, p["w3s"], p["b3c"], p["g3"], p["be3"], p["rm3"], p["rv3"], 1)
    x1 = y.max(axis=(1, 2))                                        # AdaptiveMaxPool2d
    x2 = jnp.maximum(rr @ p["wrr"] + p["brr"], 0.0)
    h = jnp.maximum(jnp.concatenate([x1, x2], axis=1) @ p["wfc1"] + p["bfc1"], 0.0)
    return h @ p["wfc2"] + p["bfc2"]


# --------------------------------- main --------------------------------------

if __name__ == "__main__":
    B, H, W = 2, 30, 30
    k1, k2 = jax.random.split(jax.random.PRNGKey(0))
    cwt = jax.random.normal(k1, (B, 1, H, W), jnp.float32)   # NCHW, like PyTorch
    rr = jax.random.normal(k2, (B, 4), jnp.float32)

    raw = init_params(jax.random.PRNGKey(42))
    prep = prepare_params(raw)

    out = jax.jit(lie_detection_forward)(cwt, rr, prep)
    out = jax.block_until_ready(out)
    assert out.shape == (B, 2) and out.dtype == jnp.float32

    ref = reference_forward(cwt, rr, raw)
    err = float(jnp.max(jnp.abs(out - ref)))
    assert err < 1e-1, f"kernel vs reference max|diff| = {err}"
    print("KERNEL_OK")
</pallas_src>

<mosaic_0001>
module attributes {stable_mosaic.version = 11 : i64} {
  func.func @_fused_kernel(%arg0: i32, %arg1: memref<2x1x30x30xf32, #tpu.memory_space<vmem>>, %arg2: memref<2x4xf32, #tpu.memory_space<vmem>>, %arg3: memref<7x32x512xbf16, #tpu.memory_space<vmem>>, %arg4: memref<3x128x256xbf16, #tpu.memory_space<vmem>>, %arg5: memref<3x128x128xbf16, #tpu.memory_space<vmem>>, %arg6: memref<3x512xf32, #tpu.memory_space<vmem>>, %arg7: memref<96x128xf32, #tpu.memory_space<vmem>>, %arg8: memref<2x2xf32, #tpu.memory_space<vmem>>, %arg9: memref<88x32xbf16, #tpu.memory_space<vmem>>, %arg10: memref<24x128xbf16, #tpu.memory_space<vmem>>, %arg11: memref<16x128xbf16, #tpu.memory_space<vmem>>) attributes {dimension_semantics = [#tpu.dimension_semantics<parallel>], iteration_bounds = array<i64: 1>, scalar_prefetch = 0 : i64, scratch_operands = 3 : i64, tpu.core_type = #tpu.core_type<tc>, window_params = [{transform_indices = @transform_0, window_bounds = array<i64: 2, 1, 30, 30>}, {transform_indices = @transform_1, window_bounds = array<i64: 2, 4>}, {pipeline_mode = #tpu.pipeline_mode<synchronous>, transform_indices = @transform_2, window_bounds = array<i64: 7, 32, 512>}, {pipeline_mode = #tpu.pipeline_mode<synchronous>, transform_indices = @transform_3, window_bounds = array<i64: 3, 128, 256>}, {pipeline_mode = #tpu.pipeline_mode<synchronous>, transform_indices = @transform_4, window_bounds = array<i64: 3, 128, 128>}, {pipeline_mode = #tpu.pipeline_mode<synchronous>, transform_indices = @transform_5, window_bounds = array<i64: 3, 512>}, {pipeline_mode = #tpu.pipeline_mode<synchronous>, transform_indices = @transform_6, window_bounds = array<i64: 96, 128>}, {transform_indices = @transform_7, window_bounds = array<i64: 2, 2>}]} {
    %cst = arith.constant 0.000000e+00 : bf16
    %0 = vector.broadcast %cst : bf16 to vector<88x32xbf16>
    %c0 = arith.constant 0 : index
    %c0_0 = arith.constant 0 : index
    %1 = vector.load %arg9[%c0, %c0_0] : memref<88x32xbf16, #tpu.memory_space<vmem>>, vector<88x32xbf16>
    tpu.vector_store %arg9[%c0, %c0_0], %0 {strides = array<i32>} : memref<88x32xbf16, #tpu.memory_space<vmem>>, vector<88x32xbf16>,
    %cst_1 = arith.constant 0.000000e+00 : bf16
    %2 = vector.broadcast %cst_1 : bf16 to vector<24x128xbf16>
    %c0_2 = arith.constant 0 : index
    %c0_3 = arith.constant 0 : index
    %3 = vector.load %arg10[%c0_2, %c0_3] : memref<24x128xbf16, #tpu.memory_space<vmem>>, vector<24x128xbf16>
    tpu.vector_store %arg10[%c0_2, %c0_3], %2 {strides = array<i32>} : memref<24x128xbf16, #tpu.memory_space<vmem>>, vector<24x128xbf16>,
    %cst_4 = arith.constant 0.000000e+00 : bf16
    %4 = vector.broadcast %cst_4 : bf16 to vector<16x128xbf16>
    %c0_5 = arith.constant 0 : index
    %c0_6 = arith.constant 0 : index
    %5 = vector.load %arg11[%c0_5, %c0_6] : memref<16x128xbf16, #tpu.memory_space<vmem>>, vector<16x128xbf16>
    tpu.vector_store %arg11[%c0_5, %c0_6], %4 {strides = array<i32>} : memref<16x128xbf16, #tpu.memory_space<vmem>>, vector<16x128xbf16>,
    %c0_7 = arith.constant 0 : index
    %c0_8 = arith.constant 0 : index
    %c0_9 = arith.constant 0 : index
    %c0_10 = arith.constant 0 : index
    %6 = vector.load %arg1[%c0_7, %c0_8, %c0_9, %c0_10] : memref<2x1x30x30xf32, #tpu.memory_space<vmem>>, vector<1x1x30x30xf32>
    %7 = vector.shape_cast %6 : vector<1x1x30x30xf32> to vector<30x30xf32>
    %8 = arith.truncf %7 : vector<30x30xf32> to vector<30x30xbf16>
    %c4 = arith.constant 4 : index
    %c0_11 = arith.constant 0 : index
    %9 = vector.load %arg9[%c4, %c0_11] : memref<88x32xbf16, #tpu.memory_space<vmem>>, vector<30x30xbf16>
    tpu.vector_store %arg9[%c4, %c0_11], %8 {strides = array<i32>} : memref<88x32xbf16, #tpu.memory_space<vmem>>, vector<30x30xbf16>,
    %c1 = arith.constant 1 : index
    %c0_12 = arith.constant 0 : index
    %c0_13 = arith.constant 0 : index
    %c0_14 = arith.constant 0 : index
    %10 = vector.load %arg1[%c1, %c0_12, %c0_13, %c0_14] : memref<2x1x30x30xf32, #tpu.memory_space<vmem>>, vector<1x1x30x30xf32>
    %11 = vector.shape_cast %10 : vector<1x1x30x30xf32> to vector<30x30xf32>
    %12 = arith.truncf %11 : vector<30x30xf32> to vector<30x30xbf16>
    %c44 = arith.constant 44 : index
    %c0_15 = arith.constant 0 : index
    %13 = vector.load %arg9[%c44, %c0_15] : memref<88x32xbf16, #tpu.memory_space<vmem>>, vector<30x30xbf16>
    tpu.vector_store %arg9[%c44, %c0_15], %12 {strides = array<i32>} : memref<88x32xbf16, #tpu.memory_space<vmem>>, vector<30x30xbf16>,
    %c0_16 = arith.constant 0 : index
    %c0_17 = arith.constant 0 : index
    %14 = vector.load %arg9[%c0_16, %c0_17] : memref<88x32xbf16, #tpu.memory_space<vmem>>, vector<80x32xbf16>
    %c0_18 = arith.constant 0 : index
    %c0_19 = arith.constant 0 : index
    %c0_20 = arith.constant 0 : index
    %15 = vector.load %arg3[%c0_18, %c0_19, %c0_20] : memref<7x32x512xbf16, #tpu.memory_space<vmem>>, vector<1x32x512xbf16>
    %16 = vector.shape_cast %15 : vector<1x32x512xbf16> to vector<32x512xbf16>
    %cst_21 = arith.constant dense<0.000000e+00> : vector<80x512xf32>
    %17 = tpu.matmul %14, %16, %cst_21 {dimension_numbers = #tpu.dot_dimension_numbers<[1], [0], [0], [1], [0, 0, 1, 1], [], []>} : vector<80x32xbf16>, vector<32x512xbf16>, vector<80x512xf32> -> vector<80x512xf32>
    %c1_22 = arith.constant 1 : index
    %c0_23 = arith.constant 0 : index
    %18 = vector.load %arg9[%c1_22, %c0_23] : memref<88x32xbf16, #tpu.memory_space<vmem>>, vector<80x32xbf16>
    %c1_24 = arith.constant 1 : index
    %c0_25 = arith.constant 0 : index
    %c0_26 = arith.constant 0 : index
    %19 = vector.load %arg3[%c1_24, %c0_25, %c0_26] : memref<7x32x512xbf16, #tpu.memory_space<vmem>>, vector<1x32x512xbf16>
    %20 = vector.shape_cast %19 : vector<1x32x512xbf16> to vector<32x512xbf16>
    %cst_27 = arith.constant dense<0.000000e+00> : vector<80x512xf32>
    %21 = tpu.matmul %18, %20, %cst_27 {dimension_numbers = #tpu.dot_dimension_numbers<[1], [0], [0], [1], [0, 0, 1, 1], [], []>} : vector<80x32xbf16>, vector<32x512xbf16>, vector<80x512xf32> -> vector<80x512xf32>
    %22 = arith.addf %17, %21 : vector<80x512xf32>
    %c2 = arith.constant 2 : index
    %c0_28 = arith.constant 0 : index
    %23 = vector.load %arg9[%c2, %c0_28] : memref<88x32xbf16, #tpu.memory_space<vmem>>, vector<80x32xbf16>
    %c2_29 = arith.constant 2 : index
    %c0_30 = arith.constant 0 : index
    %c0_31 = arith.constant 0 : index
    %24 = vector.load %arg3[%c2_29, %c0_30, %c0_31] : memref<7x32x512xbf16, #tpu.memory_space<vmem>>, vector<1x32x512xbf16>
    %25 = vector.shape_cast %24 : vector<1x32x512xbf16> to vector<32x512xbf16>
    %cst_32 = arith.constant dense<0.000000e+00> : vector<80x512xf32>
    %26 = tpu.matmul %23, %25, %cst_32 {dimension_numbers = #tpu.dot_dimension_numbers<[1], [0], [0], [1], [0, 0, 1, 1], [], []>} : vector<80x32xbf16>, vector<32x512xbf16>, vector<80x512xf32> -> vector<80x512xf32>
    %27 = arith.addf %22, %26 : vector<80x512xf32>
    %c3 = arith.constant 3 : index
    %c0_33 = arith.constant 0 : index
    %28 = vector.load %arg9[%c3, %c0_33] : memref<88x32xbf16, #tpu.memory_space<vmem>>, vector<80x32xbf16>
    %c3_34 = arith.constant 3 : index
    %c0_35 = arith.constant 0 : index
    %c0_36 = arith.constant 0 : index
    %29 = vector.load %arg3[%c3_34, %c0_35, %c0_36] : memref<7x32x512xbf16, #tpu.memory_space<vmem>>, vector<1x32x512xbf16>
    %30 = vector.shape_cast %29 : vector<1x32x512xbf16> to vector<32x512xbf16>
    %cst_37 = arith.constant dense<0.000000e+00> : vector<80x512xf32>
    %31 = tpu.matmul %28, %30, %cst_37 {dimension_numbers = #tpu.dot_dimension_numbers<[1], [0], [0], [1], [0, 0, 1, 1], [], []>} : vector<80x32xbf16>, vector<32x512xbf16>, vector<80x512xf32> -> vector<80x512xf32>
    %32 = arith.addf %27, %31 : vector<80x512xf32>
    %c4_38 = arith.constant 4 : index
    %c0_39 = arith.constant 0 : index
    %33 = vector.load %arg9[%c4_38, %c0_39] : memref<88x32xbf16, #tpu.memory_space<vmem>>, vector<80x32xbf16>
    %c4_40 = arith.constant 4 : index
    %c0_41 = arith.constant 0 : index
    %c0_42 = arith.constant 0 : index
    %34 = vector.load %arg3[%c4_40, %c0_41, %c0_42] : memref<7x32x512xbf16, #tpu.memory_space<vmem>>, vector<1x32x512xbf16>
    %35 = vector.shape_cast %34 : vector<1x32x512xbf16> to vector<32x512xbf16>
    %cst_43 = arith.constant dense<0.000000e+00> : vector<80x512xf32>
    %36 = tpu.matmul %33, %35, %cst_43 {dimension_numbers = #tpu.dot_dimension_numbers<[1], [0], [0], [1], [0, 0, 1, 1], [], []>} : vector<80x32xbf16>, vector<32x512xbf16>, vector<80x512xf32> -> vector<80x512xf32>
    %37 = arith.addf %32, %36 : vector<80x512xf32>
    %c5 = arith.constant 5 : index
    %c0_44 = arith.constant 0 : index
    %38 = vector.load %arg9[%c5, %c0_44] : memref<88x32xbf16, #tpu.memory_space<vmem>>, vector<80x32xbf16>
    %c5_45 = arith.constant 5 : index
    %c0_46 = arith.constant 0 : index
    %c0_47 = arith.constant 0 : index
    %39 = vector.load %arg3[%c5_45, %c0_46, %c0_47] : memref<7x32x512xbf16, #tpu.memory_space<vmem>>, vector<1x32x512xbf16>
    %40 = vector.shape_cast %39 : vector<1x32x512xbf16> to vector<32x512xbf16>
    %cst_48 = arith.constant dense<0.000000e+00> : vector<80x512xf32>
    %41 = tpu.matmul %38, %40, %cst_48 {dimension_numbers = #tpu.dot_dimension_numbers<[1], [0], [0], [1], [0, 0, 1, 1], [], []>} : vector<80x32xbf16>, vector<32x512xbf16>, vector<80x512xf32> -> vector<80x512xf32>
    %42 = arith.addf %37, %41 : vector<80x512xf32>
    %c6 = arith.constant 6 : index
    %c0_49 = arith.constant 0 : index
    %43 = vector.load %arg9[%c6, %c0_49] : memref<88x32xbf16, #tpu.memory_space<vmem>>, vector<80x32xbf16>
    %c6_50 = arith.constant 6 : index
    %c0_51 = arith.constant 0 : index
    %c0_52 = arith.constant 0 : index
    %44 = vector.load %arg3[%c6_50, %c0_51, %c0_52] : memref<7x32x512xbf16, #tpu.memory_space<vmem>>, vector<1x32x512xbf16>
    %45 = vector.shape_cast %44 : vector<1x32x512xbf16> to vector<32x512xbf16>
    %cst_53 = arith.constant dense<0.000000e+00> : vector<80x512xf32>
    %46 = tpu.matmul %43, %45, %cst_53 {dimension_numbers = #tpu.dot_dimension_numbers<[1], [0], [0], [1], [0, 0, 1, 1], [], []>} : vector<80x32xbf16>, vector<32x512xbf16>, vector<80x512xf32> -> vector<80x512xf32>
    %47 = arith.addf %42, %46 : vector<80x512xf32>
    %c0_54 = arith.constant 0 : index
    %c0_55 = arith.constant 0 : index
    %48 = vector.load %arg6[%c0_54, %c0_55] : memref<3x512xf32, #tpu.memory_space<vmem>>, vector<1x512xf32>
    %49 = vector.broadcast %48 : vector<1x512xf32> to vector<80x512xf32>
    %50 = arith.addf %47, %49 : vector<80x512xf32>
    %cst_56 = arith.constant 0.000000e+00 : f32
    %51 = vector.broadcast %cst_56 : f32 to vector<80x512xf32>
    %52 = arith.maximumf %50, %51 : vector<80x512xf32>
    %53 = vector.extract_strided_slice %52 {offsets = [0, 0], sizes = [80, 496], strides = [1, 1]} : vector<80x512xf32> to vector<80x496xf32>
    %54 = vector.extract_strided_slice %52 {offsets = [0, 16], sizes = [80, 496], strides = [1, 1]} : vector<80x512xf32> to vector<80x496xf32>
    %55 = arith.maximumf %53, %54 : vector<80x496xf32>
    %56 = vector.extract_strided_slice %55 {offsets = [0, 0], sizes = [80, 464], strides = [1, 1]} : vector<80x496xf32> to vector<80x464xf32>
    %57 = vector.extract_strided_slice %55 {offsets = [0, 32], sizes = [80, 464], strides = [1, 1]} : vector<80x496xf32> to vector<80x464xf32>
    %58 = arith.maximumf %56, %57 : vector<80x464xf32>
    %59 = vector.extract_strided_slice %58 {offsets = [0, 0], sizes = [80, 448], strides = [1, 1]} : vector<80x464xf32> to vector<80x448xf32>
    %60 = vector.extract_strided_slice %52 {offsets = [0, 64], sizes = [80, 448], strides = [1, 1]} : vector<80x512xf32> to vector<80x448xf32>
    %61 = arith.maximumf %59, %60 : vector<80x448xf32>
    %62 = vector.extract_strided_slice %61 {offsets = [0, 0], sizes = [80, 16], strides = [1, 1]} : vector<80x448xf32> to vector<80x16xf32>
    %63 = vector.extract_strided_slice %61 {offsets = [0, 80], sizes = [80, 16], strides = [1, 1]} : vector<80x448xf32> to vector<80x16xf32>
    %64 = vector.extract_strided_slice %61 {offsets = [0, 160], sizes = [80, 16], strides = [1, 1]} : vector<80x448xf32> to vector<80x16xf32>
    %65 = vector.extract_strided_slice %61 {offsets = [0, 240], sizes = [80, 16], strides = [1, 1]} : vector<80x448xf32> to vector<80x16xf32>
    %66 = vector.extract_strided_slice %61 {offsets = [0, 320], sizes = [80, 16], strides = [1, 1]} : vector<80x448xf32> to vector<80x16xf32>
    %67 = vector.extract_strided_slice %61 {offsets = [0, 400], sizes = [80, 16], strides = [1, 1]} : vector<80x448xf32> to vector<80x16xf32>
    %68 = tpu.concatenate %62, %63, %64, %65, %66, %67 in 1 : vector<80x16xf32>, vector<80x16xf32>, vector<80x16xf32>, vector<80x16xf32>, vector<80x16xf32>, vector<80x16xf32> -> vector<80x96xf32>
    %69 = vector.extract_strided_slice %68 {offsets = [0, 0], sizes = [76, 96], strides = [1, 1]} : vector<80x96xf32> to vector<76x96xf32>
    %70 = vector.extract_strided_slice %68 {offsets = [1, 0], sizes = [76, 96], strides = [1, 1]} : vector<80x96xf32> to vector<76x96xf32>
    %71 = arith.maximumf %69, %70 : vector<76x96xf32>
    %72 = vector.extract_strided_slice %68 {offsets = [2, 0], sizes = [76, 96], strides = [1, 1]} : vector<80x96xf32> to vector<76x96xf32>
    %73 = arith.maximumf %71, %72 : vector<76x96xf32>
    %74 = vector.extract_strided_slice %68 {offsets = [3, 0], sizes = [76, 96], strides = [1, 1]} : vector<80x96xf32> to vector<76x96xf32>
    %75 = arith.maximumf %73, %74 : vector<76x96xf32>
    %76 = vector.extract_strided_slice %68 {offsets = [4, 0], sizes = [76, 96], strides = [1, 1]} : vector<80x96xf32> to vector<76x96xf32>
    %77 = arith.maximumf %75, %76 : vector<76x96xf32>
    %78 = vector.extract_strided_slice %77 {offsets = [1, 0], sizes = [1, 96], strides = [1, 1]} : vector<76x96xf32> to vector<1x96xf32>
    %79 = vector.extract_strided_slice %77 {offsets = [6, 0], sizes = [1, 96], strides = [1, 1]} : vector<76x96xf32> to vector<1x96xf32>
    %80 = vector.extract_strided_slice %77 {offsets = [11, 0], sizes = [1, 96], strides = [1, 1]} : vector<76x96xf32> to vector<1x96xf32>
    %81 = vector.extract_strided_slice %77 {offsets = [16, 0], sizes = [1, 96], strides = [1, 1]} : vector<76x96xf32> to vector<1x96xf32>
    %82 = vector.extract_strided_slice %77 {offsets = [21, 0], sizes = [1, 96], strides = [1, 1]} : vector<76x96xf32> to vector<1x96xf32>
    %83 = vector.extract_strided_slice %77 {offsets = [26, 0], sizes = [1, 96], strides = [1, 1]} : vector<76x96xf32> to vector<1x96xf32>
    %84 = tpu.concatenate %78, %79, %80, %81, %82, %83 in 0 : vector<1x96xf32>, vector<1x96xf32>, vector<1x96xf32>, vector<1x96xf32>, vector<1x96xf32>, vector<1x96xf32> -> vector<6x96xf32>
    %85 = arith.truncf %84 : vector<6x96xf32> to vector<6x96xbf16>
    %c2_57 = arith.constant 2 : index
    %c0_58 = arith.constant 0 : index
    %86 = vector.load %arg10[%c2_57, %c0_58] : memref<24x128xbf16, #tpu.memory_space<vmem>>, vector<6x96xbf16>
    tpu.vector_store %arg10[%c2_57, %c0_58], %85 {strides = array<i32>} : memref<24x128xbf16, #tpu.memory_space<vmem>>, vector<6x96xbf16>,
    %87 = vector.extract_strided_slice %77 {offsets = [41, 0], sizes = [1, 96], strides = [1, 1]} : vector<76x96xf32> to vector<1x96xf32>
    %88 = vector.extract_strided_slice %77 {offsets = [46, 0], sizes = [1, 96], strides = [1, 1]} : vector<76x96xf32> to vector<1x96xf32>
    %89 = vector.extract_strided_slice %77 {offsets = [51, 0], sizes = [1, 96], strides = [1, 1]} : vector<76x96xf32> to vector<1x96xf32>
    %90 = vector.extract_strided_slice %77 {offsets = [56, 0], sizes = [1, 96], strides = [1, 1]} : vector<76x96xf32> to vector<1x96xf32>
    %91 = vector.extract_strided_slice %77 {offsets = [61, 0], sizes = [1, 96], strides = [1, 1]} : vector<76x96xf32> to vector<1x96xf32>
    %92 = vector.extract_strided_slice %77 {offsets = [66, 0], sizes = [1, 96], strides = [1, 1]} : vector<76x96xf32> to vector<1x96xf32>
    %93 = tpu.concatenate %87, %88, %89, %90, %91, %92 in 0 : vector<1x96xf32>, vector<1x96xf32>, vector<1x96xf32>, vector<1x96xf32>, vector<1x96xf32>, vector<1x96xf32> -> vector<6x96xf32>
    %94 = arith.truncf %93 : vector<6x96xf32> to vector<6x96xbf16>
    %c10 = arith.constant 10 : index
    %c0_59 = arith.constant 0 : index
    %95 = vector.load %arg10[%c10, %c0_59] : memref<24x128xbf16, #tpu.memory_space<vmem>>, vector<6x96xbf16>
    tpu.vector_store %arg10[%c10, %c0_59], %94 {strides = array<i32>} : memref<24x128xbf16, #tpu.memory_space<vmem>>, vector<6x96xbf16>,
    %c0_60 = arith.constant 0 : index
    %c0_61 = arith.constant 0 : index
    %96 = vector.load %arg10[%c0_60, %c0_61] : memref<24x128xbf16, #tpu.memory_space<vmem>>, vector<16x128xbf16>
    %c0_62 = arith.constant 0 : index
    %c0_63 = arith.constant 0 : index
    %c0_64 = arith.constant 0 : index
    %97 = vector.load %arg4[%c0_62, %c0_63, %c0_64] : memref<3x128x256xbf16, #tpu.memory_space<vmem>>, vector<1x128x256xbf16>
    %98 = vector.shape_cast %97 : vector<1x128x256xbf16> to vector<128x256xbf16>
    %cst_65 = arith.constant dense<0.000000e+00> : vector<16x256xf32>
    %99 = tpu.matmul %96, %98, %cst_65 {dimension_numbers = #tpu.dot_dimension_numbers<[1], [0], [0], [1], [0, 0, 1, 1], [], []>} : vector<16x128xbf16>, vector<128x256xbf16>, vector<16x256xf32> -> vector<16x256xf32>
    %c1_66 = arith.constant 1 : index
    %c0_67 = arith.constant 0 : index
    %100 = vector.load %arg10[%c1_66, %c0_67] : memref<24x128xbf16, #tpu.memory_space<vmem>>, vector<16x128xbf16>
    %c1_68 = arith.constant 1 : index
    %c0_69 = arith.constant 0 : index
    %c0_70 = arith.constant 0 : index
    %101 = vector.load %arg4[%c1_68, %c0_69, %c0_70] : memref<3x128x256xbf16, #tpu.memory_space<vmem>>, vector<1x128x256xbf16>
    %102 = vector.shape_cast %101 : vector<1x128x256xbf16> to vector<128x256xbf16>
    %cst_71 = arith.constant dense<0.000000e+00> : vector<16x256xf32>
    %103 = tpu.matmul %100, %102, %cst_71 {dimension_numbers = #tpu.dot_dimension_numbers<[1], [0], [0], [1], [0, 0, 1, 1], [], []>} : vector<16x128xbf16>, vector<128x256xbf16>, vector<16x256xf32> -> vector<16x256xf32>
    %104 = arith.addf %99, %103 : vector<16x256xf32>
    %c2_72 = arith.constant 2 : index
    %c0_73 = arith.constant 0 : index
    %105 = vector.load %arg10[%c2_72, %c0_73] : memref<24x128xbf16, #tpu.memory_space<vmem>>, vector<16x128xbf16>
    %c2_74 = arith.constant 2 : index
    %c0_75 = arith.constant 0 : index
    %c0_76 = arith.constant 0 : index
    %106 = vector.load %arg4[%c2_74, %c0_75, %c0_76] : memref<3x128x256xbf16, #tpu.memory_space<vmem>>, vector<1x128x256xbf16>
    %107 = vector.shape_cast %106 : vector<1x128x256xbf16> to vector<128x256xbf16>
    %cst_77 = arith.constant dense<0.000000e+00> : vector<16x256xf32>
    %108 = tpu.matmul %105, %107, %cst_77 {dimension_numbers = #tpu.dot_dimension_numbers<[1], [0], [0], [1], [0, 0, 1, 1], [], []>} : vector<16x128xbf16>, vector<128x256xbf16>, vector<16x256xf32> -> vector<16x256xf32>
    %109 = arith.addf %104, %108 : vector<16x256xf32>
    %c1_78 = arith.constant 1 : index
    %c0_79 = arith.constant 0 : index
    %110 = vector.load %arg6[%c1_78, %c0_79] : memref<3x512xf32, #tpu.memory_space<vmem>>, vector<1x256xf32>
    %111 = vector.broadcast %110 : vector<1x256xf32> to vector<16x256xf32>
    %112 = arith.addf %109, %111 : vector<16x256xf32>
    %cst_80 = arith.constant 0.000000e+00 : f32
    %113 = vector.broadcast %cst_80 : f32 to vector<16x256xf32>
    %114 = arith.maximumf %112, %113 : vector<16x256xf32>
    %115 = vector.extract_strided_slice %114 {offsets = [0, 0], sizes = [16, 192], strides = [1, 1]} : vector<16x256xf32> to vector<16x192xf32>
    %116 = vector.extract_strided_slice %114 {offsets = [0, 32], sizes = [16, 192], strides = [1, 1]} : vector<16x256xf32> to vector<16x192xf32>
    %117 = arith.maximumf %115, %116 : vector<16x192xf32>
    %118 = vector.extract_strided_slice %117 {offsets = [0, 0], sizes = [16, 160], strides = [1, 1]} : vector<16x192xf32> to vector<16x160xf32>
    %119 = vector.extract_strided_slice %114 {offsets = [0, 64], sizes = [16, 160], strides = [1, 1]} : vector<16x256xf32> to vector<16x160xf32>
    %120 = arith.maximumf %118, %119 : vector<16x160xf32>
    %121 = vector.extract_strided_slice %120 {offsets = [0, 0], sizes = [16, 32], strides = [1, 1]} : vector<16x160xf32> to vector<16x32xf32>
    %122 = vector.extract_strided_slice %120 {offsets = [0, 96], sizes = [16, 32], strides = [1, 1]} : vector<16x160xf32> to vector<16x32xf32>
    %123 = tpu.concatenate %121, %122 in 1 : vector<16x32xf32>, vector<16x32xf32> -> vector<16x64xf32>
    %124 = vector.extract_strided_slice %123 {offsets = [0, 0], sizes = [14, 64], strides = [1, 1]} : vector<16x64xf32> to vector<14x64xf32>
    %125 = vector.extract_strided_slice %123 {offsets = [1, 0], sizes = [14, 64], strides = [1, 1]} : vector<16x64xf32> to vector<14x64xf32>
    %126 = arith.maximumf %124, %125 : vector<14x64xf32>
    %127 = vector.extract_strided_slice %123 {offsets = [2, 0], sizes = [14, 64], strides = [1, 1]} : vector<16x64xf32> to vector<14x64xf32>
    %128 = arith.maximumf %126, %127 : vector<14x64xf32>
    %129 = vector.extract_strided_slice %128 {offsets = [1, 0], sizes = [1, 64], strides = [1, 1]} : vector<14x64xf32> to vector<1x64xf32>
    %130 = vector.extract_strided_slice %128 {offsets = [4, 0], sizes = [1, 64], strides = [1, 1]} : vector<14x64xf32> to vector<1x64xf32>
    %131 = tpu.concatenate %129, %130 in 0 : vector<1x64xf32>, vector<1x64xf32> -> vector<2x64xf32>
    %132 = arith.truncf %131 : vector<2x64xf32> to vector<2x64xbf16>
    %c2_81 = arith.constant 2 : index
    %c0_82 = arith.constant 0 : index
    %133 = vector.load %arg11[%c2_81, %c0_82] : memref<16x128xbf16, #tpu.memory_space<vmem>>, vector<2x64xbf16>
    tpu.vector_store %arg11[%c2_81, %c0_82], %132 {strides = array<i32>} : memref<16x128xbf16, #tpu.memory_space<vmem>>, vector<2x64xbf16>,
    %134 = vector.extract_strided_slice %128 {offsets = [9, 0], sizes = [1, 64], strides = [1, 1]} : vector<14x64xf32> to vector<1x64xf32>
    %135 = vector.extract_strided_slice %128 {offsets = [12, 0], sizes = [1, 64], strides = [1, 1]} : vector<14x64xf32> to vector<1x64xf32>
    %136 = tpu.concatenate %134, %135 in 0 : vector<1x64xf32>, vector<1x64xf32> -> vector<2x64xf32>
    %137 = arith.truncf %136 : vector<2x64xf32> to vector<2x64xbf16>
    %c6_83 = arith.constant 6 : index
    %c0_84 = arith.constant 0 : index
    %138 = vector.load %arg11[%c6_83, %c0_84] : memref<16x128xbf16, #tpu.memory_space<vmem>>, vector<2x64xbf16>
    tpu.vector_store %arg11[%c6_83, %c0_84], %137 {strides = array<i32>} : memref<16x128xbf16, #tpu.memory_space<vmem>>, vector<2x64xbf16>,
    %c0_85 = arith.constant 0 : index
    %c0_86 = arith.constant 0 : index
    %139 = vector.load %arg11[%c0_85, %c0_86] : memref<16x128xbf16, #tpu.memory_space<vmem>>, vector<8x128xbf16>
    %c0_87 = arith.constant 0 : index
    %c0_88 = arith.constant 0 : index
    %c0_89 = arith.constant 0 : index
    %140 = vector.load %arg5[%c0_87, %c0_88, %c0_89] : memref<3x128x128xbf16, #tpu.memory_space<vmem>>, vector<1x128x128xbf16>
    %141 = vector.shape_cast %140 : vector<1x128x128xbf16> to vector<128x128xbf16>
    %cst_90 = arith.constant dense<0.000000e+00> : vector<8x128xf32>
    %142 = tpu.matmul %139, %141, %cst_90 {dimension_numbers = #tpu.dot_dimension_numbers<[1], [0], [0], [1], [0, 0, 1, 1], [], []>} : vector<8x128xbf16>, vector<128x128xbf16>, vector<8x128xf32> -> vector<8x128xf32>
    %c1_91 = arith.constant 1 : index
    %c0_92 = arith.constant 0 : index
    %143 = vector.load %arg11[%c1_91, %c0_92] : memref<16x128xbf16, #tpu.memory_space<vmem>>, vector<8x128xbf16>
    %c1_93 = arith.constant 1 : index
    %c0_94 = arith.constant 0 : index
    %c0_95 = arith.constant 0 : index
    %144 = vector.load %arg5[%c1_93, %c0_94, %c0_95] : memref<3x128x128xbf16, #tpu.memory_space<vmem>>, vector<1x128x128xbf16>
    %145 = vector.shape_cast %144 : vector<1x128x128xbf16> to vector<128x128xbf16>
    %cst_96 = arith.constant dense<0.000000e+00> : vector<8x128xf32>
    %146 = tpu.matmul %143, %145, %cst_96 {dimension_numbers = #tpu.dot_dimension_numbers<[1], [0], [0], [1], [0, 0, 1, 1], [], []>} : vector<8x128xbf16>, vector<128x128xbf16>, vector<8x128xf32> -> vector<8x128xf32>
    %147 = arith.addf %142, %146 : vector<8x128xf32>
    %c2_97 = arith.constant 2 : index
    %c0_98 = arith.constant 0 : index
    %148 = vector.load %arg11[%c2_97, %c0_98] : memref<16x128xbf16, #tpu.memory_space<vmem>>, vector<8x128xbf16>
    %c2_99 = arith.constant 2 : index
    %c0_100 = arith.constant 0 : index
    %c0_101 = arith.constant 0 : index
    %149 = vector.load %arg5[%c2_99, %c0_100, %c0_101] : memref<3x128x128xbf16, #tpu.memory_space<vmem>>, vector<1x128x128xbf16>
    %150 = vector.shape_cast %149 : vector<1x128x128xbf16> to vector<128x128xbf16>
    %cst_102 = arith.constant dense<0.000000e+00> : vector<8x128xf32>
    %151 = tpu.matmul %148, %150, %cst_102 {dimension_numbers = #tpu.dot_dimension_numbers<[1], [0], [0], [1], [0, 0, 1, 1], [], []>} : vector<8x128xbf16>, vector<128x128xbf16>, vector<8x128xf32> -> vector<8x128xf32>
    %152 = arith.addf %147, %151 : vector<8x128xf32>
    %c2_103 = arith.constant 2 : index
    %c0_104 = arith.constant 0 : index
    %153 = vector.load %arg6[%c2_103, %c0_104] : memref<3x512xf32, #tpu.memory_space<vmem>>, vector<1x128xf32>
    %154 = vector.broadcast %153 : vector<1x128xf32> to vector<8x128xf32>
    %155 = arith.addf %152, %154 : vector<8x128xf32>
    %cst_105 = arith.constant 0.000000e+00 : f32
    %156 = vector.broadcast %cst_105 : f32 to vector<8x128xf32>
    %157 = arith.maximumf %155, %156 : vector<8x128xf32>
    %158 = vector.extract_strided_slice %157 {offsets = [0, 0], sizes = [8, 64], strides = [1, 1]} : vector<8x128xf32> to vector<8x64xf32>
    %159 = vector.extract_strided_slice %157 {offsets = [0, 64], sizes = [8, 64], strides = [1, 1]} : vector<8x128xf32> to vector<8x64xf32>
    %160 = arith.maximumf %158, %159 : vector<8x64xf32>
    %161 = vector.extract_strided_slice %160 {offsets = [1, 0], sizes = [2, 64], strides = [1, 1]} : vector<8x64xf32> to vector<2x64xf32>
    %cst_106 = arith.constant dense<0xFF800000> : vector<64xf32>
    %162 = vector.multi_reduction <maximumf>, %161, %cst_106 [0] : vector<2x64xf32> to vector<64xf32>
    %163 = vector.shape_cast %162 : vector<64xf32> to vector<1x64xf32>
    %164 = vector.extract_strided_slice %160 {offsets = [5, 0], sizes = [2, 64], strides = [1, 1]} : vector<8x64xf32> to vector<2x64xf32>
    %cst_107 = arith.constant dense<0xFF800000> : vector<64xf32>
    %165 = vector.multi_reduction <maximumf>, %164, %cst_107 [0] : vector<2x64xf32> to vector<64xf32>
    %166 = vector.shape_cast %165 : vector<64xf32> to vector<1x64xf32>
    %167 = tpu.concatenate %163, %166 in 0 : vector<1x64xf32>, vector<1x64xf32> -> vector<2x64xf32>
    %c0_108 = arith.constant 0 : index
    %c0_109 = arith.constant 0 : index
    %168 = vector.load %arg7[%c0_108, %c0_109] : memref<96x128xf32, #tpu.memory_space<vmem>>, vector<96x128xf32>
    %c0_110 = arith.constant 0 : index
    %c0_111 = arith.constant 0 : index
    %169 = vector.load %arg2[%c0_110, %c0_111] : memref<2x4xf32, #tpu.memory_space<vmem>>, vector<2x4xf32>
    %170 = vector.extract_strided_slice %168 {offsets = [80, 0], sizes = [4, 16], strides = [1, 1]} : vector<96x128xf32> to vector<4x16xf32>
    %cst_112 = arith.constant dense<0.000000e+00> : vector<2x16xf32>
    %171 = tpu.matmul %169, %170, %cst_112 {dimension_numbers = #tpu.dot_dimension_numbers<[1], [0], [0], [1], [0, 0, 1, 1], [], []>} : vector<2x4xf32>, vector<4x16xf32>, vector<2x16xf32> -> vector<2x16xf32>
    %172 = vector.extract_strided_slice %168 {offsets = [84, 0], sizes = [1, 16], strides = [1, 1]} : vector<96x128xf32> to vector<1x16xf32>
    %173 = vector.broadcast %172 : vector<1x16xf32> to vector<2x16xf32>
    %174 = arith.addf %171, %173 : vector<2x16xf32>
    %cst_113 = arith.constant 0.000000e+00 : f32
    %175 = vector.broadcast %cst_113 : f32 to vector<2x16xf32>
    %176 = arith.maximumf %174, %175 : vector<2x16xf32>
    %177 = tpu.concatenate %167, %176 in 1 : vector<2x64xf32>, vector<2x16xf32> -> vector<2x80xf32>
    %178 = vector.extract_strided_slice %168 {offsets = [0, 32], sizes = [80, 32], strides = [1, 1]} : vector<96x128xf32> to vector<80x32xf32>
    %cst_114 = arith.constant dense<0.000000e+00> : vector<2x32xf32>
    %179 = tpu.matmul %177, %178, %cst_114 {dimension_numbers = #tpu.dot_dimension_numbers<[1], [0], [0], [1], [0, 0, 1, 1], [], []>} : vector<2x80xf32>, vector<80x32xf32>, vector<2x32xf32> -> vector<2x32xf32>
    %180 = vector.extract_strided_slice %168 {offsets = [85, 32], sizes = [1, 32], strides = [1, 1]} : vector<96x128xf32> to vector<1x32xf32>
    %181 = vector.broadcast %180 : vector<1x32xf32> to vector<2x32xf32>
    %182 = arith.addf %179, %181 : vector<2x32xf32>
    %cst_115 = arith.constant 0.000000e+00 : f32
    %183 = vector.broadcast %cst_115 : f32 to vector<2x32xf32>
    %184 = arith.maximumf %182, %183 : vector<2x32xf32>
    %185 = vector.extract_strided_slice %168 {offsets = [0, 64], sizes = [32, 2], strides = [1, 1]} : vector<96x128xf32> to vector<32x2xf32>
    %cst_116 = arith.constant dense<0.000000e+00> : vector<2x2xf32>
    %186 = tpu.matmul %184, %185, %cst_116 {dimension_numbers = #tpu.dot_dimension_numbers<[1], [0], [0], [1], [0, 0, 1, 1], [], []>} : vector<2x32xf32>, vector<32x2xf32>, vector<2x2xf32> -> vector<2x2xf32>
    %187 = vector.extract_strided_slice %168 {offsets = [86, 64], sizes = [1, 2], strides = [1, 1]} : vector<96x128xf32> to vector<1x2xf32>
    %188 = vector.broadcast %187 : vector<1x2xf32> to vector<2x2xf32>
    %189 = arith.addf %186, %188 : vector<2x2xf32>
    %c0_117 = arith.constant 0 : index
    %c0_118 = arith.constant 0 : index
    %190 = vector.load %arg8[%c0_117, %c0_118] : memref<2x2xf32, #tpu.memory_space<vmem>>, vector<2x2xf32>
    tpu.vector_store %arg8[%c0_117, %c0_118], %189 {strides = array<i32>} : memref<2x2xf32, #tpu.memory_space<vmem>>, vector<2x2xf32>,
    return
  }
  func.func @transform_0(%arg0: i32) -> (i32, i32, i32, i32) {
    %c0_i32 = arith.constant 0 : i32
    %c0_i32_0 = arith.constant 0 : i32
    %c0_i32_1 = arith.constant 0 : i32
    %c0_i32_2 = arith.constant 0 : i32
    return %arg0, %c0_i32, %c0_i32_0, %c0_i32_1 : i32, i32, i32, i32
  }
  func.func @transform_1(%arg0: i32) -> (i32, i32) {
    %c0_i32 = arith.constant 0 : i32
    %c0_i32_0 = arith.constant 0 : i32
    return %arg0, %c0_i32 : i32, i32
  }
  func.func @transform_2(%arg0: i32) -> (i32, i32, i32) {
    %c0_i32 = arith.constant 0 : i32
    %c0_i32_0 = arith.constant 0 : i32
    %c0_i32_1 = arith.constant 0 : i32
    %c0_i32_2 = arith.constant 0 : i32
    return %c0_i32, %c0_i32_0, %c0_i32_1 : i32, i32, i32
  }
  func.func @transform_3(%arg0: i32) -> (i32, i32, i32) {
    %c0_i32 = arith.constant 0 : i32
    %c0_i32_0 = arith.constant 0 : i32
    %c0_i32_1 = arith.constant 0 : i32
    %c0_i32_2 = arith.constant 0 : i32
    return %c0_i32, %c0_i32_0, %c0_i32_1 : i32, i32, i32
  }
  func.func @transform_4(%arg0: i32) -> (i32, i32, i32) {
    %c0_i32 = arith.constant 0 : i32
    %c0_i32_0 = arith.constant 0 : i32
    %c0_i32_1 = arith.constant 0 : i32
    %c0_i32_2 = arith.constant 0 : i32
    return %c0_i32, %c0_i32_0, %c0_i32_1 : i32, i32, i32
  }
  func.func @transform_5(%arg0: i32) -> (i32, i32) {
    %c0_i32 = arith.constant 0 : i32
    %c0_i32_0 = arith.constant 0 : i32
    %c0_i32_1 = arith.constant 0 : i32
    return %c0_i32, %c0_i32_0 : i32, i32
  }
  func.func @transform_6(%arg0: i32) -> (i32, i32) {
    %c0_i32 = arith.constant 0 : i32
    %c0_i32_0 = arith.constant 0 : i32
    %c0_i32_1 = arith.constant 0 : i32
    return %c0_i32, %c0_i32_0 : i32, i32
  }
  func.func @transform_7(%arg0: i32) -> (i32, i32) {
    %c0_i32 = arith.constant 0 : i32
    %c0_i32_0 = arith.constant 0 : i32
    return %arg0, %c0_i32 : i32, i32
  }
}

</mosaic_0001>

<llo_original>
// kernel: lie_detection_forward.1
$region0: #{lie_detection_forward.1}
  #allocation0 [shape = 'u32[]', space=smem, size = 0x4, offset = 0x4, fixed_abs, tag = 'smem constant byte address 0x4 - core index']
  #allocation1 [shape = 'u32[72,128]{1,0:T(1,128)}', space=vmem, size = 0x9000, scoped, tag = 'internal scratch']
  #allocation2 [shape = 'bf16[88,32]{1,0:T(8,128)(2,1)}', space=vmem, size = 0x5800, scoped, tag = 'scratch operand']
  #allocation3 [shape = 'bf16[24,128]{1,0:T(8,128)(2,1)}', space=vmem, size = 0x1800, scoped, tag = 'scratch operand']
  #allocation4 [shape = 'bf16[16,128]{1,0:T(8,128)(2,1)}', space=vmem, size = 0x1000, scoped, tag = 'scratch operand']
  %s0 = inlined_call_operand.vmem [shape: f32[2,1,30,30], index: 0, kind: input, shape index: {}]
  %s1 = inlined_call_operand.vmem [shape: f32[2,4], index: 1, kind: input, shape index: {}]
  %s2 = inlined_call_operand.hbm [shape: bf16[7,32,512], index: 2, kind: input, shape index: {}]
  %s3 = inlined_call_operand.hbm [shape: bf16[3,128,256], index: 3, kind: input, shape index: {}]
  %s4 = inlined_call_operand.hbm [shape: bf16[3,128,128], index: 4, kind: input, shape index: {}]
  %s5 = inlined_call_operand.vmem [shape: f32[3,512], index: 5, kind: input, shape index: {}]
  %s6 = inlined_call_operand.vmem [shape: f32[96,128], index: 6, kind: input, shape index: {}]
  %s7 = inlined_call_operand.hbm [shape: f32[2,2], index: 7, kind: output, shape index: {}]
  %s8 = sld [smem:[#allocation0]]
  $region50: #{lie_detection_forward.1} parent=0
    _
  %s10 = ssub.s32 1, %s8
  %s11 = scalar_select 0, %s10, %s8
  $region1: #{lie_detection_forward.1} parent=0
    #allocation5 [shape = 'u8[229376]{0}', space=vmem, size = 0x38000, scoped, tag = 'input window, operand 2, single buffered']
    #allocation6 [shape = 's32[1]{0}', space=sflag, size = 0x4, scoped, tag = 'scoped memory for lie_detection_forward.1']
    #allocation7 [shape = 's32[1]{0}', space=sflag, size = 0x4, scoped, tag = 'scoped memory for lie_detection_forward.1']
    #allocation8 [shape = 'u8[196608]{0}', space=vmem, size = 0x30000, scoped, tag = 'input window, operand 3, single buffered']
    #allocation9 [shape = 's32[1]{0}', space=sflag, size = 0x4, scoped, tag = 'scoped memory for lie_detection_forward.1']
    #allocation10 [shape = 'u8[98304]{0}', space=vmem, size = 0x18000, scoped, tag = 'input window, operand 4, single buffered']
    #allocation11 [shape = 'u8[1024]{0}', space=vmem, size = 0x400, scoped, tag = 'output window, operand 0, single buffered']
    %12 = vsyncpa [#allocation6], 0
    %13 = vsyncpa [#allocation9], 0
    %14 = vsyncpa [#allocation7], 0
    // Predicated region
    $region2: #{lie_detection_forward.1} parent=1 // pred_check
      _
    $region3: #{lie_detection_forward.1} parent=1 // pred_check_branch
      %16 = sbr.rel (0) target = $region5
    $region4: #{lie_detection_forward.1} parent=1 // pred_region
      _
    $region5: #{lie_detection_forward.1} parent=1 // pred_fallthru
      _
    // Predicated region
    $region6: #{lie_detection_forward.1} parent=1 // pred_check
      _
    $region7: #{lie_detection_forward.1} parent=1 // pred_check_branch
      %18 = sbr.rel (0) target = $region9
    $region8: #{lie_detection_forward.1} parent=1 // pred_region
      _
    $region9: #{lie_detection_forward.1} parent=1 // pred_fallthru
      _
    // Predicated region
    $region10: #{lie_detection_forward.1} parent=1 // pred_check
      _
    $region11: #{lie_detection_forward.1} parent=1 // pred_check_branch
      %20 = sbr.rel (0) target = $region13
    $region12: #{lie_detection_forward.1} parent=1 // pred_region
      %22 = vsyncadd [#allocation6], 0
      %s23 = sshll.u32 %s2, 4
      %s24 = int_to_ptr.hbm [resolvable:$true] %s23
      %s25 = sshll.u32 [#allocation5], 4
      %s26 = int_to_ptr.vmem [resolvable:$true] %s25
      %31 = dma.hbm_to_vmem [thread:$0]  %s24, 7168, %s26, [#allocation6], 256, 256, 16
    $region13: #{lie_detection_forward.1} parent=1 // pred_fallthru
      _
    // Predicated region
    $region14: #{lie_detection_forward.1} parent=1 // pred_check
      _
    $region15: #{lie_detection_forward.1} parent=1 // pred_check_branch
      %33 = sbr.rel (0) target = $region17
    $region16: #{lie_detection_forward.1} parent=1 // pred_region
      %35 = vsyncadd [#allocation9], 0
      %s36 = sshll.u32 %s3, 4
      %s37 = int_to_ptr.hbm [resolvable:$true] %s36
      %s38 = sshll.u32 [#allocation8], 4
      %s39 = int_to_ptr.vmem [resolvable:$true] %s38
      %44 = dma.hbm_to_vmem [thread:$0]  %s37, 6144, %s39, [#allocation9], 128, 128, 8
    $region17: #{lie_detection_forward.1} parent=1 // pred_fallthru
      _
    // Predicated region
    $region18: #{lie_detection_forward.1} parent=1 // pred_check
      _
    $region19: #{lie_detection_forward.1} parent=1 // pred_check_branch
      %46 = sbr.rel (0) target = $region21
    $region20: #{lie_detection_forward.1} parent=1 // pred_region
      %48 = vsyncadd [#allocation9], 0
      %s49 = sshll.u32 %s4, 4
      %s50 = int_to_ptr.hbm [resolvable:$true] %s49
      %s51 = sshll.u32 [#allocation10], 4
      %s52 = int_to_ptr.vmem [resolvable:$true] %s51
      %57 = dma.hbm_to_vmem [thread:$0]  %s50, 3072, %s52, [#allocation9], 64, 64, 4
    $region21: #{lie_detection_forward.1} parent=1 // pred_fallthru
      _
    // Predicated region
    $region22: #{lie_detection_forward.1} parent=1 // pred_check
      _
    $region23: #{lie_detection_forward.1} parent=1 // pred_check_branch
      %59 = sbr.rel (0) target = $region25
    $region24: #{lie_detection_forward.1} parent=1 // pred_region
      _
    $region25: #{lie_detection_forward.1} parent=1 // pred_fallthru
      _
    // Predicated region
    $region26: #{lie_detection_forward.1} parent=1 // pred_check
      _
    $region27: #{lie_detection_forward.1} parent=1 // pred_check_branch
      %61 = sbr.rel (0) target = $region29
    $region28: #{lie_detection_forward.1} parent=1 // pred_region
      _
    $region29: #{lie_detection_forward.1} parent=1 // pred_fallthru
      _
    // Predicated region
    $region30: #{lie_detection_forward.1} parent=1 // pred_check
      _
    $region31: #{lie_detection_forward.1} parent=1 // pred_check_branch
      %63 = sbr.rel (0) target = $region33
    $region32: #{lie_detection_forward.1} parent=1 // pred_region
      %65 = dma.done [#allocation6], 7168
    $region33: #{lie_detection_forward.1} parent=1 // pred_fallthru
      _
    // Predicated region
    $region34: #{lie_detection_forward.1} parent=1 // pred_check
      _
    $region35: #{lie_detection_forward.1} parent=1 // pred_check_branch
      %67 = sbr.rel (0) target = $region37
    $region36: #{lie_detection_forward.1} parent=1 // pred_region
      %69 = dma.done [#allocation9], 6144
    $region37: #{lie_detection_forward.1} parent=1 // pred_fallthru
      _
    // Predicated region
    $region38: #{lie_detection_forward.1} parent=1 // pred_check
      _
    $region39: #{lie_detection_forward.1} parent=1 // pred_check_branch
      %71 = sbr.rel (0) target = $region41
    $region40: #{lie_detection_forward.1} parent=1 // pred_region
      %73 = dma.done [#allocation9], 3072
    $region41: #{lie_detection_forward.1} parent=1 // pred_fallthru
      _
    %vm75 = vcmask 257024
    %76 = vst.msk [vmem:[#allocation2] sm:$0xf] %vm75, 0
    %77 = vst.msk [vmem:[#allocation2 + $0x4] sm:$0xf] %vm75, 0
    %78 = vst.msk [vmem:[#allocation2 + $0x8] sm:$0xf] %vm75, 0
    %79 = vst.msk [vmem:[#allocation2 + $0xc] sm:$0xf] %vm75, 0
    %80 = vst.msk [vmem:[#allocation2 + $0x10] sm:$0xf] %vm75, 0
    %81 = vst.msk [vmem:[#allocation2 + $0x14] sm:$0xf] %vm75, 0
    %82 = vst.msk [vmem:[#allocation2 + $0x18] sm:$0xf] %vm75, 0
    %83 = vst.msk [vmem:[#allocation2 + $0x1c] sm:$0xf] %vm75, 0
    %84 = vst.msk [vmem:[#allocation2 + $0x20] sm:$0xf] %vm75, 0
    %85 = vst.msk [vmem:[#allocation2 + $0x24] sm:$0xf] %vm75, 0
    %86 = vst.msk [vmem:[#allocation2 + $0x28] sm:$0xf] %vm75, 0
    %87 = vst [vmem:[#allocation3] sm:$0xf] 0
    %88 = vst [vmem:[#allocation3 + $0x4] sm:$0xf] 0
    %89 = vst [vmem:[#allocation3 + $0x8] sm:$0xf] 0
    %90 = vst [vmem:[#allocation4] sm:$0xf] 0
    %91 = vst [vmem:[#allocation4 + $0x4] sm:$0xf] 0
    %v92 = vld [vmem:[%s0] sm:$0xff]
    %v93 = vld [vmem:[%s0 + $0x8] sm:$0xff]
    %v94 = vld [vmem:[%s0 + $0x10] sm:$0xff]
    %v95 = vld [vmem:[%s0 + $0x18] sm:$0x3f]
    %v96 = vpack.c.bf16 %v92, %v92
    %v97 = vpack.c.bf16 %v93, %v93
    %v98 = vpack.c.bf16 %v94, %v94
    %v99 = vpack.c.bf16 %v95, %v95
    %vm104 = vcmask 1041408
    %vm105 = vcmask 1045508
    %vm106 = vmor %vm104, %vm105
    %v107 = vrot.slane %v96, 6
    %v108 = vrot.slane %v107, 4
    %v109 = vrot.slane %v97, 6
    %v110 = vsel %vm106, %v108, %v109
    %v111 = vrot.slane %v109, 4
    %v112 = vrot.slane %v98, 6
    %v113 = vsel %vm106, %v111, %v112
    %v114 = vrot.slane %v112, 4
    %v115 = vrot.slane %v99, 6
    %v116 = vsel %vm106, %v114, %v115
    %v117 = vrot.slane %v115, 4
    %vm123 = vcmask 240642
    %124 = vst.msk [vmem:[#allocation2] sm:$0xc] %vm123, %v107
    %vm125 = vcmask 240640
    %126 = vst.msk [vmem:[#allocation2 + $0x4] sm:$0xf] %vm125, %v110
    %127 = vst.msk [vmem:[#allocation2 + $0x8] sm:$0xf] %vm125, %v113
    %128 = vst.msk [vmem:[#allocation2 + $0xc] sm:$0xf] %vm125, %v116
    %vm129 = vcmask 237568
    %130 = vst.msk [vmem:[#allocation2 + $0x10] sm:$0x1] %vm129, %v117
    %s131 = scalar_lea.vmem %s0, 32
    %v132 = vld [vmem:[%s131] sm:$0xff]
    %v133 = vld [vmem:[%s131 + $0x8] sm:$0xff]
    %v134 = vld [vmem:[%s131 + $0x10] sm:$0xff]
    %v135 = vld [vmem:[%s131 + $0x18] sm:$0x3f]
    %v136 = vpack.c.bf16 %v132, %v132
    %v137 = vpack.c.bf16 %v133, %v133
    %v138 = vpack.c.bf16 %v134, %v134
    %v139 = vpack.c.bf16 %v135, %v135
    %v144 = vrot.slane %v136, 6
    %v145 = vrot.slane %v144, 4
    %v146 = vrot.slane %v137, 6
    %v147 = vsel %vm106, %v145, %v146
    %v148 = vrot.slane %v146, 4
    %v149 = vrot.slane %v138, 6
    %v150 = vsel %vm106, %v148, %v149
    %v151 = vrot.slane %v149, 4
    %v152 = vrot.slane %v139, 6
    %v153 = vsel %vm106, %v151, %v152
    %v154 = vrot.slane %v152, 4
    %160 = vst.msk [vmem:[#allocation2 + $0x14] sm:$0xc] %vm123, %v144
    %161 = vst.msk [vmem:[#allocation2 + $0x18] sm:$0xf] %vm125, %v147
    %162 = vst.msk [vmem:[#allocation2 + $0x1c] sm:$0xf] %vm125, %v150
    %163 = vst.msk [vmem:[#allocation2 + $0x20] sm:$0xf] %vm125, %v153
    %164 = vst.msk [vmem:[#allocation2 + $0x24] sm:$0x1] %vm129, %v154
    %v165 = vld [vmem:[#allocation2] sm:$0xf]
    %v166 = vld [vmem:[#allocation2 + $0x4] sm:$0xf]
    %v167 = vld [vmem:[#allocation2 + $0x8] sm:$0xf]
    %v168 = vld [vmem:[#allocation2 + $0xc] sm:$0xf]
    %v169 = vld [vmem:[#allocation2 + $0x10] sm:$0xf]
    %v170 = vld [vmem:[#allocation2 + $0x14] sm:$0xf]
    %v171 = vld [vmem:[#allocation2 + $0x18] sm:$0xf]
    %v172 = vld [vmem:[#allocation2 + $0x1c] sm:$0xf]
    %v173 = vld [vmem:[#allocation2 + $0x20] sm:$0xf]
    %v174 = vld [vmem:[#allocation2 + $0x24] sm:$0xf]
    %v175 = vld [vmem:[#allocation5] sm:$0xff]
    %v176 = vld [vmem:[#allocation5 + $0x8] sm:$0xff]
    %v177 = vld [vmem:[#allocation5 + $0x10] sm:$0xff]
    %v178 = vld [vmem:[#allocation5 + $0x18] sm:$0xff]
    %v179 = vld [vmem:[#allocation5 + $0x20] sm:$0xff]
    %v180 = vld [vmem:[#allocation5 + $0x28] sm:$0xff]
    %v181 = vld [vmem:[#allocation5 + $0x30] sm:$0xff]
    %v182 = vld [vmem:[#allocation5 + $0x38] sm:$0xff]
    %v183 = vld [vmem:[#allocation2 + $0x28] sm:$0x1]
    %s184 = scalar_lea.vmem [#allocation5], 64
    %v185 = vld [vmem:[%s184] sm:$0xff]
    %v186 = vld [vmem:[%s184 + $0x8] sm:$0xff]
    %v187 = vld [vmem:[%s184 + $0x10] sm:$0xff]
    %v188 = vld [vmem:[%s184 + $0x18] sm:$0xff]
    %v189 = vld [vmem:[%s184 + $0x20] sm:$0xff]
    %v190 = vld [vmem:[%s184 + $0x28] sm:$0xff]
    %v191 = vld [vmem:[%s184 + $0x30] sm:$0xff]
    %v192 = vld [vmem:[%s184 + $0x38] sm:$0xff]
    %v204 = vunpack.c.l.b16 %v165
    %v205 = vunpack.c.l.b16 %v166
    %v206 = vunpack.c.l.b16 %v167
    %v207 = vunpack.c.l.b16 %v168
    %v208 = vunpack.c.l.b16 %v169
    %v209 = vunpack.c.l.b16 %v170
    %v210 = vunpack.c.l.b16 %v171
    %v211 = vunpack.c.l.b16 %v172
    %v212 = vunpack.c.l.b16 %v173
    %v213 = vunpack.c.l.b16 %v174
    %v214 = vunpack.c.l.b16 %v183
    %v215 = vpack.c.b16 %v205, %v204
    %v216 = vpack.c.b16 %v207, %v206
    %v217 = vpack.c.b16 %v209, %v208
    %v218 = vpack.c.b16 %v211, %v210
    %v219 = vpack.c.b16 %v213, %v212
    %v220 = vpack.c.b16 %v214, %v214
    %vm221 = vsmask.f32 7424
    %v223 = vshrl.u32 %v215, 16
    %v225 = vshll.u32 %v215, 16
    %v227 = vrot.slane %v225, 1
    %v228 = vor.u32 %v223, %v227
    %v230 = vshll.u32 %v216, 16
    %v232 = vrot.slane %v230, 1
    %v233 = vsel %vm221, %v228, %v232
    %v234 = vshrl.u32 %v216, 16
    %v236 = vor.u32 %v234, %v232
    %v238 = vshll.u32 %v217, 16
    %v240 = vrot.slane %v238, 1
    %v241 = vsel %vm221, %v236, %v240
    %v242 = vshrl.u32 %v217, 16
    %v244 = vor.u32 %v242, %v240
    %v246 = vshll.u32 %v218, 16
    %v248 = vrot.slane %v246, 1
    %v249 = vsel %vm221, %v244, %v248
    %v250 = vshrl.u32 %v218, 16
    %v252 = vor.u32 %v250, %v248
    %v254 = vshll.u32 %v219, 16
    %v256 = vrot.slane %v254, 1
    %v257 = vsel %vm221, %v252, %v256
    %v258 = vshrl.u32 %v219, 16
    %v260 = vor.u32 %v258, %v256
    %v262 = vshll.u32 %v220, 16
    %v264 = vrot.slane %v262, 1
    %v265 = vsel %vm221, %v260, %v264
    %v274 = vunpack.c.l.b16 %v185
    %v275 = vunpack.c.h.b16 %v185
    %v276 = vunpack.c.l.b16 %v186
    %v277 = vunpack.c.h.b16 %v186
    %v278 = vunpack.c.l.b16 %v187
    %v279 = vunpack.c.h.b16 %v187
    %v280 = vunpack.c.l.b16 %v188
    %v281 = vunpack.c.h.b16 %v188
    %v282 = vunpack.c.l.b16 %v189
    %v283 = vunpack.c.h.b16 %v189
    %v284 = vunpack.c.l.b16 %v190
    %v285 = vunpack.c.h.b16 %v190
    %v286 = vunpack.c.l.b16 %v191
    %v287 = vunpack.c.h.b16 %v191
    %v288 = vunpack.c.l.b16 %v192
    %v289 = vunpack.c.h.b16 %v192
    %v290 = vpack.c.b16 %v278, %v274
    %v291 = vpack.c.b16 %v279, %v275
    %v292 = vpack.c.b16 %v280, %v276
    %v293 = vpack.c.b16 %v281, %v277
    %v294 = vpack.c.b16 %v286, %v282
    %v295 = vpack.c.b16 %v287, %v283
    %v296 = vpack.c.b16 %v288, %v284
    %v297 = vpack.c.b16 %v289, %v285
    %vm306 = vcmask 261120
    %v308 = vsel %vm306, %v233, 0
    %v311 = vsel %vm306, %v241, 0
    %v314 = vsel %vm306, %v249, 0
    %v317 = vsel %vm306, %v257, 0
    %v320 = vsel %vm306, %v265, 0
    %322 = vmatpush.bf16.msra.mxu0 0
    %323 = vmatpush.bf16.msra.mxu0 0
    %324 = vmatpush.bf16.msra.mxu0 0
    %325 = vmatpush.bf16.msra.mxu0 0
    %326 = vmatpush.bf16.msra.mxu0 0
    %327 = vmatpush.bf16.msra.mxu0 0
    %328 = vmatpush.bf16.msra.mxu0 %v294
    %329 = vmatpush.bf16.msra.mxu0 %v290
    %330 = vmatmul.bf16.gmra.mxu0 %v308
    %v331 = vpop.f32.mrf.mxu0
    %v332 = vadd.f32 0.0, %v331
    %v333 = vpop.f32.mrf.mxu0
    %v334 = vadd.f32 0.0, %v333
    %335 = vmatmul.bf16.gmra.mxu0 %v311
    %v336 = vpop.f32.mrf.mxu0
    %v337 = vadd.f32 0.0, %v336
    %v338 = vpop.f32.mrf.mxu0
    %v339 = vadd.f32 0.0, %v338
    %340 = vmatmul.bf16.gmra.mxu0 %v314
    %v341 = vpop.f32.mrf.mxu0
    %v342 = vadd.f32 0.0, %v341
    %v343 = vpop.f32.mrf.mxu0
    %v344 = vadd.f32 0.0, %v343
    %345 = vmatmul.bf16.gmra.mxu0 %v317
    %v346 = vpop.f32.mrf.mxu0
    %v347 = vadd.f32 0.0, %v346
    %v348 = vpop.f32.mrf.mxu0
    %v349 = vadd.f32 0.0, %v348
    %350 = vmatmul.bf16.gmra.mxu0 %v320
    %v351 = vpop.f32.mrf.mxu0
    %v352 = vadd.f32 0.0, %v351
    %v353 = vpop.f32.mrf.mxu0
    %v354 = vadd.f32 0.0, %v353
    %355 = vdwg.mxu0
    %356 = vmatpush.bf16.msra.mxu0 0
    %357 = vmatpush.bf16.msra.mxu0 0
    %358 = vmatpush.bf16.msra.mxu0 0
    %359 = vmatpush.bf16.msra.mxu0 0
    %360 = vmatpush.bf16.msra.mxu0 0
    %361 = vmatpush.bf16.msra.mxu0 0
    %362 = vmatpush.bf16.msra.mxu0 %v295
    %363 = vmatpush.bf16.msra.mxu0 %v291
    %364 = vmatmul.bf16.gmra.mxu0 %v308
    %v365 = vpop.f32.mrf.mxu0
    %v366 = vadd.f32 0.0, %v365
    %v367 = vpop.f32.mrf.mxu0
    %v368 = vadd.f32 0.0, %v367
    %369 = vmatmul.bf16.gmra.mxu0 %v311
    %v370 = vpop.f32.mrf.mxu0
    %v371 = vadd.f32 0.0, %v370
    %v372 = vpop.f32.mrf.mxu0
    %v373 = vadd.f32 0.0, %v372
    %374 = vmatmul.bf16.gmra.mxu0 %v314
    %v375 = vpop.f32.mrf.mxu0
    %v376 = vadd.f32 0.0, %v375
    %v377 = vpop.f32.mrf.mxu0
    %v378 = vadd.f32 0.0, %v377
    %379 = vmatmul.bf16.gmra.mxu0 %v317
    %v380 = vpop.f32.mrf.mxu0
    %v381 = vadd.f32 0.0, %v380
    %v382 = vpop.f32.mrf.mxu0
    %v383 = vadd.f32 0.0, %v382
    %384 = vmatmul.bf16.gmra.mxu0 %v320
    %v385 = vpop.f32.mrf.mxu0
    %v386 = vadd.f32 0.0, %v385
    %v387 = vpop.f32.mrf.mxu0
    %v388 = vadd.f32 0.0, %v387
    %389 = vdwg.mxu0
    %390 = vmatpush.bf16.msra.mxu0 0
    %391 = vmatpush.bf16.msra.mxu0 0
    %392 = vmatpush.bf16.msra.mxu0 0
    %393 = vmatpush.bf16.msra.mxu0 0
    %394 = vmatpush.bf16.msra.mxu0 0
    %395 = vmatpush.bf16.msra.mxu0 0
    %396 = vmatpush.bf16.msra.mxu0 %v296
    %397 = vmatpush.bf16.msra.mxu0 %v292
    %398 = vmatmul.bf16.gmra.mxu0 %v308
    %v399 = vpop.f32.mrf.mxu0
    %v400 = vadd.f32 0.0, %v399
    %v401 = vpop.f32.mrf.mxu0
    %v402 = vadd.f32 0.0, %v401
    %403 = vmatmul.bf16.gmra.mxu0 %v311
    %v404 = vpop.f32.mrf.mxu0
    %v405 = vadd.f32 0.0, %v404
    %v406 = vpop.f32.mrf.mxu0
    %v407 = vadd.f32 0.0, %v406
    %408 = vmatmul.bf16.gmra.mxu0 %v314
    %v409 = vpop.f32.mrf.mxu0
    %v410 = vadd.f32 0.0, %v409
    %v411 = vpop.f32.mrf.mxu0
    %v412 = vadd.f32 0.0, %v411
    %413 = vmatmul.bf16.gmra.mxu0 %v317
    %v414 = vpop.f32.mrf.mxu0
    %v415 = vadd.f32 0.0, %v414
    %v416 = vpop.f32.mrf.mxu0
    %v417 = vadd.f32 0.0, %v416
    %418 = vmatmul.bf16.gmra.mxu0 %v320
    %v419 = vpop.f32.mrf.mxu0
    %v420 = vadd.f32 0.0, %v419
    %v421 = vpop.f32.mrf.mxu0
    %v422 = vadd.f32 0.0, %v421
    %423 = vdwg.mxu0
    %424 = vmatpush.bf16.msra.mxu0 0
    %425 = vmatpush.bf16.msra.mxu0 0
    %426 = vmatpush.bf16.msra.mxu0 0
    %427 = vmatpush.bf16.msra.mxu0 0
    %428 = vmatpush.bf16.msra.mxu0 0
    %429 = vmatpush.bf16.msra.mxu0 0
    %430 = vmatpush.bf16.msra.mxu0 %v297
    %431 = vmatpush.bf16.msra.mxu0 %v293
    %432 = vmatmul.bf16.gmra.mxu0 %v308
    %v433 = vpop.f32.mrf.mxu0
    %v434 = vadd.f32 0.0, %v433
    %v435 = vpop.f32.mrf.mxu0
    %v436 = vadd.f32 0.0, %v435
    %437 = vmatmul.bf16.gmra.mxu0 %v311
    %v438 = vpop.f32.mrf.mxu0
    %v439 = vadd.f32 0.0, %v438
    %v440 = vpop.f32.mrf.mxu0
    %v441 = vadd.f32 0.0, %v440
    %442 = vmatmul.bf16.gmra.mxu0 %v314
    %v443 = vpop.f32.mrf.mxu0
    %v444 = vadd.f32 0.0, %v443
    %v445 = vpop.f32.mrf.mxu0
    %v446 = vadd.f32 0.0, %v445
    %447 = vmatmul.bf16.gmra.mxu0 %v317
    %v448 = vpop.f32.mrf.mxu0
    %v449 = vadd.f32 0.0, %v448
    %v450 = vpop.f32.mrf.mxu0
    %v451 = vadd.f32 0.0, %v450
    %452 = vmatmul.bf16.gmra.mxu0 %v320
    %v453 = vpop.f32.mrf.mxu0
    %v454 = vadd.f32 0.0, %v453
    %v455 = vpop.f32.mrf.mxu0
    %v456 = vadd.f32 0.0, %v455
    %457 = vdwg.mxu0
    %v466 = vunpack.c.l.b16 %v175
    %v467 = vunpack.c.h.b16 %v175
    %v468 = vunpack.c.l.b16 %v176
    %v469 = vunpack.c.h.b16 %v176
    %v470 = vunpack.c.l.b16 %v177
    %v471 = vunpack.c.h.b16 %v177
    %v472 = vunpack.c.l.b16 %v178
    %v473 = vunpack.c.h.b16 %v178
    %v474 = vunpack.c.l.b16 %v179
    %v475 = vunpack.c.h.b16 %v179
    %v476 = vunpack.c.l.b16 %v180
    %v477 = vunpack.c.h.b16 %v180
    %v478 = vunpack.c.l.b16 %v181
    %v479 = vunpack.c.h.b16 %v181
    %v480 = vunpack.c.l.b16 %v182
    %v481 = vunpack.c.h.b16 %v182
    %v482 = vpack.c.b16 %v470, %v466
    %v483 = vpack.c.b16 %v471, %v467
    %v484 = vpack.c.b16 %v472, %v468
    %v485 = vpack.c.b16 %v473, %v469
    %v486 = vpack.c.b16 %v478, %v474
    %v487 = vpack.c.b16 %v479, %v475
    %v488 = vpack.c.b16 %v480, %v476
    %v489 = vpack.c.b16 %v481, %v477
    %v498 = vsel %vm306, %v215, 0
    %v500 = vsel %vm306, %v216, 0
    %v502 = vsel %vm306, %v217, 0
    %v504 = vsel %vm306, %v218, 0
    %v506 = vsel %vm306, %v219, 0
    %508 = vmatpush.bf16.msra.mxu0 0
    %509 = vmatpush.bf16.msra.mxu0 0
    %510 = vmatpush.bf16.msra.mxu0 0
    %511 = vmatpush.bf16.msra.mxu0 0
    %512 = vmatpush.bf16.msra.mxu0 0
    %513 = vmatpush.bf16.msra.mxu0 0
    %514 = vmatpush.bf16.msra.mxu0 %v486
    %515 = vmatpush.bf16.msra.mxu0 %v482
    %516 = vmatmul.bf16.gmra.mxu0 %v498
    %v517 = vpop.f32.mrf.mxu0
    %v518 = vadd.f32 %v332, %v517
    %v519 = vpop.f32.mrf.mxu0
    %v520 = vadd.f32 %v334, %v519
    %521 = vmatmul.bf16.gmra.mxu0 %v500
    %v522 = vpop.f32.mrf.mxu0
    %v523 = vadd.f32 %v337, %v522
    %v524 = vpop.f32.mrf.mxu0
    %v525 = vadd.f32 %v339, %v524
    %526 = vmatmul.bf16.gmra.mxu0 %v502
    %v527 = vpop.f32.mrf.mxu0
    %v528 = vadd.f32 %v342, %v527
    %v529 = vpop.f32.mrf.mxu0
    %v530 = vadd.f32 %v344, %v529
    %531 = vmatmul.bf16.gmra.mxu0 %v504
    %v532 = vpop.f32.mrf.mxu0
    %v533 = vadd.f32 %v347, %v532
    %v534 = vpop.f32.mrf.mxu0
    %v535 = vadd.f32 %v349, %v534
    %536 = vmatmul.bf16.gmra.mxu0 %v506
    %v537 = vpop.f32.mrf.mxu0
    %v538 = vadd.f32 %v352, %v537
    %v539 = vpop.f32.mrf.mxu0
    %v540 = vadd.f32 %v354, %v539
    %541 = vdwg.mxu0
    %542 = vmatpush.bf16.msra.mxu0 0
    %543 = vmatpush.bf16.msra.mxu0 0
    %544 = vmatpush.bf16.msra.mxu0 0
    %545 = vmatpush.bf16.msra.mxu0 0
    %546 = vmatpush.bf16.msra.mxu0 0
    %547 = vmatpush.bf16.msra.mxu0 0
    %548 = vmatpush.bf16.msra.mxu0 %v487
    %549 = vmatpush.bf16.msra.mxu0 %v483
    %550 = vmatmul.bf16.gmra.mxu0 %v498
    %v551 = vpop.f32.mrf.mxu0
    %v552 = vadd.f32 %v366, %v551
    %v553 = vpop.f32.mrf.mxu0
    %v554 = vadd.f32 %v368, %v553
    %555 = vmatmul.bf16.gmra.mxu0 %v500
    %v556 = vpop.f32.mrf.mxu0
    %v557 = vadd.f32 %v371, %v556
    %v558 = vpop.f32.mrf.mxu0
    %v559 = vadd.f32 %v373, %v558
    %560 = vmatmul.bf16.gmra.mxu0 %v502
    %v561 = vpop.f32.mrf.mxu0
    %v562 = vadd.f32 %v376, %v561
    %v563 = vpop.f32.mrf.mxu0
    %v564 = vadd.f32 %v378, %v563
    %565 = vmatmul.bf16.gmra.mxu0 %v504
    %v566 = vpop.f32.mrf.mxu0
    %v567 = vadd.f32 %v381, %v566
    %v568 = vpop.f32.mrf.mxu0
    %v569 = vadd.f32 %v383, %v568
    %570 = vmatmul.bf16.gmra.mxu0 %v506
    %v571 = vpop.f32.mrf.mxu0
    %v572 = vadd.f32 %v386, %v571
    %v573 = vpop.f32.mrf.mxu0
    %v574 = vadd.f32 %v388, %v573
    %575 = vdwg.mxu0
    %576 = vmatpush.bf16.msra.mxu0 0
    %577 = vmatpush.bf16.msra.mxu0 0
    %578 = vmatpush.bf16.msra.mxu0 0
    %579 = vmatpush.bf16.msra.mxu0 0
    %580 = vmatpush.bf16.msra.mxu0 0
    %581 = vmatpush.bf16.msra.mxu0 0
    %582 = vmatpush.bf16.msra.mxu0 %v488
    %583 = vmatpush.bf16.msra.mxu0 %v484
    %584 = vmatmul.bf16.gmra.mxu0 %v498
    %v585 = vpop.f32.mrf.mxu0
    %v586 = vadd.f32 %v400, %v585
    %v587 = vpop.f32.mrf.mxu0
    %v588 = vadd.f32 %v402, %v587
    %589 = vmatmul.bf16.gmra.mxu0 %v500
    %v590 = vpop.f32.mrf.mxu0
    %v591 = vadd.f32 %v405, %v590
    %v592 = vpop.f32.mrf.mxu0
    %v593 = vadd.f32 %v407, %v592
    %594 = vmatmul.bf16.gmra.mxu0 %v502
    %v595 = vpop.f32.mrf.mxu0
    %v596 = vadd.f32 %v410, %v595
    %v597 = vpop.f32.mrf.mxu0
    %v598 = vadd.f32 %v412, %v597
    %599 = vmatmul.bf16.gmra.mxu0 %v504
    %v600 = vpop.f32.mrf.mxu0
    %v601 = vadd.f32 %v415, %v600
    %v602 = vpop.f32.mrf.mxu0
    %v603 = vadd.f32 %v417, %v602
    %604 = vmatmul.bf16.gmra.mxu0 %v506
    %v605 = vpop.f32.mrf.mxu0
    %v606 = vadd.f32 %v420, %v605
    %v607 = vpop.f32.mrf.mxu0
    %v608 = vadd.f32 %v422, %v607
    %609 = vdwg.mxu0
    %610 = vmatpush.bf16.msra.mxu0 0
    %611 = vmatpush.bf16.msra.mxu0 0
    %612 = vmatpush.bf16.msra.mxu0 0
    %613 = vmatpush.bf16.msra.mxu0 0
    %614 = vmatpush.bf16.msra.mxu0 0
    %615 = vmatpush.bf16.msra.mxu0 0
    %616 = vmatpush.bf16.msra.mxu0 %v489
    %617 = vmatpush.bf16.msra.mxu0 %v485
    %618 = vmatmul.bf16.gmra.mxu0 %v498
    %v619 = vpop.f32.mrf.mxu0
    %v620 = vadd.f32 %v434, %v619
    %v621 = vpop.f32.mrf.mxu0
    %v622 = vadd.f32 %v436, %v621
    %623 = vmatmul.bf16.gmra.mxu0 %v500
    %v624 = vpop.f32.mrf.mxu0
    %v625 = vadd.f32 %v439, %v624
    %v626 = vpop.f32.mrf.mxu0
    %v627 = vadd.f32 %v441, %v626
    %628 = vmatmul.bf16.gmra.mxu0 %v502
    %v629 = vpop.f32.mrf.mxu0
    %v630 = vadd.f32 %v444, %v629
    %v631 = vpop.f32.mrf.mxu0
    %v632 = vadd.f32 %v446, %v631
    %633 = vmatmul.bf16.gmra.mxu0 %v504
    %v634 = vpop.f32.mrf.mxu0
    %v635 = vadd.f32 %v449, %v634
    %v636 = vpop.f32.mrf.mxu0
    %v637 = vadd.f32 %v451, %v636
    %638 = vmatmul.bf16.gmra.mxu0 %v506
    %v639 = vpop.f32.mrf.mxu0
    %v640 = vadd.f32 %v454, %v639
    %v641 = vpop.f32.mrf.mxu0
    %v642 = vadd.f32 %v456, %v641
    %643 = vdwg.mxu0
    %v644 = vld [vmem:[#allocation2] sm:$0xe]
    %s645 = scalar_lea.vmem [#allocation5], 128
    %v646 = vld [vmem:[%s645] sm:$0xff]
    %v647 = vld [vmem:[%s645 + $0x8] sm:$0xff]
    %v648 = vld [vmem:[%s645 + $0x10] sm:$0xff]
    %v649 = vld [vmem:[%s645 + $0x18] sm:$0xff]
    %v650 = vld [vmem:[%s645 + $0x20] sm:$0xff]
    %v651 = vld [vmem:[%s645 + $0x28] sm:$0xff]
    %v652 = vld [vmem:[%s645 + $0x30] sm:$0xff]
    %v653 = vld [vmem:[%s645 + $0x38] sm:$0xff]
    %v655 = vunpack.c.l.b16 %v644
    %v656 = vpack.c.b16 %v205, %v655
    %vm657 = vcmask 1046528
    %v658 = vrot.slane %v656, 1
    %v659 = vrot.slane %v216, 1
    %v660 = vsel %vm657, %v658, %v659
    %v661 = vrot.slane %v217, 1
    %v662 = vsel %vm657, %v659, %v661
    %v663 = vrot.slane %v218, 1
    %v664 = vsel %vm657, %v661, %v663
    %v665 = vrot.slane %v219, 1
    %v666 = vsel %vm657, %v663, %v665
    %v667 = vrot.slane %v220, 1
    %v668 = vsel %vm657, %v665, %v667
    %v677 = vunpack.c.l.b16 %v646
    %v678 = vunpack.c.h.b16 %v646
    %v679 = vunpack.c.l.b16 %v647
    %v680 = vunpack.c.h.b16 %v647
    %v681 = vunpack.c.l.b16 %v648
    %v682 = vunpack.c.h.b16 %v648
    %v683 = vunpack.c.l.b16 %v649
    %v684 = vunpack.c.h.b16 %v649
    %v685 = vunpack.c.l.b16 %v650
    %v686 = vunpack.c.h.b16 %v650
    %v687 = vunpack.c.l.b16 %v651
    %v688 = vunpack.c.h.b16 %v651
    %v689 = vunpack.c.l.b16 %v652
    %v690 = vunpack.c.h.b16 %v652
    %v691 = vunpack.c.l.b16 %v653
    %v692 = vunpack.c.h.b16 %v653
    %v693 = vpack.c.b16 %v681, %v677
    %v694 = vpack.c.b16 %v682, %v678
    %v695 = vpack.c.b16 %v683, %v679
    %v696 = vpack.c.b16 %v684, %v680
    %v697 = vpack.c.b16 %v689, %v685
    %v698 = vpack.c.b16 %v690, %v686
    %v699 = vpack.c.b16 %v691, %v687
    %v700 = vpack.c.b16 %v692, %v688
    %v710 = vsel %vm306, %v660, 0
    %v713 = vsel %vm306, %v662, 0
    %v716 = vsel %vm306, %v664, 0
    %v719 = vsel %vm306, %v666, 0
    %v722 = vsel %vm306, %v668, 0
    %724 = vmatpush.bf16.msra.mxu0 0
    %725 = vmatpush.bf16.msra.mxu0 0
    %726 = vmatpush.bf16.msra.mxu0 0
    %727 = vmatpush.bf16.msra.mxu0 0
    %728 = vmatpush.bf16.msra.mxu0 0
    %729 = vmatpush.bf16.msra.mxu0 0
    %730 = vmatpush.bf16.msra.mxu0 %v697
    %731 = vmatpush.bf16.msra.mxu0 %v693
    %732 = vmatmul.bf16.gmra.mxu0 %v710
    %v733 = vpop.f32.mrf.mxu0
    %v734 = vadd.f32 0.0, %v733
    %v735 = vpop.f32.mrf.mxu0
    %v736 = vadd.f32 0.0, %v735
    %737 = vmatmul.bf16.gmra.mxu0 %v713
    %v738 = vpop.f32.mrf.mxu0
    %v739 = vadd.f32 0.0, %v738
    %v740 = vpop.f32.mrf.mxu0
    %v741 = vadd.f32 0.0, %v740
    %742 = vmatmul.bf16.gmra.mxu0 %v716
    %v743 = vpop.f32.mrf.mxu0
    %v744 = vadd.f32 0.0, %v743
    %v745 = vpop.f32.mrf.mxu0
    %v746 = vadd.f32 0.0, %v745
    %747 = vmatmul.bf16.gmra.mxu0 %v719
    %v748 = vpop.f32.mrf.mxu0
    %v749 = vadd.f32 0.0, %v748
    %v750 = vpop.f32.mrf.mxu0
    %v751 = vadd.f32 0.0, %v750
    %752 = vmatmul.bf16.gmra.mxu0 %v722
    %v753 = vpop.f32.mrf.mxu0
    %v754 = vadd.f32 0.0, %v753
    %v755 = vpop.f32.mrf.mxu0
    %v756 = vadd.f32 0.0, %v755
    %757 = vdwg.mxu0
    %758 = vmatpush.bf16.msra.mxu0 0
    %759 = vmatpush.bf16.msra.mxu0 0
    %760 = vmatpush.bf16.msra.mxu0 0
    %761 = vmatpush.bf16.msra.mxu0 0
    %762 = vmatpush.bf16.msra.mxu0 0
    %763 = vmatpush.bf16.msra.mxu0 0
    %764 = vmatpush.bf16.msra.mxu0 %v698
    %765 = vmatpush.bf16.msra.mxu0 %v694
    %766 = vmatmul.bf16.gmra.mxu0 %v710
    %v767 = vpop.f32.mrf.mxu0
    %v768 = vadd.f32 0.0, %v767
    %v769 = vpop.f32.mrf.mxu0
    %v770 = vadd.f32 0.0, %v769
    %771 = vmatmul.bf16.gmra.mxu0 %v713
    %v772 = vpop.f32.mrf.mxu0
    %v773 = vadd.f32 0.0, %v772
    %v774 = vpop.f32.mrf.mxu0
    %v775 = vadd.f32 0.0, %v774
    %776 = vmatmul.bf16.gmra.mxu0 %v716
    %v777 = vpop.f32.mrf.mxu0
    %v778 = vadd.f32 0.0, %v777
    %v779 = vpop.f32.mrf.mxu0
    %v780 = vadd.f32 0.0, %v779
    %781 = vmatmul.bf16.gmra.mxu0 %v719
    %v782 = vpop.f32.mrf.mxu0
    %v783 = vadd.f32 0.0, %v782
    %v784 = vpop.f32.mrf.mxu0
    %v785 = vadd.f32 0.0, %v784
    %786 = vmatmul.bf16.gmra.mxu0 %v722
    %v787 = vpop.f32.mrf.mxu0
    %v788 = vadd.f32 0.0, %v787
    %v789 = vpop.f32.mrf.mxu0
    %v790 = vadd.f32 0.0, %v789
    %791 = vdwg.mxu0
    %792 = vmatpush.bf16.msra.mxu0 0
    %793 = vmatpush.bf16.msra.mxu0 0
    %794 = vmatpush.bf16.msra.mxu0 0
    %795 = vmatpush.bf16.msra.mxu0 0
    %796 = vmatpush.bf16.msra.mxu0 0
    %797 = vmatpush.bf16.msra.mxu0 0
    %798 = vmatpush.bf16.msra.mxu0 %v699
    %799 = vmatpush.bf16.msra.mxu0 %v695
    %800 = vmatmul.bf16.gmra.mxu0 %v710
    %v801 = vpop.f32.mrf.mxu0
    %v802 = vadd.f32 0.0, %v801
    %v803 = vpop.f32.mrf.mxu0
    %v804 = vadd.f32 0.0, %v803
    %805 = vmatmul.bf16.gmra.mxu0 %v713
    %v806 = vpop.f32.mrf.mxu0
    %v807 = vadd.f32 0.0, %v806
    %v808 = vpop.f32.mrf.mxu0
    %v809 = vadd.f32 0.0, %v808
    %810 = vmatmul.bf16.gmra.mxu0 %v716
    %v811 = vpop.f32.mrf.mxu0
    %v812 = vadd.f32 0.0, %v811
    %v813 = vpop.f32.mrf.mxu0
    %v814 = vadd.f32 0.0, %v813
    %815 = vmatmul.bf16.gmra.mxu0 %v719
    %v816 = vpop.f32.mrf.mxu0
    %v817 = vadd.f32 0.0, %v816
    %v818 = vpop.f32.mrf.mxu0
    %v819 = vadd.f32 0.0, %v818
    %820 = vmatmul.bf16.gmra.mxu0 %v722
    %v821 = vpop.f32.mrf.mxu0
    %v822 = vadd.f32 0.0, %v821
    %v823 = vpop.f32.mrf.mxu0
    %v824 = vadd.f32 0.0, %v823
    %825 = vdwg.mxu0
    %826 = vmatpush.bf16.msra.mxu0 0
    %827 = vmatpush.bf16.msra.mxu0 0
    %828 = vmatpush.bf16.msra.mxu0 0
    %829 = vmatpush.bf16.msra.mxu0 0
    %830 = vmatpush.bf16.msra.mxu0 0
    %831 = vmatpush.bf16.msra.mxu0 0
    %832 = vmatpush.bf16.msra.mxu0 %v700
    %833 = vmatpush.bf16.msra.mxu0 %v696
    %834 = vmatmul.bf16.gmra.mxu0 %v710
    %v835 = vpop.f32.mrf.mxu0
    %v836 = vadd.f32 0.0, %v835
    %v837 = vpop.f32.mrf.mxu0
    %v838 = vadd.f32 0.0, %v837
    %839 = vmatmul.bf16.gmra.mxu0 %v713
    %v840 = vpop.f32.mrf.mxu0
    %v841 = vadd.f32 0.0, %v840
    %v842 = vpop.f32.mrf.mxu0
    %v843 = vadd.f32 0.0, %v842
    %844 = vmatmul.bf16.gmra.mxu0 %v716
    %v845 = vpop.f32.mrf.mxu0
    %v846 = vadd.f32 0.0, %v845
    %v847 = vpop.f32.mrf.mxu0
    %v848 = vadd.f32 0.0, %v847
    %849 = vmatmul.bf16.gmra.mxu0 %v719
    %v850 = vpop.f32.mrf.mxu0
    %v851 = vadd.f32 0.0, %v850
    %v852 = vpop.f32.mrf.mxu0
    %v853 = vadd.f32 0.0, %v852
    %854 = vmatmul.bf16.gmra.mxu0 %v722
    %v855 = vpop.f32.mrf.mxu0
    %v856 = vadd.f32 0.0, %v855
    %v857 = vpop.f32.mrf.mxu0
    %v858 = vadd.f32 0.0, %v857
    %859 = vdwg.mxu0
    %v860 = vadd.f32 %v518, %v734
    %v861 = vadd.f32 %v552, %v768
    %v862 = vadd.f32 %v586, %v802
    %v863 = vadd.f32 %v620, %v836
    %v864 = vadd.f32 %v520, %v736
    %v865 = vadd.f32 %v554, %v770
    %v866 = vadd.f32 %v588, %v804
    %v867 = vadd.f32 %v622, %v838
    %v868 = vadd.f32 %v523, %v739
    %v869 = vadd.f32 %v557, %v773
    %v870 = vadd.f32 %v591, %v807
    %v871 = vadd.f32 %v625, %v841
    %v872 = vadd.f32 %v525, %v741
    %v873 = vadd.f32 %v559, %v775
    %v874 = vadd.f32 %v593, %v809
    %v875 = vadd.f32 %v627, %v843
    %v876 = vadd.f32 %v528, %v744
    %v877 = vadd.f32 %v562, %v778
    %v878 = vadd.f32 %v596, %v812
    %v879 = vadd.f32 %v630, %v846
    %v880 = vadd.f32 %v530, %v746
    %v881 = vadd.f32 %v564, %v780
    %v882 = vadd.f32 %v598, %v814
    %v883 = vadd.f32 %v632, %v848
    %v884 = vadd.f32 %v533, %v749
    %v885 = vadd.f32 %v567, %v783
    %v886 = vadd.f32 %v601, %v817
    %v887 = vadd.f32 %v635, %v851
    %v888 = vadd.f32 %v535, %v751
    %v889 = vadd.f32 %v569, %v785
    %v890 = vadd.f32 %v603, %v819
    %v891 = vadd.f32 %v637, %v853
    %v892 = vadd.f32 %v538, %v754
    %v893 = vadd.f32 %v572, %v788
    %v894 = vadd.f32 %v606, %v822
    %v895 = vadd.f32 %v640, %v856
    %v896 = vadd.f32 %v540, %v756
    %v897 = vadd.f32 %v574, %v790
    %v898 = vadd.f32 %v608, %v824
    %v899 = vadd.f32 %v642, %v858
    %v900 = vld [vmem:[#allocation2 + $0x28] sm:$0x3]
    %s901 = scalar_lea.vmem [#allocation5], 192
    %v902 = vld [vmem:[%s901] sm:$0xff]
    %v903 = vld [vmem:[%s901 + $0x8] sm:$0xff]
    %v904 = vld [vmem:[%s901 + $0x10] sm:$0xff]
    %v905 = vld [vmem:[%s901 + $0x18] sm:$0xff]
    %v906 = vld [vmem:[%s901 + $0x20] sm:$0xff]
    %v907 = vld [vmem:[%s901 + $0x28] sm:$0xff]
    %v908 = vld [vmem:[%s901 + $0x30] sm:$0xff]
    %v909 = vld [vmem:[%s901 + $0x38] sm:$0xff]
    %v911 = vunpack.c.l.b16 %v900
    %v912 = vpack.c.b16 %v911, %v911
    %vm913 = vsmask.f32 6400
    %v915 = vshrl.u32 %v656, 16
    %v917 = vrot.slane %v915, 1
    %v918 = vshll.u32 %v656, 16
    %v920 = vrot.slane %v918, 2
    %v921 = vor.u32 %v917, %v920
    %v922 = vrot.slane %v234, 1
    %v923 = vrot.slane %v230, 2
    %v924 = vor.u32 %v922, %v923
    %v925 = vsel %vm913, %v921, %v924
    %v926 = vrot.slane %v242, 1
    %v927 = vrot.slane %v238, 2
    %v928 = vor.u32 %v926, %v927
    %v929 = vsel %vm913, %v924, %v928
    %v930 = vrot.slane %v250, 1
    %v931 = vrot.slane %v246, 2
    %v932 = vor.u32 %v930, %v931
    %v933 = vsel %vm913, %v928, %v932
    %v934 = vrot.slane %v258, 1
    %v935 = vrot.slane %v254, 2
    %v936 = vor.u32 %v934, %v935
    %v937 = vsel %vm913, %v932, %v936
    %v939 = vshrl.u32 %v912, 16
    %v941 = vrot.slane %v939, 1
    %v942 = vshll.u32 %v912, 16
    %v944 = vrot.slane %v942, 2
    %v945 = vor.u32 %v941, %v944
    %v946 = vsel %vm913, %v936, %v945
    %v955 = vunpack.c.l.b16 %v902
    %v956 = vunpack.c.h.b16 %v902
    %v957 = vunpack.c.l.b16 %v903
    %v958 = vunpack.c.h.b16 %v903
    %v959 = vunpack.c.l.b16 %v904
    %v960 = vunpack.c.h.b16 %v904
    %v961 = vunpack.c.l.b16 %v905
    %v962 = vunpack.c.h.b16 %v905
    %v963 = vunpack.c.l.b16 %v906
    %v964 = vunpack.c.h.b16 %v906
    %v965 = vunpack.c.l.b16 %v907
    %v966 = vunpack.c.h.b16 %v907
    %v967 = vunpack.c.l.b16 %v908
    %v968 = vunpack.c.h.b16 %v908
    %v969 = vunpack.c.l.b16 %v909
    %v970 = vunpack.c.h.b16 %v909
    %v971 = vpack.c.b16 %v959, %v955
    %v972 = vpack.c.b16 %v960, %v956
    %v973 = vpack.c.b16 %v961, %v957
    %v974 = vpack.c.b16 %v962, %v958
    %v975 = vpack.c.b16 %v967, %v963
    %v976 = vpack.c.b16 %v968, %v964
    %v977 = vpack.c.b16 %v969, %v965
    %v978 = vpack.c.b16 %v970, %v966
    %v988 = vsel %vm306, %v925, 0
    %v991 = vsel %vm306, %v929, 0
    %v994 = vsel %vm306, %v933, 0
    %v997 = vsel %vm306, %v937, 0
    %v1000 = vsel %vm306, %v946, 0
    %1002 = vmatpush.bf16.msra.mxu0 0
    %1003 = vmatpush.bf16.msra.mxu0 0
    %1004 = vmatpush.bf16.msra.mxu0 0
    %1005 = vmatpush.bf16.msra.mxu0 0
    %1006 = vmatpush.bf16.msra.mxu0 0
    %1007 = vmatpush.bf16.msra.mxu0 0
    %1008 = vmatpush.bf16.msra.mxu0 %v975
    %1009 = vmatpush.bf16.msra.mxu0 %v971
    %1010 = vmatmul.bf16.gmra.mxu0 %v988
    %v1011 = vpop.f32.mrf.mxu0
    %v1012 = vadd.f32 0.0, %v1011
    %v1013 = vpop.f32.mrf.mxu0
    %v1014 = vadd.f32 0.0, %v1013
    %1015 = vmatmul.bf16.gmra.mxu0 %v991
    %v1016 = vpop.f32.mrf.mxu0
    %v1017 = vadd.f32 0.0, %v1016
    %v1018 = vpop.f32.mrf.mxu0
    %v1019 = vadd.f32 0.0, %v1018
    %1020 = vmatmul.bf16.gmra.mxu0 %v994
    %v1021 = vpop.f32.mrf.mxu0
    %v1022 = vadd.f32 0.0, %v1021
    %v1023 = vpop.f32.mrf.mxu0
    %v1024 = vadd.f32 0.0, %v1023
    %1025 = vmatmul.bf16.gmra.mxu0 %v997
    %v1026 = vpop.f32.mrf.mxu0
    %v1027 = vadd.f32 0.0, %v1026
    %v1028 = vpop.f32.mrf.mxu0
    %v1029 = vadd.f32 0.0, %v1028
    %1030 = vmatmul.bf16.gmra.mxu0 %v1000
    %v1031 = vpop.f32.mrf.mxu0
    %v1032 = vadd.f32 0.0, %v1031
    %v1033 = vpop.f32.mrf.mxu0
    %v1034 = vadd.f32 0.0, %v1033
    %1035 = vdwg.mxu0
    %1036 = vmatpush.bf16.msra.mxu0 0
    %1037 = vmatpush.bf16.msra.mxu0 0
    %1038 = vmatpush.bf16.msra.mxu0 0
    %1039 = vmatpush.bf16.msra.mxu0 0
    %1040 = vmatpush.bf16.msra.mxu0 0
    %1041 = vmatpush.bf16.msra.mxu0 0
    %1042 = vmatpush.bf16.msra.mxu0 %v976
    %1043 = vmatpush.bf16.msra.mxu0 %v972
    %1044 = vmatmul.bf16.gmra.mxu0 %v988
    %v1045 = vpop.f32.mrf.mxu0
    %v1046 = vadd.f32 0.0, %v1045
    %v1047 = vpop.f32.mrf.mxu0
    %v1048 = vadd.f32 0.0, %v1047
    %1049 = vmatmul.bf16.gmra.mxu0 %v991
    %v1050 = vpop.f32.mrf.mxu0
    %v1051 = vadd.f32 0.0, %v1050
    %v1052 = vpop.f32.mrf.mxu0
    %v1053 = vadd.f32 0.0, %v1052
    %1054 = vmatmul.bf16.gmra.mxu0 %v994
    %v1055 = vpop.f32.mrf.mxu0
    %v1056 = vadd.f32 0.0, %v1055
    %v1057 = vpop.f32.mrf.mxu0
    %v1058 = vadd.f32 0.0, %v1057
    %1059 = vmatmul.bf16.gmra.mxu0 %v997
    %v1060 = vpop.f32.mrf.mxu0
    %v1061 = vadd.f32 0.0, %v1060
    %v1062 = vpop.f32.mrf.mxu0
    %v1063 = vadd.f32 0.0, %v1062
    %1064 = vmatmul.bf16.gmra.mxu0 %v1000
    %v1065 = vpop.f32.mrf.mxu0
    %v1066 = vadd.f32 0.0, %v1065
    %v1067 = vpop.f32.mrf.mxu0
    %v1068 = vadd.f32 0.0, %v1067
    %1069 = vdwg.mxu0
    %1070 = vmatpush.bf16.msra.mxu0 0
    %1071 = vmatpush.bf16.msra.mxu0 0
    %1072 = vmatpush.bf16.msra.mxu0 0
    %1073 = vmatpush.bf16.msra.mxu0 0
    %1074 = vmatpush.bf16.msra.mxu0 0
    %1075 = vmatpush.bf16.msra.mxu0 0
    %1076 = vmatpush.bf16.msra.mxu0 %v977
    %1077 = vmatpush.bf16.msra.mxu0 %v973
    %1078 = vmatmul.bf16.gmra.mxu0 %v988
    %v1079 = vpop.f32.mrf.mxu0
    %v1080 = vadd.f32 0.0, %v1079
    %v1081 = vpop.f32.mrf.mxu0
    %v1082 = vadd.f32 0.0, %v1081
    %1083 = vmatmul.bf16.gmra.mxu0 %v991
    %v1084 = vpop.f32.mrf.mxu0
    %v1085 = vadd.f32 0.0, %v1084
    %v1086 = vpop.f32.mrf.mxu0
    %v1087 = vadd.f32 0.0, %v1086
    %1088 = vmatmul.bf16.gmra.mxu0 %v994
    %v1089 = vpop.f32.mrf.mxu0
    %v1090 = vadd.f32 0.0, %v1089
    %v1091 = vpop.f32.mrf.mxu0
    %v1092 = vadd.f32 0.0, %v1091
    %1093 = vmatmul.bf16.gmra.mxu0 %v997
    %v1094 = vpop.f32.mrf.mxu0
    %v1095 = vadd.f32 0.0, %v1094
    %v1096 = vpop.f32.mrf.mxu0
    %v1097 = vadd.f32 0.0, %v1096
    %1098 = vmatmul.bf16.gmra.mxu0 %v1000
    %v1099 = vpop.f32.mrf.mxu0
    %v1100 = vadd.f32 0.0, %v1099
    %v1101 = vpop.f32.mrf.mxu0
    %v1102 = vadd.f32 0.0, %v1101
    %1103 = vdwg.mxu0
    %1104 = vmatpush.bf16.msra.mxu0 0
    %1105 = vmatpush.bf16.msra.mxu0 0
    %1106 = vmatpush.bf16.msra.mxu0 0
    %1107 = vmatpush.bf16.msra.mxu0 0
    %1108 = vmatpush.bf16.msra.mxu0 0
    %1109 = vmatpush.bf16.msra.mxu0 0
    %1110 = vmatpush.bf16.msra.mxu0 %v978
    %1111 = vmatpush.bf16.msra.mxu0 %v974
    %1112 = vmatmul.bf16.gmra.mxu0 %v988
    %v1113 = vpop.f32.mrf.mxu0
    %v1114 = vadd.f32 0.0, %v1113
    %v1115 = vpop.f32.mrf.mxu0
    %v1116 = vadd.f32 0.0, %v1115
    %1117 = vmatmul.bf16.gmra.mxu0 %v991
    %v1118 = vpop.f32.mrf.mxu0
    %v1119 = vadd.f32 0.0, %v1118
    %v1120 = vpop.f32.mrf.mxu0
    %v1121 = vadd.f32 0.0, %v1120
    %1122 = vmatmul.bf16.gmra.mxu0 %v994
    %v1123 = vpop.f32.mrf.mxu0
    %v1124 = vadd.f32 0.0, %v1123
    %v1125 = vpop.f32.mrf.mxu0
    %v1126 = vadd.f32 0.0, %v1125
    %1127 = vmatmul.bf16.gmra.mxu0 %v997
    %v1128 = vpop.f32.mrf.mxu0
    %v1129 = vadd.f32 0.0, %v1128
    %v1130 = vpop.f32.mrf.mxu0
    %v1131 = vadd.f32 0.0, %v1130
    %1132 = vmatmul.bf16.gmra.mxu0 %v1000
    %v1133 = vpop.f32.mrf.mxu0
    %v1134 = vadd.f32 0.0, %v1133
    %v1135 = vpop.f32.mrf.mxu0
    %v1136 = vadd.f32 0.0, %v1135
    %1137 = vdwg.mxu0
    %v1138 = vadd.f32 %v860, %v1012
    %v1139 = vadd.f32 %v861, %v1046
    %v1140 = vadd.f32 %v862, %v1080
    %v1141 = vadd.f32 %v863, %v1114
    %v1142 = vadd.f32 %v864, %v1014
    %v1143 = vadd.f32 %v865, %v1048
    %v1144 = vadd.f32 %v866, %v1082
    %v1145 = vadd.f32 %v867, %v1116
    %v1146 = vadd.f32 %v868, %v1017
    %v1147 = vadd.f32 %v869, %v1051
    %v1148 = vadd.f32 %v870, %v1085
    %v1149 = vadd.f32 %v871, %v1119
    %v1150 = vadd.f32 %v872, %v1019
    %v1151 = vadd.f32 %v873, %v1053
    %v1152 = vadd.f32 %v874, %v1087
    %v1153 = vadd.f32 %v875, %v1121
    %v1154 = vadd.f32 %v876, %v1022
    %v1155 = vadd.f32 %v877, %v1056
    %v1156 = vadd.f32 %v878, %v1090
    %v1157 = vadd.f32 %v879, %v1124
    %v1158 = vadd.f32 %v880, %v1024
    %v1159 = vadd.f32 %v881, %v1058
    %v1160 = vadd.f32 %v882, %v1092
    %v1161 = vadd.f32 %v883, %v1126
    %v1162 = vadd.f32 %v884, %v1027
    %v1163 = vadd.f32 %v885, %v1061
    %v1164 = vadd.f32 %v886, %v1095
    %v1165 = vadd.f32 %v887, %v1129
    %v1166 = vadd.f32 %v888, %v1029
    %v1167 = vadd.f32 %v889, %v1063
    %v1168 = vadd.f32 %v890, %v1097
    %v1169 = vadd.f32 %v891, %v1131
    %v1170 = vadd.f32 %v892, %v1032
    %v1171 = vadd.f32 %v893, %v1066
    %v1172 = vadd.f32 %v894, %v1100
    %v1173 = vadd.f32 %v895, %v1134
    %v1174 = vadd.f32 %v896, %v1034
    %v1175 = vadd.f32 %v897, %v1068
    %v1176 = vadd.f32 %v898, %v1102
    %v1177 = vadd.f32 %v899, %v1136
    %v1178 = vld [vmem:[#allocation2] sm:$0xc]
    %s1179 = scalar_lea.vmem [#allocation5], 256
    %v1180 = vld [vmem:[%s1179] sm:$0xff]
    %v1181 = vld [vmem:[%s1179 + $0x8] sm:$0xff]
    %v1182 = vld [vmem:[%s1179 + $0x10] sm:$0xff]
    %v1183 = vld [vmem:[%s1179 + $0x18] sm:$0xff]
    %v1184 = vld [vmem:[%s1179 + $0x20] sm:$0xff]
    %v1185 = vld [vmem:[%s1179 + $0x28] sm:$0xff]
    %v1186 = vld [vmem:[%s1179 + $0x30] sm:$0xff]
    %v1187 = vld [vmem:[%s1179 + $0x38] sm:$0xff]
    %v1189 = vunpack.c.l.b16 %v1178
    %v1190 = vpack.c.b16 %v205, %v1189
    %vm1191 = vcmask 1045504
    %v1192 = vrot.slane %v1190, 2
    %v1193 = vrot.slane %v216, 2
    %v1194 = vsel %vm1191, %v1192, %v1193
    %v1195 = vrot.slane %v217, 2
    %v1196 = vsel %vm1191, %v1193, %v1195
    %v1197 = vrot.slane %v218, 2
    %v1198 = vsel %vm1191, %v1195, %v1197
    %v1199 = vrot.slane %v219, 2
    %v1200 = vsel %vm1191, %v1197, %v1199
    %v1201 = vrot.slane %v912, 2
    %v1202 = vsel %vm1191, %v1199, %v1201
    %v1211 = vunpack.c.l.b16 %v1180
    %v1212 = vunpack.c.h.b16 %v1180
    %v1213 = vunpack.c.l.b16 %v1181
    %v1214 = vunpack.c.h.b16 %v1181
    %v1215 = vunpack.c.l.b16 %v1182
    %v1216 = vunpack.c.h.b16 %v1182
    %v1217 = vunpack.c.l.b16 %v1183
    %v1218 = vunpack.c.h.b16 %v1183
    %v1219 = vunpack.c.l.b16 %v1184
    %v1220 = vunpack.c.h.b16 %v1184
    %v1221 = vunpack.c.l.b16 %v1185
    %v1222 = vunpack.c.h.b16 %v1185
    %v1223 = vunpack.c.l.b16 %v1186
    %v1224 = vunpack.c.h.b16 %v1186
    %v1225 = vunpack.c.l.b16 %v1187
    %v1226 = vunpack.c.h.b16 %v1187
    %v1227 = vpack.c.b16 %v1215, %v1211
    %v1228 = vpack.c.b16 %v1216, %v1212
    %v1229 = vpack.c.b16 %v1217, %v1213
    %v1230 = vpack.c.b16 %v1218, %v1214
    %v1231 = vpack.c.b16 %v1223, %v1219
    %v1232 = vpack.c.b16 %v1224, %v1220
    %v1233 = vpack.c.b16 %v1225, %v1221
    %v1234 = vpack.c.b16 %v1226, %v1222
    %v1244 = vsel %vm306, %v1194, 0
    %v1247 = vsel %vm306, %v1196, 0
    %v1250 = vsel %vm306, %v1198, 0
    %v1253 = vsel %vm306, %v1200, 0
    %v1256 = vsel %vm306, %v1202, 0
    %1258 = vmatpush.bf16.msra.mxu0 0
    %1259 = vmatpush.bf16.msra.mxu0 0
    %1260 = vmatpush.bf16.msra.mxu0 0
    %1261 = vmatpush.bf16.msra.mxu0 0
    %1262 = vmatpush.bf16.msra.mxu0 0
    %1263 = vmatpush.bf16.msra.mxu0 0
    %1264 = vmatpush.bf16.msra.mxu0 %v1231
    %1265 = vmatpush.bf16.msra.mxu0 %v1227
    %1266 = vmatmul.bf16.gmra.mxu0 %v1244
    %v1267 = vpop.f32.mrf.mxu0
    %v1268 = vadd.f32 0.0, %v1267
    %v1269 = vpop.f32.mrf.mxu0
    %v1270 = vadd.f32 0.0, %v1269
    %1271 = vmatmul.bf16.gmra.mxu0 %v1247
    %v1272 = vpop.f32.mrf.mxu0
    %v1273 = vadd.f32 0.0, %v1272
    %v1274 = vpop.f32.mrf.mxu0
    %v1275 = vadd.f32 0.0, %v1274
    %1276 = vmatmul.bf16.gmra.mxu0 %v1250
    %v1277 = vpop.f32.mrf.mxu0
    %v1278 = vadd.f32 0.0, %v1277
    %v1279 = vpop.f32.mrf.mxu0
    %v1280 = vadd.f32 0.0, %v1279
    %1281 = vmatmul.bf16.gmra.mxu0 %v1253
    %v1282 = vpop.f32.mrf.mxu0
    %v1283 = vadd.f32 0.0, %v1282
    %v1284 = vpop.f32.mrf.mxu0
    %v1285 = vadd.f32 0.0, %v1284
    %1286 = vmatmul.bf16.gmra.mxu0 %v1256
    %v1287 = vpop.f32.mrf.mxu0
    %v1288 = vadd.f32 0.0, %v1287
    %v1289 = vpop.f32.mrf.mxu0
    %v1290 = vadd.f32 0.0, %v1289
    %1291 = vdwg.mxu0
    %1292 = vmatpush.bf16.msra.mxu0 0
    %1293 = vmatpush.bf16.msra.mxu0 0
    %1294 = vmatpush.bf16.msra.mxu0 0
    %1295 = vmatpush.bf16.msra.mxu0 0
    %1296 = vmatpush.bf16.msra.mxu0 0
    %1297 = vmatpush.bf16.msra.mxu0 0
    %1298 = vmatpush.bf16.msra.mxu0 %v1232
    %1299 = vmatpush.bf16.msra.mxu0 %v1228
    %1300 = vmatmul.bf16.gmra.mxu0 %v1244
    %v1301 = vpop.f32.mrf.mxu0
    %v1302 = vadd.f32 0.0, %v1301
    %v1303 = vpop.f32.mrf.mxu0
    %v1304 = vadd.f32 0.0, %v1303
    %1305 = vmatmul.bf16.gmra.mxu0 %v1247
    %v1306 = vpop.f32.mrf.mxu0
    %v1307 = vadd.f32 0.0, %v1306
    %v1308 = vpop.f32.mrf.mxu0
    %v1309 = vadd.f32 0.0, %v1308
    %1310 = vmatmul.bf16.gmra.mxu0 %v1250
    %v1311 = vpop.f32.mrf.mxu0
    %v1312 = vadd.f32 0.0, %v1311
    %v1313 = vpop.f32.mrf.mxu0
    %v1314 = vadd.f32 0.0, %v1313
    %1315 = vmatmul.bf16.gmra.mxu0 %v1253
    %v1316 = vpop.f32.mrf.mxu0
    %v1317 = vadd.f32 0.0, %v1316
    %v1318 = vpop.f32.mrf.mxu0
    %v1319 = vadd.f32 0.0, %v1318
    %1320 = vmatmul.bf16.gmra.mxu0 %v1256
    %v1321 = vpop.f32.mrf.mxu0
    %v1322 = vadd.f32 0.0, %v1321
    %v1323 = vpop.f32.mrf.mxu0
    %v1324 = vadd.f32 0.0, %v1323
    %1325 = vdwg.mxu0
    %1326 = vmatpush.bf16.msra.mxu0 0
    %1327 = vmatpush.bf16.msra.mxu0 0
    %1328 = vmatpush.bf16.msra.mxu0 0
    %1329 = vmatpush.bf16.msra.mxu0 0
    %1330 = vmatpush.bf16.msra.mxu0 0
    %1331 = vmatpush.bf16.msra.mxu0 0
    %1332 = vmatpush.bf16.msra.mxu0 %v1233
    %1333 = vmatpush.bf16.msra.mxu0 %v1229
    %1334 = vmatmul.bf16.gmra.mxu0 %v1244
    %v1335 = vpop.f32.mrf.mxu0
    %v1336 = vadd.f32 0.0, %v1335
    %v1337 = vpop.f32.mrf.mxu0
    %v1338 = vadd.f32 0.0, %v1337
    %1339 = vmatmul.bf16.gmra.mxu0 %v1247
    %v1340 = vpop.f32.mrf.mxu0
    %v1341 = vadd.f32 0.0, %v1340
    %v1342 = vpop.f32.mrf.mxu0
    %v1343 = vadd.f32 0.0, %v1342
    %1344 = vmatmul.bf16.gmra.mxu0 %v1250
    %v1345 = vpop.f32.mrf.mxu0
    %v1346 = vadd.f32 0.0, %v1345
    %v1347 = vpop.f32.mrf.mxu0
    %v1348 = vadd.f32 0.0, %v1347
    %1349 = vmatmul.bf16.gmra.mxu0 %v1253
    %v1350 = vpop.f32.mrf.mxu0
    %v1351 = vadd.f32 0.0, %v1350
    %v1352 = vpop.f32.mrf.mxu0
    %v1353 = vadd.f32 0.0, %v1352
    %1354 = vmatmul.bf16.gmra.mxu0 %v1256
    %v1355 = vpop.f32.mrf.mxu0
    %v1356 = vadd.f32 0.0, %v1355
    %v1357 = vpop.f32.mrf.mxu0
    %v1358 = vadd.f32 0.0, %v1357
    %1359 = vdwg.mxu0
    %1360 = vmatpush.bf16.msra.mxu0 0
    %1361 = vmatpush.bf16.msra.mxu0 0
    %1362 = vmatpush.bf16.msra.mxu0 0
    %1363 = vmatpush.bf16.msra.mxu0 0
    %1364 = vmatpush.bf16.msra.mxu0 0
    %1365 = vmatpush.bf16.msra.mxu0 0
    %1366 = vmatpush.bf16.msra.mxu0 %v1234
    %1367 = vmatpush.bf16.msra.mxu0 %v1230
    %1368 = vmatmul.bf16.gmra.mxu0 %v1244
    %v1369 = vpop.f32.mrf.mxu0
    %v1370 = vadd.f32 0.0, %v1369
    %v1371 = vpop.f32.mrf.mxu0
    %v1372 = vadd.f32 0.0, %v1371
    %1373 = vmatmul.bf16.gmra.mxu0 %v1247
    %v1374 = vpop.f32.mrf.mxu0
    %v1375 = vadd.f32 0.0, %v1374
    %v1376 = vpop.f32.mrf.mxu0
    %v1377 = vadd.f32 0.0, %v1376
    %1378 = vmatmul.bf16.gmra.mxu0 %v1250
    %v1379 = vpop.f32.mrf.mxu0
    %v1380 = vadd.f32 0.0, %v1379
    %v1381 = vpop.f32.mrf.mxu0
    %v1382 = vadd.f32 0.0, %v1381
    %1383 = vmatmul.bf16.gmra.mxu0 %v1253
    %v1384 = vpop.f32.mrf.mxu0
    %v1385 = vadd.f32 0.0, %v1384
    %v1386 = vpop.f32.mrf.mxu0
    %v1387 = vadd.f32 0.0, %v1386
    %1388 = vmatmul.bf16.gmra.mxu0 %v1256
    %v1389 = vpop.f32.mrf.mxu0
    %v1390 = vadd.f32 0.0, %v1389
    %v1391 = vpop.f32.mrf.mxu0
    %v1392 = vadd.f32 0.0, %v1391
    %1393 = vdwg.mxu0
    %v1394 = vadd.f32 %v1138, %v1268
    %v1395 = vadd.f32 %v1139, %v1302
    %v1396 = vadd.f32 %v1140, %v1336
    %v1397 = vadd.f32 %v1141, %v1370
    %v1398 = vadd.f32 %v1142, %v1270
    %v1399 = vadd.f32 %v1143, %v1304
    %v1400 = vadd.f32 %v1144, %v1338
    %v1401 = vadd.f32 %v1145, %v1372
    %v1402 = vadd.f32 %v1146, %v1273
    %v1403 = vadd.f32 %v1147, %v1307
    %v1404 = vadd.f32 %v1148, %v1341
    %v1405 = vadd.f32 %v1149, %v1375
    %v1406 = vadd.f32 %v1150, %v1275
    %v1407 = vadd.f32 %v1151, %v1309
    %v1408 = vadd.f32 %v1152, %v1343
    %v1409 = vadd.f32 %v1153, %v1377
    %v1410 = vadd.f32 %v1154, %v1278
    %v1411 = vadd.f32 %v1155, %v1312
    %v1412 = vadd.f32 %v1156, %v1346
    %v1413 = vadd.f32 %v1157, %v1380
    %v1414 = vadd.f32 %v1158, %v1280
    %v1415 = vadd.f32 %v1159, %v1314
    %v1416 = vadd.f32 %v1160, %v1348
    %v1417 = vadd.f32 %v1161, %v1382
    %v1418 = vadd.f32 %v1162, %v1283
    %v1419 = vadd.f32 %v1163, %v1317
    %v1420 = vadd.f32 %v1164, %v1351
    %v1421 = vadd.f32 %v1165, %v1385
    %v1422 = vadd.f32 %v1166, %v1285
    %v1423 = vadd.f32 %v1167, %v1319
    %v1424 = vadd.f32 %v1168, %v1353
    %v1425 = vadd.f32 %v1169, %v1387
    %v1426 = vadd.f32 %v1170, %v1288
    %v1427 = vadd.f32 %v1171, %v1322
    %v1428 = vadd.f32 %v1172, %v1356
    %v1429 = vadd.f32 %v1173, %v1390
    %v1430 = vadd.f32 %v1174, %v1290
    %v1431 = vadd.f32 %v1175, %v1324
    %v1432 = vadd.f32 %v1176, %v1358
    %v1433 = vadd.f32 %v1177, %v1392
    %v1434 = vld [vmem:[#allocation2 + $0x28] sm:$0x7]
    %s1435 = scalar_lea.vmem [#allocation5], 320
    %v1436 = vld [vmem:[%s1435] sm:$0xff]
    %v1437 = vld [vmem:[%s1435 + $0x8] sm:$0xff]
    %v1438 = vld [vmem:[%s1435 + $0x10] sm:$0xff]
    %v1439 = vld [vmem:[%s1435 + $0x18] sm:$0xff]
    %v1440 = vld [vmem:[%s1435 + $0x20] sm:$0xff]
    %v1441 = vld [vmem:[%s1435 + $0x28] sm:$0xff]
    %v1442 = vld [vmem:[%s1435 + $0x30] sm:$0xff]
    %v1443 = vld [vmem:[%s1435 + $0x38] sm:$0xff]
    %v1445 = vunpack.c.l.b16 %v1434
    %v1446 = vpack.c.b16 %v1445, %v1445
    %vm1447 = vsmask.f32 5376
    %v1449 = vshrl.u32 %v1190, 16
    %v1451 = vrot.slane %v1449, 2
    %v1452 = vshll.u32 %v1190, 16
    %v1454 = vrot.slane %v1452, 3
    %v1455 = vor.u32 %v1451, %v1454
    %v1456 = vrot.slane %v234, 2
    %v1457 = vrot.slane %v230, 3
    %v1458 = vor.u32 %v1456, %v1457
    %v1459 = vsel %vm1447, %v1455, %v1458
    %v1460 = vrot.slane %v242, 2
    %v1461 = vrot.slane %v238, 3
    %v1462 = vor.u32 %v1460, %v1461
    %v1463 = vsel %vm1447, %v1458, %v1462
    %v1464 = vrot.slane %v250, 2
    %v1465 = vrot.slane %v246, 3
    %v1466 = vor.u32 %v1464, %v1465
    %v1467 = vsel %vm1447, %v1462, %v1466
    %v1468 = vrot.slane %v258, 2
    %v1469 = vrot.slane %v254, 3
    %v1470 = vor.u32 %v1468, %v1469
    %v1471 = vsel %vm1447, %v1466, %v1470
    %v1473 = vshrl.u32 %v1446, 16
    %v1475 = vrot.slane %v1473, 2
    %v1476 = vshll.u32 %v1446, 16
    %v1478 = vrot.slane %v1476, 3
    %v1479 = vor.u32 %v1475, %v1478
    %v1480 = vsel %vm1447, %v1470, %v1479
    %v1489 = vunpack.c.l.b16 %v1436
    %v1490 = vunpack.c.h.b16 %v1436
    %v1491 = vunpack.c.l.b16 %v1437
    %v1492 = vunpack.c.h.b16 %v1437
    %v1493 = vunpack.c.l.b16 %v1438
    %v1494 = vunpack.c.h.b16 %v1438
    %v1495 = vunpack.c.l.b16 %v1439
    %v1496 = vunpack.c.h.b16 %v1439
    %v1497 = vunpack.c.l.b16 %v1440
    %v1498 = vunpack.c.h.b16 %v1440
    %v1499 = vunpack.c.l.b16 %v1441
    %v1500 = vunpack.c.h.b16 %v1441
    %v1501 = vunpack.c.l.b16 %v1442
    %v1502 = vunpack.c.h.b16 %v1442
    %v1503 = vunpack.c.l.b16 %v1443
    %v1504 = vunpack.c.h.b16 %v1443
    %v1505 = vpack.c.b16 %v1493, %v1489
    %v1506 = vpack.c.b16 %v1494, %v1490
    %v1507 = vpack.c.b16 %v1495, %v1491
    %v1508 = vpack.c.b16 %v1496, %v1492
    %v1509 = vpack.c.b16 %v1501, %v1497
    %v1510 = vpack.c.b16 %v1502, %v1498
    %v1511 = vpack.c.b16 %v1503, %v1499
    %v1512 = vpack.c.b16 %v1504, %v1500
    %v1522 = vsel %vm306, %v1459, 0
    %v1525 = vsel %vm306, %v1463, 0
    %v1528 = vsel %vm306, %v1467, 0
    %v1531 = vsel %vm306, %v1471, 0
    %v1534 = vsel %vm306, %v1480, 0
    %1536 = vmatpush.bf16.msra.mxu0 0
    %1537 = vmatpush.bf16.msra.mxu0 0
    %1538 = vmatpush.bf16.msra.mxu0 0
    %1539 = vmatpush.bf16.msra.mxu0 0
    %1540 = vmatpush.bf16.msra.mxu0 0
    %1541 = vmatpush.bf16.msra.mxu0 0
    %1542 = vmatpush.bf16.msra.mxu0 %v1509
    %1543 = vmatpush.bf16.msra.mxu0 %v1505
    %1544 = vmatmul.bf16.gmra.mxu0 %v1522
    %v1545 = vpop.f32.mrf.mxu0
    %v1546 = vadd.f32 0.0, %v1545
    %v1547 = vpop.f32.mrf.mxu0
    %v1548 = vadd.f32 0.0, %v1547
    %1549 = vmatmul.bf16.gmra.mxu0 %v1525
    %v1550 = vpop.f32.mrf.mxu0
    %v1551 = vadd.f32 0.0, %v1550
    %v1552 = vpop.f32.mrf.mxu0
    %v1553 = vadd.f32 0.0, %v1552
    %1554 = vmatmul.bf16.gmra.mxu0 %v1528
    %v1555 = vpop.f32.mrf.mxu0
    %v1556 = vadd.f32 0.0, %v1555
    %v1557 = vpop.f32.mrf.mxu0
    %v1558 = vadd.f32 0.0, %v1557
    %1559 = vmatmul.bf16.gmra.mxu0 %v1531
    %v1560 = vpop.f32.mrf.mxu0
    %v1561 = vadd.f32 0.0, %v1560
    %v1562 = vpop.f32.mrf.mxu0
    %v1563 = vadd.f32 0.0, %v1562
    %1564 = vmatmul.bf16.gmra.mxu0 %v1534
    %v1565 = vpop.f32.mrf.mxu0
    %v1566 = vadd.f32 0.0, %v1565
    %v1567 = vpop.f32.mrf.mxu0
    %v1568 = vadd.f32 0.0, %v1567
    %1569 = vdwg.mxu0
    %1570 = vmatpush.bf16.msra.mxu0 0
    %1571 = vmatpush.bf16.msra.mxu0 0
    %1572 = vmatpush.bf16.msra.mxu0 0
    %1573 = vmatpush.bf16.msra.mxu0 0
    %1574 = vmatpush.bf16.msra.mxu0 0
    %1575 = vmatpush.bf16.msra.mxu0 0
    %1576 = vmatpush.bf16.msra.mxu0 %v1510
    %1577 = vmatpush.bf16.msra.mxu0 %v1506
    %1578 = vmatmul.bf16.gmra.mxu0 %v1522
    %v1579 = vpop.f32.mrf.mxu0
    %v1580 = vadd.f32 0.0, %v1579
    %v1581 = vpop.f32.mrf.mxu0
    %v1582 = vadd.f32 0.0, %v1581
    %1583 = vmatmul.bf16.gmra.mxu0 %v1525
    %v1584 = vpop.f32.mrf.mxu0
    %v1585 = vadd.f32 0.0, %v1584
    %v1586 = vpop.f32.mrf.mxu0
    %v1587 = vadd.f32 0.0, %v1586
    %1588 = vmatmul.bf16.gmra.mxu0 %v1528
    %v1589 = vpop.f32.mrf.mxu0
    %v1590 = vadd.f32 0.0, %v1589
    %v1591 = vpop.f32.mrf.mxu0
    %v1592 = vadd.f32 0.0, %v1591
    %1593 = vmatmul.bf16.gmra.mxu0 %v1531
    %v1594 = vpop.f32.mrf.mxu0
    %v1595 = vadd.f32 0.0, %v1594
    %v1596 = vpop.f32.mrf.mxu0
    %v1597 = vadd.f32 0.0, %v1596
    %1598 = vmatmul.bf16.gmra.mxu0 %v1534
    %v1599 = vpop.f32.mrf.mxu0
    %v1600 = vadd.f32 0.0, %v1599
    %v1601 = vpop.f32.mrf.mxu0
    %v1602 = vadd.f32 0.0, %v1601
    %1603 = vdwg.mxu0
    %1604 = vmatpush.bf16.msra.mxu0 0
    %1605 = vmatpush.bf16.msra.mxu0 0
    %1606 = vmatpush.bf16.msra.mxu0 0
    %1607 = vmatpush.bf16.msra.mxu0 0
    %1608 = vmatpush.bf16.msra.mxu0 0
    %1609 = vmatpush.bf16.msra.mxu0 0
    %1610 = vmatpush.bf16.msra.mxu0 %v1511
    %1611 = vmatpush.bf16.msra.mxu0 %v1507
    %1612 = vmatmul.bf16.gmra.mxu0 %v1522
    %v1613 = vpop.f32.mrf.mxu0
    %v1614 = vadd.f32 0.0, %v1613
    %v1615 = vpop.f32.mrf.mxu0
    %v1616 = vadd.f32 0.0, %v1615
    %1617 = vmatmul.bf16.gmra.mxu0 %v1525
    %v1618 = vpop.f32.mrf.mxu0
    %v1619 = vadd.f32 0.0, %v1618
    %v1620 = vpop.f32.mrf.mxu0
    %v1621 = vadd.f32 0.0, %v1620
    %1622 = vmatmul.bf16.gmra.mxu0 %v1528
    %v1623 = vpop.f32.mrf.mxu0
    %v1624 = vadd.f32 0.0, %v1623
    %v1625 = vpop.f32.mrf.mxu0
    %v1626 = vadd.f32 0.0, %v1625
    %1627 = vmatmul.bf16.gmra.mxu0 %v1531
    %v1628 = vpop.f32.mrf.mxu0
    %v1629 = vadd.f32 0.0, %v1628
    %v1630 = vpop.f32.mrf.mxu0
    %v1631 = vadd.f32 0.0, %v1630
    %1632 = vmatmul.bf16.gmra.mxu0 %v1534
    %v1633 = vpop.f32.mrf.mxu0
    %v1634 = vadd.f32 0.0, %v1633
    %v1635 = vpop.f32.mrf.mxu0
    %v1636 = vadd.f32 0.0, %v1635
    %1637 = vdwg.mxu0
    %1638 = vmatpush.bf16.msra.mxu0 0
    %1639 = vmatpush.bf16.msra.mxu0 0
    %1640 = vmatpush.bf16.msra.mxu0 0
    %1641 = vmatpush.bf16.msra.mxu0 0
    %1642 = vmatpush.bf16.msra.mxu0 0
    %1643 = vmatpush.bf16.msra.mxu0 0
    %1644 = vmatpush.bf16.msra.mxu0 %v1512
    %1645 = vmatpush.bf16.msra.mxu0 %v1508
    %1646 = vmatmul.bf16.gmra.mxu0 %v1522
    %v1647 = vpop.f32.mrf.mxu0
    %v1648 = vadd.f32 0.0, %v1647
    %v1649 = vpop.f32.mrf.mxu0
    %v1650 = vadd.f32 0.0, %v1649
    %1651 = vmatmul.bf16.gmra.mxu0 %v1525
    %v1652 = vpop.f32.mrf.mxu0
    %v1653 = vadd.f32 0.0, %v1652
    %v1654 = vpop.f32.mrf.mxu0
    %v1655 = vadd.f32 0.0, %v1654
    %1656 = vmatmul.bf16.gmra.mxu0 %v1528
    %v1657 = vpop.f32.mrf.mxu0
    %v1658 = vadd.f32 0.0, %v1657
    %v1659 = vpop.f32.mrf.mxu0
    %v1660 = vadd.f32 0.0, %v1659
    %1661 = vmatmul.bf16.gmra.mxu0 %v1531
    %v1662 = vpop.f32.mrf.mxu0
    %v1663 = vadd.f32 0.0, %v1662
    %v1664 = vpop.f32.mrf.mxu0
    %v1665 = vadd.f32 0.0, %v1664
    %1666 = vmatmul.bf16.gmra.mxu0 %v1534
    %v1667 = vpop.f32.mrf.mxu0
    %v1668 = vadd.f32 0.0, %v1667
    %v1669 = vpop.f32.mrf.mxu0
    %v1670 = vadd.f32 0.0, %v1669
    %1671 = vdwg.mxu0
    %v1672 = vadd.f32 %v1394, %v1546
    %v1673 = vadd.f32 %v1395, %v1580
    %v1674 = vadd.f32 %v1396, %v1614
    %v1675 = vadd.f32 %v1397, %v1648
    %v1676 = vadd.f32 %v1398, %v1548
    %v1677 = vadd.f32 %v1399, %v1582
    %v1678 = vadd.f32 %v1400, %v1616
    %v1679 = vadd.f32 %v1401, %v1650
    %v1680 = vadd.f32 %v1402, %v1551
    %v1681 = vadd.f32 %v1403, %v1585
    %v1682 = vadd.f32 %v1404, %v1619
    %v1683 = vadd.f32 %v1405, %v1653
    %v1684 = vadd.f32 %v1406, %v1553
    %v1685 = vadd.f32 %v1407, %v1587
    %v1686 = vadd.f32 %v1408, %v1621
    %v1687 = vadd.f32 %v1409, %v1655
    %v1688 = vadd.f32 %v1410, %v1556
    %v1689 = vadd.f32 %v1411, %v1590
    %v1690 = vadd.f32 %v1412, %v1624
    %v1691 = vadd.f32 %v1413, %v1658
    %v1692 = vadd.f32 %v1414, %v1558
    %v1693 = vadd.f32 %v1415, %v1592
    %v1694 = vadd.f32 %v1416, %v1626
    %v1695 = vadd.f32 %v1417, %v1660
    %v1696 = vadd.f32 %v1418, %v1561
    %v1697 = vadd.f32 %v1419, %v1595
    %v1698 = vadd.f32 %v1420, %v1629
    %v1699 = vadd.f32 %v1421, %v1663
    %v1700 = vadd.f32 %v1422, %v1563
    %v1701 = vadd.f32 %v1423, %v1597
    %v1702 = vadd.f32 %v1424, %v1631
    %v1703 = vadd.f32 %v1425, %v1665
    %v1704 = vadd.f32 %v1426, %v1566
    %v1705 = vadd.f32 %v1427, %v1600
    %v1706 = vadd.f32 %v1428, %v1634
    %v1707 = vadd.f32 %v1429, %v1668
    %v1708 = vadd.f32 %v1430, %v1568
    %v1709 = vadd.f32 %v1431, %v1602
    %v1710 = vadd.f32 %v1432, %v1636
    %v1711 = vadd.f32 %v1433, %v1670
    %v1712 = vld [vmem:[#allocation2] sm:$0x8]
    %s1713 = scalar_lea.vmem [#allocation5], 384
    %v1714 = vld [vmem:[%s1713] sm:$0xff]
    %v1715 = vld [vmem:[%s1713 + $0x8] sm:$0xff]
    %v1716 = vld [vmem:[%s1713 + $0x10] sm:$0xff]
    %v1717 = vld [vmem:[%s1713 + $0x18] sm:$0xff]
    %v1718 = vld [vmem:[%s1713 + $0x20] sm:$0xff]
    %v1719 = vld [vmem:[%s1713 + $0x28] sm:$0xff]
    %v1720 = vld [vmem:[%s1713 + $0x30] sm:$0xff]
    %v1721 = vld [vmem:[%s1713 + $0x38] sm:$0xff]
    %v1723 = vunpack.c.l.b16 %v1712
    %v1724 = vpack.c.b16 %v205, %v1723
    %vm1725 = vcmask 1044480
    %v1726 = vrot.slane %v1724, 3
    %v1727 = vrot.slane %v216, 3
    %v1728 = vsel %vm1725, %v1726, %v1727
    %v1729 = vrot.slane %v217, 3
    %v1730 = vsel %vm1725, %v1727, %v1729
    %v1731 = vrot.slane %v218, 3
    %v1732 = vsel %vm1725, %v1729, %v1731
    %v1733 = vrot.slane %v219, 3
    %v1734 = vsel %vm1725, %v1731, %v1733
    %v1735 = vrot.slane %v1446, 3
    %v1736 = vsel %vm1725, %v1733, %v1735
    %v1745 = vunpack.c.l.b16 %v1714
    %v1746 = vunpack.c.h.b16 %v1714
    %v1747 = vunpack.c.l.b16 %v1715
    %v1748 = vunpack.c.h.b16 %v1715
    %v1749 = vunpack.c.l.b16 %v1716
    %v1750 = vunpack.c.h.b16 %v1716
    %v1751 = vunpack.c.l.b16 %v1717
    %v1752 = vunpack.c.h.b16 %v1717
    %v1753 = vunpack.c.l.b16 %v1718
    %v1754 = vunpack.c.h.b16 %v1718
    %v1755 = vunpack.c.l.b16 %v1719
    %v1756 = vunpack.c.h.b16 %v1719
    %v1757 = vunpack.c.l.b16 %v1720
    %v1758 = vunpack.c.h.b16 %v1720
    %v1759 = vunpack.c.l.b16 %v1721
    %v1760 = vunpack.c.h.b16 %v1721
    %v1761 = vpack.c.b16 %v1749, %v1745
    %v1762 = vpack.c.b16 %v1750, %v1746
    %v1763 = vpack.c.b16 %v1751, %v1747
    %v1764 = vpack.c.b16 %v1752, %v1748
    %v1765 = vpack.c.b16 %v1757, %v1753
    %v1766 = vpack.c.b16 %v1758, %v1754
    %v1767 = vpack.c.b16 %v1759, %v1755
    %v1768 = vpack.c.b16 %v1760, %v1756
    %v1778 = vsel %vm306, %v1728, 0
    %v1781 = vsel %vm306, %v1730, 0
    %v1784 = vsel %vm306, %v1732, 0
    %v1787 = vsel %vm306, %v1734, 0
    %v1790 = vsel %vm306, %v1736, 0
    %1792 = vmatpush.bf16.msra.mxu0 0
    %1793 = vmatpush.bf16.msra.mxu0 0
    %1794 = vmatpush.bf16.msra.mxu0 0
    %1795 = vmatpush.bf16.msra.mxu0 0
    %1796 = vmatpush.bf16.msra.mxu0 0
    %1797 = vmatpush.bf16.msra.mxu0 0
    %1798 = vmatpush.bf16.msra.mxu0 %v1765
    %1799 = vmatpush.bf16.msra.mxu0 %v1761
    %1800 = vmatmul.bf16.gmra.mxu0 %v1778
    %v1801 = vpop.f32.mrf.mxu0
    %v1802 = vadd.f32 0.0, %v1801
    %v1803 = vpop.f32.mrf.mxu0
    %v1804 = vadd.f32 0.0, %v1803
    %1805 = vmatmul.bf16.gmra.mxu0 %v1781
    %v1806 = vpop.f32.mrf.mxu0
    %v1807 = vadd.f32 0.0, %v1806
    %v1808 = vpop.f32.mrf.mxu0
    %v1809 = vadd.f32 0.0, %v1808
    %1810 = vmatmul.bf16.gmra.mxu0 %v1784
    %v1811 = vpop.f32.mrf.mxu0
    %v1812 = vadd.f32 0.0, %v1811
    %v1813 = vpop.f32.mrf.mxu0
    %v1814 = vadd.f32 0.0, %v1813
    %1815 = vmatmul.bf16.gmra.mxu0 %v1787
    %v1816 = vpop.f32.mrf.mxu0
    %v1817 = vadd.f32 0.0, %v1816
    %v1818 = vpop.f32.mrf.mxu0
    %v1819 = vadd.f32 0.0, %v1818
    %1820 = vmatmul.bf16.gmra.mxu0 %v1790
    %v1821 = vpop.f32.mrf.mxu0
    %v1822 = vadd.f32 0.0, %v1821
    %v1823 = vpop.f32.mrf.mxu0
    %v1824 = vadd.f32 0.0, %v1823
    %1825 = vdwg.mxu0
    %1826 = vmatpush.bf16.msra.mxu0 0
    %1827 = vmatpush.bf16.msra.mxu0 0
    %1828 = vmatpush.bf16.msra.mxu0 0
    %1829 = vmatpush.bf16.msra.mxu0 0
    %1830 = vmatpush.bf16.msra.mxu0 0
    %1831 = vmatpush.bf16.msra.mxu0 0
    %1832 = vmatpush.bf16.msra.mxu0 %v1766
    %1833 = vmatpush.bf16.msra.mxu0 %v1762
    %1834 = vmatmul.bf16.gmra.mxu0 %v1778
    %v1835 = vpop.f32.mrf.mxu0
    %v1836 = vadd.f32 0.0, %v1835
    %v1837 = vpop.f32.mrf.mxu0
    %v1838 = vadd.f32 0.0, %v1837
    %1839 = vmatmul.bf16.gmra.mxu0 %v1781
    %v1840 = vpop.f32.mrf.mxu0
    %v1841 = vadd.f32 0.0, %v1840
    %v1842 = vpop.f32.mrf.mxu0
    %v1843 = vadd.f32 0.0, %v1842
    %1844 = vmatmul.bf16.gmra.mxu0 %v1784
    %v1845 = vpop.f32.mrf.mxu0
    %v1846 = vadd.f32 0.0, %v1845
    %v1847 = vpop.f32.mrf.mxu0
    %v1848 = vadd.f32 0.0, %v1847
    %1849 = vmatmul.bf16.gmra.mxu0 %v1787
    %v1850 = vpop.f32.mrf.mxu0
    %v1851 = vadd.f32 0.0, %v1850
    %v1852 = vpop.f32.mrf.mxu0
    %v1853 = vadd.f32 0.0, %v1852
    %1854 = vmatmul.bf16.gmra.mxu0 %v1790
    %v1855 = vpop.f32.mrf.mxu0
    %v1856 = vadd.f32 0.0, %v1855
    %v1857 = vpop.f32.mrf.mxu0
    %v1858 = vadd.f32 0.0, %v1857
    %1859 = vdwg.mxu0
    %1860 = vmatpush.bf16.msra.mxu0 0
    %1861 = vmatpush.bf16.msra.mxu0 0
    %1862 = vmatpush.bf16.msra.mxu0 0
    %1863 = vmatpush.bf16.msra.mxu0 0
    %1864 = vmatpush.bf16.msra.mxu0 0
    %1865 = vmatpush.bf16.msra.mxu0 0
    %1866 = vmatpush.bf16.msra.mxu0 %v1767
    %1867 = vmatpush.bf16.msra.mxu0 %v1763
    %1868 = vmatmul.bf16.gmra.mxu0 %v1778
    %v1869 = vpop.f32.mrf.mxu0
    %v1870 = vadd.f32 0.0, %v1869
    %v1871 = vpop.f32.mrf.mxu0
    %v1872 = vadd.f32 0.0, %v1871
    %1873 = vmatmul.bf16.gmra.mxu0 %v1781
    %v1874 = vpop.f32.mrf.mxu0
    %v1875 = vadd.f32 0.0, %v1874
    %v1876 = vpop.f32.mrf.mxu0
    %v1877 = vadd.f32 0.0, %v1876
    %1878 = vmatmul.bf16.gmra.mxu0 %v1784
    %v1879 = vpop.f32.mrf.mxu0
    %v1880 = vadd.f32 0.0, %v1879
    %v1881 = vpop.f32.mrf.mxu0
    %v1882 = vadd.f32 0.0, %v1881
    %1883 = vmatmul.bf16.gmra.mxu0 %v1787
    %v1884 = vpop.f32.mrf.mxu0
    %v1885 = vadd.f32 0.0, %v1884
    %v1886 = vpop.f32.mrf.mxu0
    %v1887 = vadd.f32 0.0, %v1886
    %1888 = vmatmul.bf16.gmra.mxu0 %v1790
    %v1889 = vpop.f32.mrf.mxu0
    %v1890 = vadd.f32 0.0, %v1889
    %v1891 = vpop.f32.mrf.mxu0
    %v1892 = vadd.f32 0.0, %v1891
    %1893 = vdwg.mxu0
    %1894 = vmatpush.bf16.msra.mxu0 0
    %1895 = vmatpush.bf16.msra.mxu0 0
    %1896 = vmatpush.bf16.msra.mxu0 0
    %1897 = vmatpush.bf16.msra.mxu0 0
    %1898 = vmatpush.bf16.msra.mxu0 0
    %1899 = vmatpush.bf16.msra.mxu0 0
    %1900 = vmatpush.bf16.msra.mxu0 %v1768
    %1901 = vmatpush.bf16.msra.mxu0 %v1764
    %1902 = vmatmul.bf16.gmra.mxu0 %v1778
    %v1903 = vpop.f32.mrf.mxu0
    %v1904 = vadd.f32 0.0, %v1903
    %v1905 = vpop.f32.mrf.mxu0
    %v1906 = vadd.f32 0.0, %v1905
    %1907 = vmatmul.bf16.gmra.mxu0 %v1781
    %v1908 = vpop.f32.mrf.mxu0
    %v1909 = vadd.f32 0.0, %v1908
    %v1910 = vpop.f32.mrf.mxu0
    %v1911 = vadd.f32 0.0, %v1910
    %1912 = vmatmul.bf16.gmra.mxu0 %v1784
    %v1913 = vpop.f32.mrf.mxu0
    %v1914 = vadd.f32 0.0, %v1913
    %v1915 = vpop.f32.mrf.mxu0
    %v1916 = vadd.f32 0.0, %v1915
    %1917 = vmatmul.bf16.gmra.mxu0 %v1787
    %v1918 = vpop.f32.mrf.mxu0
    %v1919 = vadd.f32 0.0, %v1918
    %v1920 = vpop.f32.mrf.mxu0
    %v1921 = vadd.f32 0.0, %v1920
    %1922 = vmatmul.bf16.gmra.mxu0 %v1790
    %v1923 = vpop.f32.mrf.mxu0
    %v1924 = vadd.f32 0.0, %v1923
    %v1925 = vpop.f32.mrf.mxu0
    %v1926 = vadd.f32 0.0, %v1925
    %1927 = vdwg.mxu0
    %v1928 = vadd.f32 %v1672, %v1802
    %v1929 = vadd.f32 %v1673, %v1836
    %v1930 = vadd.f32 %v1674, %v1870
    %v1931 = vadd.f32 %v1675, %v1904
    %v1932 = vadd.f32 %v1676, %v1804
    %v1933 = vadd.f32 %v1677, %v1838
    %v1934 = vadd.f32 %v1678, %v1872
    %v1935 = vadd.f32 %v1679, %v1906
    %v1936 = vadd.f32 %v1680, %v1807
    %v1937 = vadd.f32 %v1681, %v1841
    %v1938 = vadd.f32 %v1682, %v1875
    %v1939 = vadd.f32 %v1683, %v1909
    %v1940 = vadd.f32 %v1684, %v1809
    %v1941 = vadd.f32 %v1685, %v1843
    %v1942 = vadd.f32 %v1686, %v1877
    %v1943 = vadd.f32 %v1687, %v1911
    %v1944 = vadd.f32 %v1688, %v1812
    %v1945 = vadd.f32 %v1689, %v1846
    %v1946 = vadd.f32 %v1690, %v1880
    %v1947 = vadd.f32 %v1691, %v1914
    %v1948 = vadd.f32 %v1692, %v1814
    %v1949 = vadd.f32 %v1693, %v1848
    %v1950 = vadd.f32 %v1694, %v1882
    %v1951 = vadd.f32 %v1695, %v1916
    %v1952 = vadd.f32 %v1696, %v1817
    %v1953 = vadd.f32 %v1697, %v1851
    %v1954 = vadd.f32 %v1698, %v1885
    %v1955 = vadd.f32 %v1699, %v1919
    %v1956 = vadd.f32 %v1700, %v1819
    %v1957 = vadd.f32 %v1701, %v1853
    %v1958 = vadd.f32 %v1702, %v1887
    %v1959 = vadd.f32 %v1703, %v1921
    %v1960 = vadd.f32 %v1704, %v1822
    %v1961 = vadd.f32 %v1705, %v1856
    %v1962 = vadd.f32 %v1706, %v1890
    %v1963 = vadd.f32 %v1707, %v1924
    %v1964 = vadd.f32 %v1708, %v1824
    %v1965 = vadd.f32 %v1709, %v1858
    %v1966 = vadd.f32 %v1710, %v1892
    %v1967 = vadd.f32 %v1711, %v1926
    %v1968 = vld [vmem:[%s5] ss:$4 sm:$0xf]
    %v1970 = vperm.slane %v1968, 0
    %v1971 = vperm.slane %v1968, 1
    %v1972 = vperm.slane %v1968, 2
    %v1973 = vperm.slane %v1968, 3
    %v1978 = vadd.f32 %v1928, %v1970
    %v1979 = vadd.f32 %v1929, %v1971
    %v1980 = vadd.f32 %v1930, %v1972
    %v1981 = vadd.f32 %v1931, %v1973
    %v1982 = vadd.f32 %v1932, %v1970
    %v1983 = vadd.f32 %v1933, %v1971
    %v1984 = vadd.f32 %v1934, %v1972
    %v1985 = vadd.f32 %v1935, %v1973
    %v1986 = vadd.f32 %v1936, %v1970
    %v1987 = vadd.f32 %v1937, %v1971
    %v1988 = vadd.f32 %v1938, %v1972
    %v1989 = vadd.f32 %v1939, %v1973
    %v1990 = vadd.f32 %v1940, %v1970
    %v1991 = vadd.f32 %v1941, %v1971
    %v1992 = vadd.f32 %v1942, %v1972
    %v1993 = vadd.f32 %v1943, %v1973
    %v1994 = vadd.f32 %v1944, %v1970
    %v1995 = vadd.f32 %v1945, %v1971
    %v1996 = vadd.f32 %v1946, %v1972
    %v1997 = vadd.f32 %v1947, %v1973
    %v1998 = vadd.f32 %v1948, %v1970
    %v1999 = vadd.f32 %v1949, %v1971
    %v2000 = vadd.f32 %v1950, %v1972
    %v2001 = vadd.f32 %v1951, %v1973
    %v2002 = vadd.f32 %v1952, %v1970
    %v2003 = vadd.f32 %v1953, %v1971
    %v2004 = vadd.f32 %v1954, %v1972
    %v2005 = vadd.f32 %v1955, %v1973
    %v2006 = vadd.f32 %v1956, %v1970
    %v2007 = vadd.f32 %v1957, %v1971
    %v2008 = vadd.f32 %v1958, %v1972
    %v2009 = vadd.f32 %v1959, %v1973
    %v2010 = vadd.f32 %v1960, %v1970
    %v2011 = vadd.f32 %v1961, %v1971
    %v2012 = vadd.f32 %v1962, %v1972
    %v2013 = vadd.f32 %v1963, %v1973
    %v2014 = vadd.f32 %v1964, %v1970
    %v2015 = vadd.f32 %v1965, %v1971
    %v2016 = vadd.f32 %v1966, %v1972
    %v2017 = vadd.f32 %v1967, %v1973
    %v2018 = vmax.f32 %v1978, 0.0
    %v2019 = vmax.f32 %v1979, 0.0
    %v2020 = vmax.f32 %v1980, 0.0
    %v2021 = vmax.f32 %v1981, 0.0
    %v2022 = vmax.f32 %v1982, 0.0
    %v2023 = vmax.f32 %v1983, 0.0
    %v2024 = vmax.f32 %v1984, 0.0
    %v2025 = vmax.f32 %v1985, 0.0
    %v2026 = vmax.f32 %v1986, 0.0
    %v2027 = vmax.f32 %v1987, 0.0
    %v2028 = vmax.f32 %v1988, 0.0
    %v2029 = vmax.f32 %v1989, 0.0
    %v2030 = vmax.f32 %v1990, 0.0
    %v2031 = vmax.f32 %v1991, 0.0
    %v2032 = vmax.f32 %v1992, 0.0
    %v2033 = vmax.f32 %v1993, 0.0
    %v2034 = vmax.f32 %v1994, 0.0
    %v2035 = vmax.f32 %v1995, 0.0
    %v2036 = vmax.f32 %v1996, 0.0
    %v2037 = vmax.f32 %v1997, 0.0
    %v2038 = vmax.f32 %v1998, 0.0
    %v2039 = vmax.f32 %v1999, 0.0
    %v2040 = vmax.f32 %v2000, 0.0
    %v2041 = vmax.f32 %v2001, 0.0
    %v2042 = vmax.f32 %v2002, 0.0
    %v2043 = vmax.f32 %v2003, 0.0
    %v2044 = vmax.f32 %v2004, 0.0
    %v2045 = vmax.f32 %v2005, 0.0
    %v2046 = vmax.f32 %v2006, 0.0
    %v2047 = vmax.f32 %v2007, 0.0
    %v2048 = vmax.f32 %v2008, 0.0
    %v2049 = vmax.f32 %v2009, 0.0
    %v2050 = vmax.f32 %v2010, 0.0
    %v2051 = vmax.f32 %v2011, 0.0
    %v2052 = vmax.f32 %v2012, 0.0
    %v2053 = vmax.f32 %v2013, 0.0
    %v2054 = vmax.f32 %v2014, 0.0
    %v2055 = vmax.f32 %v2015, 0.0
    %v2056 = vmax.f32 %v2016, 0.0
    %v2057 = vmax.f32 %v2017, 0.0
    %2098 = vrot.lane.b32.xlu0 %v2018, 112
    %v2099 = vpop.permute.xlu0 %2098
    %2100 = vrot.lane.b32.xlu0 %v2019, 112
    %v2101 = vpop.permute.xlu0 %2100
    %2102 = vrot.lane.b32.xlu0 %v2020, 112
    %v2103 = vpop.permute.xlu0 %2102
    %2104 = vrot.lane.b32.xlu0 %v2021, 112
    %v2105 = vpop.permute.xlu0 %2104
    %2106 = vrot.lane.b32.xlu0 %v2022, 112
    %v2107 = vpop.permute.xlu0 %2106
    %2108 = vrot.lane.b32.xlu0 %v2023, 112
    %v2109 = vpop.permute.xlu0 %2108
    %2110 = vrot.lane.b32.xlu0 %v2024, 112
    %v2111 = vpop.permute.xlu0 %2110
    %2112 = vrot.lane.b32.xlu0 %v2025, 112
    %v2113 = vpop.permute.xlu0 %2112
    %2114 = vrot.lane.b32.xlu0 %v2026, 112
    %v2115 = vpop.permute.xlu0 %2114
    %2116 = vrot.lane.b32.xlu0 %v2027, 112
    %v2117 = vpop.permute.xlu0 %2116
    %2118 = vrot.lane.b32.xlu0 %v2028, 112
    %v2119 = vpop.permute.xlu0 %2118
    %2120 = vrot.lane.b32.xlu0 %v2029, 112
    %v2121 = vpop.permute.xlu0 %2120
    %2122 = vrot.lane.b32.xlu0 %v2030, 112
    %v2123 = vpop.permute.xlu0 %2122
    %2124 = vrot.lane.b32.xlu0 %v2031, 112
    %v2125 = vpop.permute.xlu0 %2124
    %2126 = vrot.lane.b32.xlu0 %v2032, 112
    %v2127 = vpop.permute.xlu0 %2126
    %2128 = vrot.lane.b32.xlu0 %v2033, 112
    %v2129 = vpop.permute.xlu0 %2128
    %2130 = vrot.lane.b32.xlu0 %v2034, 112
    %v2131 = vpop.permute.xlu0 %2130
    %2132 = vrot.lane.b32.xlu0 %v2035, 112
    %v2133 = vpop.permute.xlu0 %2132
    %2134 = vrot.lane.b32.xlu0 %v2036, 112
    %v2135 = vpop.permute.xlu0 %2134
    %2136 = vrot.lane.b32.xlu0 %v2037, 112
    %v2137 = vpop.permute.xlu0 %2136
    %2138 = vrot.lane.b32.xlu0 %v2038, 112
    %v2139 = vpop.permute.xlu0 %2138
    %2140 = vrot.lane.b32.xlu0 %v2039, 112
    %v2141 = vpop.permute.xlu0 %2140
    %2142 = vrot.lane.b32.xlu0 %v2040, 112
    %v2143 = vpop.permute.xlu0 %2142
    %2144 = vrot.lane.b32.xlu0 %v2041, 112
    %v2145 = vpop.permute.xlu0 %2144
    %2146 = vrot.lane.b32.xlu0 %v2042, 112
    %v2147 = vpop.permute.xlu0 %2146
    %2148 = vrot.lane.b32.xlu0 %v2043, 112
    %v2149 = vpop.permute.xlu0 %2148
    %2150 = vrot.lane.b32.xlu0 %v2044, 112
    %v2151 = vpop.permute.xlu0 %2150
    %2152 = vrot.lane.b32.xlu0 %v2045, 112
    %v2153 = vpop.permute.xlu0 %2152
    %2154 = vrot.lane.b32.xlu0 %v2046, 112
    %v2155 = vpop.permute.xlu0 %2154
    %2156 = vrot.lane.b32.xlu0 %v2047, 112
    %v2157 = vpop.permute.xlu0 %2156
    %2158 = vrot.lane.b32.xlu0 %v2048, 112
    %v2159 = vpop.permute.xlu0 %2158
    %2160 = vrot.lane.b32.xlu0 %v2049, 112
    %v2161 = vpop.permute.xlu0 %2160
    %2162 = vrot.lane.b32.xlu0 %v2050, 112
    %v2163 = vpop.permute.xlu0 %2162
    %2164 = vrot.lane.b32.xlu0 %v2051, 112
    %v2165 = vpop.permute.xlu0 %2164
    %2166 = vrot.lane.b32.xlu0 %v2052, 112
    %v2167 = vpop.permute.xlu0 %2166
    %2168 = vrot.lane.b32.xlu0 %v2053, 112
    %v2169 = vpop.permute.xlu0 %2168
    %2170 = vrot.lane.b32.xlu0 %v2054, 112
    %v2171 = vpop.permute.xlu0 %2170
    %2172 = vrot.lane.b32.xlu0 %v2055, 112
    %v2173 = vpop.permute.xlu0 %2172
    %2174 = vrot.lane.b32.xlu0 %v2056, 112
    %v2175 = vpop.permute.xlu0 %2174
    %2176 = vrot.lane.b32.xlu0 %v2057, 112
    %v2177 = vpop.permute.xlu0 %2176
    %vm2178 = vcmask 916480
    %v2179 = vsel %vm2178, %v2099, %v2101
    %v2180 = vsel %vm2178, %v2101, %v2103
    %v2181 = vsel %vm2178, %v2103, %v2105
    %v2182 = vsel %vm2178, %v2107, %v2109
    %v2183 = vsel %vm2178, %v2109, %v2111
    %v2184 = vsel %vm2178, %v2111, %v2113
    %v2185 = vsel %vm2178, %v2115, %v2117
    %v2186 = vsel %vm2178, %v2117, %v2119
    %v2187 = vsel %vm2178, %v2119, %v2121
    %v2188 = vsel %vm2178, %v2123, %v2125
    %v2189 = vsel %vm2178, %v2125, %v2127
    %v2190 = vsel %vm2178, %v2127, %v2129
    %v2191 = vsel %vm2178, %v2131, %v2133
    %v2192 = vsel %vm2178, %v2133, %v2135
    %v2193 = vsel %vm2178, %v2135, %v2137
    %v2194 = vsel %vm2178, %v2139, %v2141
    %v2195 = vsel %vm2178, %v2141, %v2143
    %v2196 = vsel %vm2178, %v2143, %v2145
    %v2197 = vsel %vm2178, %v2147, %v2149
    %v2198 = vsel %vm2178, %v2149, %v2151
    %v2199 = vsel %vm2178, %v2151, %v2153
    %v2200 = vsel %vm2178, %v2155, %v2157
    %v2201 = vsel %vm2178, %v2157, %v2159
    %v2202 = vsel %vm2178, %v2159, %v2161
    %v2203 = vsel %vm2178, %v2163, %v2165
    %v2204 = vsel %vm2178, %v2165, %v2167
    %v2205 = vsel %vm2178, %v2167, %v2169
    %v2206 = vsel %vm2178, %v2171, %v2173
    %v2207 = vsel %vm2178, %v2173, %v2175
    %v2208 = vsel %vm2178, %v2175, %v2177
    %v2249 = vmax.f32 %v2018, %v2179
    %v2250 = vmax.f32 %v2019, %v2180
    %v2251 = vmax.f32 %v2020, %v2181
    %v2252 = vmax.f32 %v2021, %v2105
    %v2253 = vmax.f32 %v2022, %v2182
    %v2254 = vmax.f32 %v2023, %v2183
    %v2255 = vmax.f32 %v2024, %v2184
    %v2256 = vmax.f32 %v2025, %v2113
    %v2257 = vmax.f32 %v2026, %v2185
    %v2258 = vmax.f32 %v2027, %v2186
    %v2259 = vmax.f32 %v2028, %v2187
    %v2260 = vmax.f32 %v2029, %v2121
    %v2261 = vmax.f32 %v2030, %v2188
    %v2262 = vmax.f32 %v2031, %v2189
    %v2263 = vmax.f32 %v2032, %v2190
    %v2264 = vmax.f32 %v2033, %v2129
    %v2265 = vmax.f32 %v2034, %v2191
    %v2266 = vmax.f32 %v2035, %v2192
    %v2267 = vmax.f32 %v2036, %v2193
    %v2268 = vmax.f32 %v2037, %v2137
    %v2269 = vmax.f32 %v2038, %v2194
    %v2270 = vmax.f32 %v2039, %v2195
    %v2271 = vmax.f32 %v2040, %v2196
    %v2272 = vmax.f32 %v2041, %v2145
    %v2273 = vmax.f32 %v2042, %v2197
    %v2274 = vmax.f32 %v2043, %v2198
    %v2275 = vmax.f32 %v2044, %v2199
    %v2276 = vmax.f32 %v2045, %v2153
    %v2277 = vmax.f32 %v2046, %v2200
    %v2278 = vmax.f32 %v2047, %v2201
    %v2279 = vmax.f32 %v2048, %v2202
    %v2280 = vmax.f32 %v2049, %v2161
    %v2281 = vmax.f32 %v2050, %v2203
    %v2282 = vmax.f32 %v2051, %v2204
    %v2283 = vmax.f32 %v2052, %v2205
    %v2284 = vmax.f32 %v2053, %v2169
    %v2285 = vmax.f32 %v2054, %v2206
    %v2286 = vmax.f32 %v2055, %v2207
    %v2287 = vmax.f32 %v2056, %v2208
    %v2288 = vmax.f32 %v2057, %v2177
    %2329 = vrot.lane.b32.xlu0 %v2249, 96
    %v2330 = vpop.permute.xlu0 %2329
    %2331 = vrot.lane.b32.xlu0 %v2250, 96
    %v2332 = vpop.permute.xlu0 %2331
    %2333 = vrot.lane.b32.xlu0 %v2251, 96
    %v2334 = vpop.permute.xlu0 %2333
    %2335 = vrot.lane.b32.xlu0 %v2252, 96
    %v2336 = vpop.permute.xlu0 %2335
    %2337 = vrot.lane.b32.xlu0 %v2253, 96
    %v2338 = vpop.permute.xlu0 %2337
    %2339 = vrot.lane.b32.xlu0 %v2254, 96
    %v2340 = vpop.permute.xlu0 %2339
    %2341 = vrot.lane.b32.xlu0 %v2255, 96
    %v2342 = vpop.permute.xlu0 %2341
    %2343 = vrot.lane.b32.xlu0 %v2256, 96
    %v2344 = vpop.permute.xlu0 %2343
    %2345 = vrot.lane.b32.xlu0 %v2257, 96
    %v2346 = vpop.permute.xlu0 %2345
    %2347 = vrot.lane.b32.xlu0 %v2258, 96
    %v2348 = vpop.permute.xlu0 %2347
    %2349 = vrot.lane.b32.xlu0 %v2259, 96
    %v2350 = vpop.permute.xlu0 %2349
    %2351 = vrot.lane.b32.xlu0 %v2260, 96
    %v2352 = vpop.permute.xlu0 %2351
    %2353 = vrot.lane.b32.xlu0 %v2261, 96
    %v2354 = vpop.permute.xlu0 %2353
    %2355 = vrot.lane.b32.xlu0 %v2262, 96
    %v2356 = vpop.permute.xlu0 %2355
    %2357 = vrot.lane.b32.xlu0 %v2263, 96
    %v2358 = vpop.permute.xlu0 %2357
    %2359 = vrot.lane.b32.xlu0 %v2264, 96
    %v2360 = vpop.permute.xlu0 %2359
    %2361 = vrot.lane.b32.xlu0 %v2265, 96
    %v2362 = vpop.permute.xlu0 %2361
    %2363 = vrot.lane.b32.xlu0 %v2266, 96
    %v2364 = vpop.permute.xlu0 %2363
    %2365 = vrot.lane.b32.xlu0 %v2267, 96
    %v2366 = vpop.permute.xlu0 %2365
    %2367 = vrot.lane.b32.xlu0 %v2268, 96
    %v2368 = vpop.permute.xlu0 %2367
    %2369 = vrot.lane.b32.xlu0 %v2269, 96
    %v2370 = vpop.permute.xlu0 %2369
    %2371 = vrot.lane.b32.xlu0 %v2270, 96
    %v2372 = vpop.permute.xlu0 %2371
    %2373 = vrot.lane.b32.xlu0 %v2271, 96
    %v2374 = vpop.permute.xlu0 %2373
    %2375 = vrot.lane.b32.xlu0 %v2272, 96
    %v2376 = vpop.permute.xlu0 %2375
    %2377 = vrot.lane.b32.xlu0 %v2273, 96
    %v2378 = vpop.permute.xlu0 %2377
    %2379 = vrot.lane.b32.xlu0 %v2274, 96
    %v2380 = vpop.permute.xlu0 %2379
    %2381 = vrot.lane.b32.xlu0 %v2275, 96
    %v2382 = vpop.permute.xlu0 %2381
    %2383 = vrot.lane.b32.xlu0 %v2276, 96
    %v2384 = vpop.permute.xlu0 %2383
    %2385 = vrot.lane.b32.xlu0 %v2277, 96
    %v2386 = vpop.permute.xlu0 %2385
    %2387 = vrot.lane.b32.xlu0 %v2278, 96
    %v2388 = vpop.permute.xlu0 %2387
    %2389 = vrot.lane.b32.xlu0 %v2279, 96
    %v2390 = vpop.permute.xlu0 %2389
    %2391 = vrot.lane.b32.xlu0 %v2280, 96
    %v2392 = vpop.permute.xlu0 %2391
    %2393 = vrot.lane.b32.xlu0 %v2281, 96
    %v2394 = vpop.permute.xlu0 %2393
    %2395 = vrot.lane.b32.xlu0 %v2282, 96
    %v2396 = vpop.permute.xlu0 %2395
    %2397 = vrot.lane.b32.xlu0 %v2283, 96
    %v2398 = vpop.permute.xlu0 %2397
    %2399 = vrot.lane.b32.xlu0 %v2284, 96
    %v2400 = vpop.permute.xlu0 %2399
    %2401 = vrot.lane.b32.xlu0 %v2285, 96
    %v2402 = vpop.permute.xlu0 %2401
    %2403 = vrot.lane.b32.xlu0 %v2286, 96
    %v2404 = vpop.permute.xlu0 %2403
    %2405 = vrot.lane.b32.xlu0 %v2287, 96
    %v2406 = vpop.permute.xlu0 %2405
    %2407 = vrot.lane.b32.xlu0 %v2288, 96
    %v2408 = vpop.permute.xlu0 %2407
    %vm2409 = vcmask 785408
    %v2410 = vsel %vm2409, %v2330, %v2332
    %v2411 = vsel %vm2409, %v2332, %v2334
    %v2412 = vsel %vm2409, %v2334, %v2336
    %v2413 = vsel %vm2409, %v2338, %v2340
    %v2414 = vsel %vm2409, %v2340, %v2342
    %v2415 = vsel %vm2409, %v2342, %v2344
    %v2416 = vsel %vm2409, %v2346, %v2348
    %v2417 = vsel %vm2409, %v2348, %v2350
    %v2418 = vsel %vm2409, %v2350, %v2352
    %v2419 = vsel %vm2409, %v2354, %v2356
    %v2420 = vsel %vm2409, %v2356, %v2358
    %v2421 = vsel %vm2409, %v2358, %v2360
    %v2422 = vsel %vm2409, %v2362, %v2364
    %v2423 = vsel %vm2409, %v2364, %v2366
    %v2424 = vsel %vm2409, %v2366, %v2368
    %v2425 = vsel %vm2409, %v2370, %v2372
    %v2426 = vsel %vm2409, %v2372, %v2374
    %v2427 = vsel %vm2409, %v2374, %v2376
    %v2428 = vsel %vm2409, %v2378, %v2380
    %v2429 = vsel %vm2409, %v2380, %v2382
    %v2430 = vsel %vm2409, %v2382, %v2384
    %v2431 = vsel %vm2409, %v2386, %v2388
    %v2432 = vsel %vm2409, %v2388, %v2390
    %v2433 = vsel %vm2409, %v2390, %v2392
    %v2434 = vsel %vm2409, %v2394, %v2396
    %v2435 = vsel %vm2409, %v2396, %v2398
    %v2436 = vsel %vm2409, %v2398, %v2400
    %v2437 = vsel %vm2409, %v2402, %v2404
    %v2438 = vsel %vm2409, %v2404, %v2406
    %v2439 = vsel %vm2409, %v2406, %v2408
    %v2480 = vmax.f32 %v2249, %v2410
    %v2481 = vmax.f32 %v2250, %v2411
    %v2482 = vmax.f32 %v2251, %v2412
    %v2483 = vmax.f32 %v2252, %v2336
    %v2484 = vmax.f32 %v2253, %v2413
    %v2485 = vmax.f32 %v2254, %v2414
    %v2486 = vmax.f32 %v2255, %v2415
    %v2487 = vmax.f32 %v2256, %v2344
    %v2488 = vmax.f32 %v2257, %v2416
    %v2489 = vmax.f32 %v2258, %v2417
    %v2490 = vmax.f32 %v2259, %v2418
    %v2491 = vmax.f32 %v2260, %v2352
    %v2492 = vmax.f32 %v2261, %v2419
    %v2493 = vmax.f32 %v2262, %v2420
    %v2494 = vmax.f32 %v2263, %v2421
    %v2495 = vmax.f32 %v2264, %v2360
    %v2496 = vmax.f32 %v2265, %v2422
    %v2497 = vmax.f32 %v2266, %v2423
    %v2498 = vmax.f32 %v2267, %v2424
    %v2499 = vmax.f32 %v2268, %v2368
    %v2500 = vmax.f32 %v2269, %v2425
    %v2501 = vmax.f32 %v2270, %v2426
    %v2502 = vmax.f32 %v2271, %v2427
    %v2503 = vmax.f32 %v2272, %v2376
    %v2504 = vmax.f32 %v2273, %v2428
    %v2505 = vmax.f32 %v2274, %v2429
    %v2506 = vmax.f32 %v2275, %v2430
    %v2507 = vmax.f32 %v2276, %v2384
    %v2508 = vmax.f32 %v2277, %v2431
    %v2509 = vmax.f32 %v2278, %v2432
    %v2510 = vmax.f32 %v2279, %v2433
    %v2511 = vmax.f32 %v2280, %v2392
    %v2512 = vmax.f32 %v2281, %v2434
    %v2513 = vmax.f32 %v2282, %v2435
    %v2514 = vmax.f32 %v2283, %v2436
    %v2515 = vmax.f32 %v2284, %v2400
    %v2516 = vmax.f32 %v2285, %v2437
    %v2517 = vmax.f32 %v2286, %v2438
    %v2518 = vmax.f32 %v2287, %v2439
    %v2519 = vmax.f32 %v2288, %v2408
    %2520 = vrot.lane.b32.xlu0 %v2018, 64
    %v2521 = vpop.permute.xlu0 %2520
    %2522 = vrot.lane.b32.xlu0 %v2019, 64
    %v2523 = vpop.permute.xlu0 %2522
    %2524 = vrot.lane.b32.xlu0 %v2020, 64
    %v2525 = vpop.permute.xlu0 %2524
    %2526 = vrot.lane.b32.xlu0 %v2021, 64
    %v2527 = vpop.permute.xlu0 %2526
    %2528 = vrot.lane.b32.xlu0 %v2022, 64
    %v2529 = vpop.permute.xlu0 %2528
    %2530 = vrot.lane.b32.xlu0 %v2023, 64
    %v2531 = vpop.permute.xlu0 %2530
    %2532 = vrot.lane.b32.xlu0 %v2024, 64
    %v2533 = vpop.permute.xlu0 %2532
    %2534 = vrot.lane.b32.xlu0 %v2025, 64
    %v2535 = vpop.permute.xlu0 %2534
    %2536 = vrot.lane.b32.xlu0 %v2026, 64
    %v2537 = vpop.permute.xlu0 %2536
    %2538 = vrot.lane.b32.xlu0 %v2027, 64
    %v2539 = vpop.permute.xlu0 %2538
    %2540 = vrot.lane.b32.xlu0 %v2028, 64
    %v2541 = vpop.permute.xlu0 %2540
    %2542 = vrot.lane.b32.xlu0 %v2029, 64
    %v2543 = vpop.permute.xlu0 %2542
    %2544 = vrot.lane.b32.xlu0 %v2030, 64
    %v2545 = vpop.permute.xlu0 %2544
    %2546 = vrot.lane.b32.xlu0 %v2031, 64
    %v2547 = vpop.permute.xlu0 %2546
    %2548 = vrot.lane.b32.xlu0 %v2032, 64
    %v2549 = vpop.permute.xlu0 %2548
    %2550 = vrot.lane.b32.xlu0 %v2033, 64
    %v2551 = vpop.permute.xlu0 %2550
    %2552 = vrot.lane.b32.xlu0 %v2034, 64
    %v2553 = vpop.permute.xlu0 %2552
    %2554 = vrot.lane.b32.xlu0 %v2035, 64
    %v2555 = vpop.permute.xlu0 %2554
    %2556 = vrot.lane.b32.xlu0 %v2036, 64
    %v2557 = vpop.permute.xlu0 %2556
    %2558 = vrot.lane.b32.xlu0 %v2037, 64
    %v2559 = vpop.permute.xlu0 %2558
    %2560 = vrot.lane.b32.xlu0 %v2038, 64
    %v2561 = vpop.permute.xlu0 %2560
    %2562 = vrot.lane.b32.xlu0 %v2039, 64
    %v2563 = vpop.permute.xlu0 %2562
    %2564 = vrot.lane.b32.xlu0 %v2040, 64
    %v2565 = vpop.permute.xlu0 %2564
    %2566 = vrot.lane.b32.xlu0 %v2041, 64
    %v2567 = vpop.permute.xlu0 %2566
    %2568 = vrot.lane.b32.xlu0 %v2042, 64
    %v2569 = vpop.permute.xlu0 %2568
    %2570 = vrot.lane.b32.xlu0 %v2043, 64
    %v2571 = vpop.permute.xlu0 %2570
    %2572 = vrot.lane.b32.xlu0 %v2044, 64
    %v2573 = vpop.permute.xlu0 %2572
    %2574 = vrot.lane.b32.xlu0 %v2045, 64
    %v2575 = vpop.permute.xlu0 %2574
    %2576 = vrot.lane.b32.xlu0 %v2046, 64
    %v2577 = vpop.permute.xlu0 %2576
    %2578 = vrot.lane.b32.xlu0 %v2047, 64
    %v2579 = vpop.permute.xlu0 %2578
    %2580 = vrot.lane.b32.xlu0 %v2048, 64
    %v2581 = vpop.permute.xlu0 %2580
    %2582 = vrot.lane.b32.xlu0 %v2049, 64
    %v2583 = vpop.permute.xlu0 %2582
    %2584 = vrot.lane.b32.xlu0 %v2050, 64
    %v2585 = vpop.permute.xlu0 %2584
    %2586 = vrot.lane.b32.xlu0 %v2051, 64
    %v2587 = vpop.permute.xlu0 %2586
    %2588 = vrot.lane.b32.xlu0 %v2052, 64
    %v2589 = vpop.permute.xlu0 %2588
    %2590 = vrot.lane.b32.xlu0 %v2053, 64
    %v2591 = vpop.permute.xlu0 %2590
    %2592 = vrot.lane.b32.xlu0 %v2054, 64
    %v2593 = vpop.permute.xlu0 %2592
    %2594 = vrot.lane.b32.xlu0 %v2055, 64
    %v2595 = vpop.permute.xlu0 %2594
    %2596 = vrot.lane.b32.xlu0 %v2056, 64
    %v2597 = vpop.permute.xlu0 %2596
    %2598 = vrot.lane.b32.xlu0 %v2057, 64
    %v2599 = vpop.permute.xlu0 %2598
    %vm2600 = vcmask 523264
    %v2601 = vsel %vm2600, %v2521, %v2523
    %v2602 = vsel %vm2600, %v2523, %v2525
    %v2603 = vsel %vm2600, %v2525, %v2527
    %v2604 = vsel %vm2600, %v2529, %v2531
    %v2605 = vsel %vm2600, %v2531, %v2533
    %v2606 = vsel %vm2600, %v2533, %v2535
    %v2607 = vsel %vm2600, %v2537, %v2539
    %v2608 = vsel %vm2600, %v2539, %v2541
    %v2609 = vsel %vm2600, %v2541, %v2543
    %v2610 = vsel %vm2600, %v2545, %v2547
    %v2611 = vsel %vm2600, %v2547, %v2549
    %v2612 = vsel %vm2600, %v2549, %v2551
    %v2613 = vsel %vm2600, %v2553, %v2555
    %v2614 = vsel %vm2600, %v2555, %v2557
    %v2615 = vsel %vm2600, %v2557, %v2559
    %v2616 = vsel %vm2600, %v2561, %v2563
    %v2617 = vsel %vm2600, %v2563, %v2565
    %v2618 = vsel %vm2600, %v2565, %v2567
    %v2619 = vsel %vm2600, %v2569, %v2571
    %v2620 = vsel %vm2600, %v2571, %v2573
    %v2621 = vsel %vm2600, %v2573, %v2575
    %v2622 = vsel %vm2600, %v2577, %v2579
    %v2623 = vsel %vm2600, %v2579, %v2581
    %v2624 = vsel %vm2600, %v2581, %v2583
    %v2625 = vsel %vm2600, %v2585, %v2587
    %v2626 = vsel %vm2600, %v2587, %v2589
    %v2627 = vsel %vm2600, %v2589, %v2591
    %v2628 = vsel %vm2600, %v2593, %v2595
    %v2629 = vsel %vm2600, %v2595, %v2597
    %v2630 = vsel %vm2600, %v2597, %v2599
    %v2671 = vmax.f32 %v2480, %v2601
    %v2672 = vmax.f32 %v2481, %v2602
    %v2673 = vmax.f32 %v2482, %v2603
    %v2674 = vmax.f32 %v2483, %v2527
    %v2675 = vmax.f32 %v2484, %v2604
    %v2676 = vmax.f32 %v2485, %v2605
    %v2677 = vmax.f32 %v2486, %v2606
    %v2678 = vmax.f32 %v2487, %v2535
    %v2679 = vmax.f32 %v2488, %v2607
    %v2680 = vmax.f32 %v2489, %v2608
    %v2681 = vmax.f32 %v2490, %v2609
    %v2682 = vmax.f32 %v2491, %v2543
    %v2683 = vmax.f32 %v2492, %v2610
    %v2684 = vmax.f32 %v2493, %v2611
    %v2685 = vmax.f32 %v2494, %v2612
    %v2686 = vmax.f32 %v2495, %v2551
    %v2687 = vmax.f32 %v2496, %v2613
    %v2688 = vmax.f32 %v2497, %v2614
    %v2689 = vmax.f32 %v2498, %v2615
    %v2690 = vmax.f32 %v2499, %v2559
    %v2691 = vmax.f32 %v2500, %v2616
    %v2692 = vmax.f32 %v2501, %v2617
    %v2693 = vmax.f32 %v2502, %v2618
    %v2694 = vmax.f32 %v2503, %v2567
    %v2695 = vmax.f32 %v2504, %v2619
    %v2696 = vmax.f32 %v2505, %v2620
    %v2697 = vmax.f32 %v2506, %v2621
    %v2698 = vmax.f32 %v2507, %v2575
    %v2699 = vmax.f32 %v2508, %v2622
    %v2700 = vmax.f32 %v2509, %v2623
    %v2701 = vmax.f32 %v2510, %v2624
    %v2702 = vmax.f32 %v2511, %v2583
    %v2703 = vmax.f32 %v2512, %v2625
    %v2704 = vmax.f32 %v2513, %v2626
    %v2705 = vmax.f32 %v2514, %v2627
    %v2706 = vmax.f32 %v2515, %v2591
    %v2707 = vmax.f32 %v2516, %v2628
    %v2708 = vmax.f32 %v2517, %v2629
    %v2709 = vmax.f32 %v2518, %v2630
    %v2710 = vmax.f32 %v2519, %v2599
    %2721 = vrot.lane.b32.xlu0 %v2671, 64
    %v2722 = vpop.permute.xlu0 %2721
    %2723 = vrot.lane.b32.xlu0 %v2675, 64
    %v2724 = vpop.permute.xlu0 %2723
    %2725 = vrot.lane.b32.xlu0 %v2679, 64
    %v2726 = vpop.permute.xlu0 %2725
    %2727 = vrot.lane.b32.xlu0 %v2683, 64
    %v2728 = vpop.permute.xlu0 %2727
    %2729 = vrot.lane.b32.xlu0 %v2687, 64
    %v2730 = vpop.permute.xlu0 %2729
    %2731 = vrot.lane.b32.xlu0 %v2691, 64
    %v2732 = vpop.permute.xlu0 %2731
    %2733 = vrot.lane.b32.xlu0 %v2695, 64
    %v2734 = vpop.permute.xlu0 %2733
    %2735 = vrot.lane.b32.xlu0 %v2699, 64
    %v2736 = vpop.permute.xlu0 %2735
    %2737 = vrot.lane.b32.xlu0 %v2703, 64
    %v2738 = vpop.permute.xlu0 %2737
    %2739 = vrot.lane.b32.xlu0 %v2707, 64
    %v2740 = vpop.permute.xlu0 %2739
    %2761 = vrot.lane.b32.xlu0 %v2672, 64
    %v2762 = vpop.permute.xlu0 %2761
    %2763 = vrot.lane.b32.xlu0 %v2676, 64
    %v2764 = vpop.permute.xlu0 %2763
    %2765 = vrot.lane.b32.xlu0 %v2680, 64
    %v2766 = vpop.permute.xlu0 %2765
    %2767 = vrot.lane.b32.xlu0 %v2684, 64
    %v2768 = vpop.permute.xlu0 %2767
    %2769 = vrot.lane.b32.xlu0 %v2688, 64
    %v2770 = vpop.permute.xlu0 %2769
    %2771 = vrot.lane.b32.xlu0 %v2692, 64
    %v2772 = vpop.permute.xlu0 %2771
    %2773 = vrot.lane.b32.xlu0 %v2696, 64
    %v2774 = vpop.permute.xlu0 %2773
    %2775 = vrot.lane.b32.xlu0 %v2700, 64
    %v2776 = vpop.permute.xlu0 %2775
    %2777 = vrot.lane.b32.xlu0 %v2704, 64
    %v2778 = vpop.permute.xlu0 %2777
    %2779 = vrot.lane.b32.xlu0 %v2708, 64
    %v2780 = vpop.permute.xlu0 %2779
    %2801 = vrot.lane.b32.xlu0 %v2674, 64
    %v2802 = vpop.permute.xlu0 %2801
    %2803 = vrot.lane.b32.xlu0 %v2678, 64
    %v2804 = vpop.permute.xlu0 %2803
    %2805 = vrot.lane.b32.xlu0 %v2682, 64
    %v2806 = vpop.permute.xlu0 %2805
    %2807 = vrot.lane.b32.xlu0 %v2686, 64
    %v2808 = vpop.permute.xlu0 %2807
    %2809 = vrot.lane.b32.xlu0 %v2690, 64
    %v2810 = vpop.permute.xlu0 %2809
    %2811 = vrot.lane.b32.xlu0 %v2694, 64
    %v2812 = vpop.permute.xlu0 %2811
    %2813 = vrot.lane.b32.xlu0 %v2698, 64
    %v2814 = vpop.permute.xlu0 %2813
    %2815 = vrot.lane.b32.xlu0 %v2702, 64
    %v2816 = vpop.permute.xlu0 %2815
    %2817 = vrot.lane.b32.xlu0 %v2706, 64
    %v2818 = vpop.permute.xlu0 %2817
    %2819 = vrot.lane.b32.xlu0 %v2710, 64
    %v2820 = vpop.permute.xlu0 %2819
    %vm2831 = vcmask 130048
    %v2832 = vsel %vm2831, %v2671, %v2722
    %v2833 = vsel %vm2831, %v2675, %v2724
    %v2834 = vsel %vm2831, %v2679, %v2726
    %v2835 = vsel %vm2831, %v2683, %v2728
    %v2836 = vsel %vm2831, %v2687, %v2730
    %v2837 = vsel %vm2831, %v2691, %v2732
    %v2838 = vsel %vm2831, %v2695, %v2734
    %v2839 = vsel %vm2831, %v2699, %v2736
    %v2840 = vsel %vm2831, %v2703, %v2738
    %v2841 = vsel %vm2831, %v2707, %v2740
    %v2842 = vsel %vm306, %v2832, %v2672
    %v2843 = vsel %vm306, %v2833, %v2676
    %v2844 = vsel %vm306, %v2834, %v2680
    %v2845 = vsel %vm306, %v2835, %v2684
    %v2846 = vsel %vm306, %v2836, %v2688
    %v2847 = vsel %vm306, %v2837, %v2692
    %v2848 = vsel %vm306, %v2838, %v2696
    %v2849 = vsel %vm306, %v2839, %v2700
    %v2850 = vsel %vm306, %v2840, %v2704
    %v2851 = vsel %vm306, %v2841, %v2708
    %vm2852 = vcmask 392192
    %v2853 = vsel %vm2852, %v2842, %v2762
    %v2854 = vsel %vm2852, %v2843, %v2764
    %v2855 = vsel %vm2852, %v2844, %v2766
    %v2856 = vsel %vm2852, %v2845, %v2768
    %v2857 = vsel %vm2852, %v2846, %v2770
    %v2858 = vsel %vm2852, %v2847, %v2772
    %v2859 = vsel %vm2852, %v2848, %v2774
    %v2860 = vsel %vm2852, %v2849, %v2776
    %v2861 = vsel %vm2852, %v2850, %v2778
    %v2862 = vsel %vm2852, %v2851, %v2780
    %v2863 = vsel %vm2600, %v2853, %v2673
    %v2864 = vsel %vm2600, %v2854, %v2677
    %v2865 = vsel %vm2600, %v2855, %v2681
    %v2866 = vsel %vm2600, %v2856, %v2685
    %v2867 = vsel %vm2600, %v2857, %v2689
    %v2868 = vsel %vm2600, %v2858, %v2693
    %v2869 = vsel %vm2600, %v2859, %v2697
    %v2870 = vsel %vm2600, %v2860, %v2701
    %v2871 = vsel %vm2600, %v2861, %v2705
    %v2872 = vsel %vm2600, %v2862, %v2709
    %vm2873 = vcmask 654336
    %v2874 = vsel %vm2873, %v2863, %v2802
    %v2875 = vsel %vm2873, %v2864, %v2804
    %v2876 = vsel %vm2873, %v2865, %v2806
    %v2877 = vsel %vm2873, %v2866, %v2808
    %v2878 = vsel %vm2873, %v2867, %v2810
    %v2879 = vsel %vm2873, %v2868, %v2812
    %v2880 = vsel %vm2873, %v2869, %v2814
    %v2881 = vsel %vm2873, %v2870, %v2816
    %v2882 = vsel %vm2873, %v2871, %v2818
    %v2883 = vsel %vm2873, %v2872, %v2820
    %vm2894 = vcmask 1046528
    %v2895 = vrot.slane %v2874, 1
    %v2896 = vrot.slane %v2875, 1
    %v2897 = vsel %vm2894, %v2895, %v2896
    %v2898 = vrot.slane %v2876, 1
    %v2899 = vsel %vm2894, %v2896, %v2898
    %v2900 = vrot.slane %v2877, 1
    %v2901 = vsel %vm2894, %v2898, %v2900
    %v2902 = vrot.slane %v2878, 1
    %v2903 = vsel %vm2894, %v2900, %v2902
    %v2904 = vrot.slane %v2879, 1
    %v2905 = vrot.slane %v2880, 1
    %v2906 = vsel %vm2894, %v2904, %v2905
    %v2907 = vrot.slane %v2881, 1
    %v2908 = vsel %vm2894, %v2905, %v2907
    %v2909 = vrot.slane %v2882, 1
    %v2910 = vsel %vm2894, %v2907, %v2909
    %v2911 = vrot.slane %v2883, 1
    %v2912 = vsel %vm2894, %v2909, %v2911
    %v2921 = vmax.f32 %v2874, %v2897
    %v2922 = vmax.f32 %v2875, %v2899
    %v2923 = vmax.f32 %v2876, %v2901
    %v2924 = vmax.f32 %v2877, %v2903
    %v2925 = vmax.f32 %v2879, %v2906
    %v2926 = vmax.f32 %v2880, %v2908
    %v2927 = vmax.f32 %v2881, %v2910
    %v2928 = vmax.f32 %v2882, %v2912
    %vm2929 = vcmask 1045504
    %v2930 = vrot.slane %v2874, 2
    %v2931 = vrot.slane %v2875, 2
    %v2932 = vsel %vm2929, %v2930, %v2931
    %v2933 = vrot.slane %v2876, 2
    %v2934 = vsel %vm2929, %v2931, %v2933
    %v2935 = vrot.slane %v2877, 2
    %v2936 = vsel %vm2929, %v2933, %v2935
    %v2937 = vrot.slane %v2878, 2
    %v2938 = vsel %vm2929, %v2935, %v2937
    %v2939 = vrot.slane %v2879, 2
    %v2940 = vrot.slane %v2880, 2
    %v2941 = vsel %vm2929, %v2939, %v2940
    %v2942 = vrot.slane %v2881, 2
    %v2943 = vsel %vm2929, %v2940, %v2942
    %v2944 = vrot.slane %v2882, 2
    %v2945 = vsel %vm2929, %v2942, %v2944
    %v2946 = vrot.slane %v2883, 2
    %v2947 = vsel %vm2929, %v2944, %v2946
    %v2956 = vmax.f32 %v2921, %v2932
    %v2957 = vmax.f32 %v2922, %v2934
    %v2958 = vmax.f32 %v2923, %v2936
    %v2959 = vmax.f32 %v2924, %v2938
    %v2960 = vmax.f32 %v2925, %v2941
    %v2961 = vmax.f32 %v2926, %v2943
    %v2962 = vmax.f32 %v2927, %v2945
    %v2963 = vmax.f32 %v2928, %v2947
    %vm2964 = vcmask 1044480
    %v2965 = vrot.slane %v2874, 3
    %v2966 = vrot.slane %v2875, 3
    %v2967 = vsel %vm2964, %v2965, %v2966
    %v2968 = vrot.slane %v2876, 3
    %v2969 = vsel %vm2964, %v2966, %v2968
    %v2970 = vrot.slane %v2877, 3
    %v2971 = vsel %vm2964, %v2968, %v2970
    %v2972 = vrot.slane %v2878, 3
    %v2973 = vsel %vm2964, %v2970, %v2972
    %v2974 = vrot.slane %v2879, 3
    %v2975 = vrot.slane %v2880, 3
    %v2976 = vsel %vm2964, %v2974, %v2975
    %v2977 = vrot.slane %v2881, 3
    %v2978 = vsel %vm2964, %v2975, %v2977
    %v2979 = vrot.slane %v2882, 3
    %v2980 = vsel %vm2964, %v2977, %v2979
    %v2981 = vrot.slane %v2883, 3
    %v2982 = vsel %vm2964, %v2979, %v2981
    %v2991 = vmax.f32 %v2956, %v2967
    %v2992 = vmax.f32 %v2957, %v2969
    %v2993 = vmax.f32 %v2958, %v2971
    %v2994 = vmax.f32 %v2959, %v2973
    %v2995 = vmax.f32 %v2960, %v2976
    %v2996 = vmax.f32 %v2961, %v2978
    %v2997 = vmax.f32 %v2962, %v2980
    %v2998 = vmax.f32 %v2963, %v2982
    %vm2999 = vcmask 1043456
    %v3000 = vrot.slane %v2874, 4
    %v3001 = vrot.slane %v2875, 4
    %v3002 = vsel %vm2999, %v3000, %v3001
    %v3003 = vrot.slane %v2876, 4
    %v3004 = vsel %vm2999, %v3001, %v3003
    %v3005 = vrot.slane %v2877, 4
    %v3006 = vsel %vm2999, %v3003, %v3005
    %v3007 = vrot.slane %v2878, 4
    %v3008 = vsel %vm2999, %v3005, %v3007
    %v3009 = vrot.slane %v2879, 4
    %v3010 = vrot.slane %v2880, 4
    %v3011 = vsel %vm2999, %v3009, %v3010
    %v3012 = vrot.slane %v2881, 4
    %v3013 = vsel %vm2999, %v3010, %v3012
    %v3014 = vrot.slane %v2882, 4
    %v3015 = vsel %vm2999, %v3012, %v3014
    %v3016 = vrot.slane %v2883, 4
    %v3017 = vsel %vm2999, %v3014, %v3016
    %v3026 = vmax.f32 %v2991, %v3002
    %v3027 = vmax.f32 %v2992, %v3004
    %v3028 = vmax.f32 %v2993, %v3006
    %v3029 = vmax.f32 %v2994, %v3008
    %v3030 = vmax.f32 %v2995, %v3011
    %v3031 = vmax.f32 %v2996, %v3013
    %v3032 = vmax.f32 %v2997, %v3015
    %v3033 = vmax.f32 %v2998, %v3017
    %v3035 = vrot.slane %v3026, 1
    %v3037 = vrot.slane %v3026, 5
    %v3040 = vrot.slane %v3027, 1
    %v3043 = vrot.slane %v3028, 5
    %v3045 = vrot.slane %v3028, 1
    %v3048 = vrot.slane %v3029, 5
    %vm3050 = vcmask 1040384
    %v3051 = vsel %vm3050, %v3035, %v3037
    %vm3052 = vcmask 1041408
    %v3053 = vsel %vm3052, %v3051, %v3040
    %vm3054 = vcmask 1042432
    %v3055 = vsel %vm3054, %v3053, %v3043
    %v3056 = vsel %vm2999, %v3055, %v3045
    %v3057 = vsel %vm2964, %v3056, %v3048
    %v3058 = vpack.c.bf16 %v3057, %v3057
    %v3060 = vrot.slane %v3058, 7
    %vm3062 = vcmask 781313
    %3063 = vst.msk [vmem:[#allocation3] sm:$0xe] %vm3062, %v3060
    %v3065 = vrot.slane %v3030, 1
    %v3067 = vrot.slane %v3030, 5
    %v3070 = vrot.slane %v3031, 1
    %v3073 = vrot.slane %v3032, 5
    %v3075 = vrot.slane %v3032, 1
    %v3078 = vrot.slane %v3033, 5
    %v3080 = vsel %vm3050, %v3065, %v3067
    %v3081 = vsel %vm3052, %v3080, %v3070
    %v3082 = vsel %vm3054, %v3081, %v3073
    %v3083 = vsel %vm2999, %v3082, %v3075
    %v3084 = vsel %vm2964, %v3083, %v3078
    %v3085 = vpack.c.bf16 %v3084, %v3084
    %v3087 = vrot.slane %v3085, 7
    %3089 = vst.msk [vmem:[#allocation3 + $0x4] sm:$0xe] %vm3062, %v3087
    %v3090 = vld [vmem:[#allocation3] sm:$0xf]
    %v3091 = vld [vmem:[#allocation3 + $0x4] sm:$0xf]
    %v3092 = vld [vmem:[#allocation8] sm:$0xff]
    %v3093 = vld [vmem:[#allocation8 + $0x8] sm:$0xff]
    %v3094 = vld [vmem:[#allocation8 + $0x10] sm:$0xff]
    %v3095 = vld [vmem:[#allocation8 + $0x18] sm:$0xff]
    %v3096 = vld [vmem:[#allocation8 + $0x20] sm:$0xff]
    %v3097 = vld [vmem:[#allocation8 + $0x28] sm:$0xff]
    %v3098 = vld [vmem:[#allocation8 + $0x30] sm:$0xff]
    %v3099 = vld [vmem:[#allocation8 + $0x38] sm:$0xff]
    %v3100 = vld [vmem:[#allocation8 + $0x40] sm:$0xff]
    %v3101 = vld [vmem:[#allocation8 + $0x48] sm:$0xff]
    %v3102 = vld [vmem:[#allocation8 + $0x50] sm:$0xff]
    %v3103 = vld [vmem:[#allocation8 + $0x58] sm:$0xff]
    %v3104 = vld [vmem:[#allocation8 + $0x60] sm:$0xff]
    %v3105 = vld [vmem:[#allocation8 + $0x68] sm:$0xff]
    %v3106 = vld [vmem:[#allocation8 + $0x70] sm:$0xff]
    %v3107 = vld [vmem:[#allocation8 + $0x78] sm:$0xff]
    %v3108 = vld [vmem:[#allocation3] sm:$0xf]
    %v3109 = vld [vmem:[#allocation3 + $0x4] sm:$0xf]
    %v3110 = vld [vmem:[#allocation3 + $0x8] sm:$0x1]
    %s3111 = scalar_lea.vmem [#allocation8], 128
    %v3112 = vld [vmem:[%s3111] sm:$0xff]
    %v3113 = vld [vmem:[%s3111 + $0x8] sm:$0xff]
    %v3114 = vld [vmem:[%s3111 + $0x10] sm:$0xff]
    %v3115 = vld [vmem:[%s3111 + $0x18] sm:$0xff]
    %v3116 = vld [vmem:[%s3111 + $0x20] sm:$0xff]
    %v3117 = vld [vmem:[%s3111 + $0x28] sm:$0xff]
    %v3118 = vld [vmem:[%s3111 + $0x30] sm:$0xff]
    %v3119 = vld [vmem:[%s3111 + $0x38] sm:$0xff]
    %v3120 = vld [vmem:[%s3111 + $0x40] sm:$0xff]
    %v3121 = vld [vmem:[%s3111 + $0x48] sm:$0xff]
    %v3122 = vld [vmem:[%s3111 + $0x50] sm:$0xff]
    %v3123 = vld [vmem:[%s3111 + $0x58] sm:$0xff]
    %v3124 = vld [vmem:[%s3111 + $0x60] sm:$0xff]
    %v3125 = vld [vmem:[%s3111 + $0x68] sm:$0xff]
    %v3126 = vld [vmem:[%s3111 + $0x70] sm:$0xff]
    %v3127 = vld [vmem:[%s3111 + $0x78] sm:$0xff]
    %v3131 = vunpack.c.l.b16 %v3108
    %v3132 = vunpack.c.l.b16 %v3109
    %v3133 = vunpack.c.l.b16 %v3110
    %v3134 = vpack.c.b16 %v3132, %v3131
    %v3135 = vpack.c.b16 %v3133, %v3133
    %v3137 = vshrl.u32 %v3134, 16
    %v3139 = vshll.u32 %v3134, 16
    %v3141 = vrot.slane %v3139, 1
    %v3142 = vor.u32 %v3137, %v3141
    %v3144 = vshll.u32 %v3135, 16
    %v3146 = vrot.slane %v3144, 1
    %v3147 = vsel %vm221, %v3142, %v3146
    %v3165 = vunpack.c.l.b16 %v3112
    %v3166 = vunpack.c.h.b16 %v3112
    %v3167 = vunpack.c.l.b16 %v3113
    %v3168 = vunpack.c.h.b16 %v3113
    %v3169 = vunpack.c.l.b16 %v3114
    %v3170 = vunpack.c.h.b16 %v3114
    %v3171 = vunpack.c.l.b16 %v3115
    %v3172 = vunpack.c.h.b16 %v3115
    %v3173 = vunpack.c.l.b16 %v3116
    %v3174 = vunpack.c.h.b16 %v3116
    %v3175 = vunpack.c.l.b16 %v3117
    %v3176 = vunpack.c.h.b16 %v3117
    %v3177 = vunpack.c.l.b16 %v3118
    %v3178 = vunpack.c.h.b16 %v3118
    %v3179 = vunpack.c.l.b16 %v3119
    %v3180 = vunpack.c.h.b16 %v3119
    %v3181 = vunpack.c.l.b16 %v3120
    %v3182 = vunpack.c.h.b16 %v3120
    %v3183 = vunpack.c.l.b16 %v3121
    %v3184 = vunpack.c.h.b16 %v3121
    %v3185 = vunpack.c.l.b16 %v3122
    %v3186 = vunpack.c.h.b16 %v3122
    %v3187 = vunpack.c.l.b16 %v3123
    %v3188 = vunpack.c.h.b16 %v3123
    %v3189 = vunpack.c.l.b16 %v3124
    %v3190 = vunpack.c.h.b16 %v3124
    %v3191 = vunpack.c.l.b16 %v3125
    %v3192 = vunpack.c.h.b16 %v3125
    %v3193 = vunpack.c.l.b16 %v3126
    %v3194 = vunpack.c.h.b16 %v3126
    %v3195 = vunpack.c.l.b16 %v3127
    %v3196 = vunpack.c.h.b16 %v3127
    %v3197 = vpack.c.b16 %v3167, %v3165
    %v3198 = vpack.c.b16 %v3168, %v3166
    %v3199 = vpack.c.b16 %v3171, %v3169
    %v3200 = vpack.c.b16 %v3172, %v3170
    %v3201 = vpack.c.b16 %v3175, %v3173
    %v3202 = vpack.c.b16 %v3176, %v3174
    %v3203 = vpack.c.b16 %v3179, %v3177
    %v3204 = vpack.c.b16 %v3180, %v3178
    %v3205 = vpack.c.b16 %v3183, %v3181
    %v3206 = vpack.c.b16 %v3184, %v3182
    %v3207 = vpack.c.b16 %v3187, %v3185
    %v3208 = vpack.c.b16 %v3188, %v3186
    %v3209 = vpack.c.b16 %v3191, %v3189
    %v3210 = vpack.c.b16 %v3192, %v3190
    %v3211 = vpack.c.b16 %v3195, %v3193
    %v3212 = vpack.c.b16 %v3196, %v3194
    %3229 = vmatpush.bf16.msra.mxu0 %v3211
    %3230 = vmatpush.bf16.msra.mxu0 %v3209
    %3231 = vmatpush.bf16.msra.mxu0 %v3207
    %3232 = vmatpush.bf16.msra.mxu0 %v3205
    %3233 = vmatpush.bf16.msra.mxu0 %v3203
    %3234 = vmatpush.bf16.msra.mxu0 %v3201
    %3235 = vmatpush.bf16.msra.mxu0 %v3199
    %3236 = vmatpush.bf16.msra.mxu0 %v3197
    %3237 = vmatmul.bf16.gmra.mxu0 %v3147
    %v3238 = vpop.f32.mrf.mxu0
    %v3239 = vadd.f32 0.0, %v3238
    %v3240 = vpop.f32.mrf.mxu0
    %v3241 = vadd.f32 0.0, %v3240
    %3242 = vdwg.mxu0
    %3243 = vmatpush.bf16.msra.mxu0 %v3212
    %3244 = vmatpush.bf16.msra.mxu0 %v3210
    %3245 = vmatpush.bf16.msra.mxu0 %v3208
    %3246 = vmatpush.bf16.msra.mxu0 %v3206
    %3247 = vmatpush.bf16.msra.mxu0 %v3204
    %3248 = vmatpush.bf16.msra.mxu0 %v3202
    %3249 = vmatpush.bf16.msra.mxu0 %v3200
    %3250 = vmatpush.bf16.msra.mxu0 %v3198
    %3251 = vmatmul.bf16.gmra.mxu0 %v3147
    %v3252 = vpop.f32.mrf.mxu0
    %v3253 = vadd.f32 0.0, %v3252
    %v3254 = vpop.f32.mrf.mxu0
    %v3255 = vadd.f32 0.0, %v3254
    %3256 = vdwg.mxu0
    %v3259 = vunpack.c.l.b16 %v3090
    %v3260 = vunpack.c.l.b16 %v3091
    %v3261 = vpack.c.b16 %v3260, %v3259
    %v3279 = vunpack.c.l.b16 %v3092
    %v3280 = vunpack.c.h.b16 %v3092
    %v3281 = vunpack.c.l.b16 %v3093
    %v3282 = vunpack.c.h.b16 %v3093
    %v3283 = vunpack.c.l.b16 %v3094
    %v3284 = vunpack.c.h.b16 %v3094
    %v3285 = vunpack.c.l.b16 %v3095
    %v3286 = vunpack.c.h.b16 %v3095
    %v3287 = vunpack.c.l.b16 %v3096
    %v3288 = vunpack.c.h.b16 %v3096
    %v3289 = vunpack.c.l.b16 %v3097
    %v3290 = vunpack.c.h.b16 %v3097
    %v3291 = vunpack.c.l.b16 %v3098
    %v3292 = vunpack.c.h.b16 %v3098
    %v3293 = vunpack.c.l.b16 %v3099
    %v3294 = vunpack.c.h.b16 %v3099
    %v3295 = vunpack.c.l.b16 %v3100
    %v3296 = vunpack.c.h.b16 %v3100
    %v3297 = vunpack.c.l.b16 %v3101
    %v3298 = vunpack.c.h.b16 %v3101
    %v3299 = vunpack.c.l.b16 %v3102
    %v3300 = vunpack.c.h.b16 %v3102
    %v3301 = vunpack.c.l.b16 %v3103
    %v3302 = vunpack.c.h.b16 %v3103
    %v3303 = vunpack.c.l.b16 %v3104
    %v3304 = vunpack.c.h.b16 %v3104
    %v3305 = vunpack.c.l.b16 %v3105
    %v3306 = vunpack.c.h.b16 %v3105
    %v3307 = vunpack.c.l.b16 %v3106
    %v3308 = vunpack.c.h.b16 %v3106
    %v3309 = vunpack.c.l.b16 %v3107
    %v3310 = vunpack.c.h.b16 %v3107
    %v3311 = vpack.c.b16 %v3281, %v3279
    %v3312 = vpack.c.b16 %v3282, %v3280
    %v3313 = vpack.c.b16 %v3285, %v3283
    %v3314 = vpack.c.b16 %v3286, %v3284
    %v3315 = vpack.c.b16 %v3289, %v3287
    %v3316 = vpack.c.b16 %v3290, %v3288
    %v3317 = vpack.c.b16 %v3293, %v3291
    %v3318 = vpack.c.b16 %v3294, %v3292
    %v3319 = vpack.c.b16 %v3297, %v3295
    %v3320 = vpack.c.b16 %v3298, %v3296
    %v3321 = vpack.c.b16 %v3301, %v3299
    %v3322 = vpack.c.b16 %v3302, %v3300
    %v3323 = vpack.c.b16 %v3305, %v3303
    %v3324 = vpack.c.b16 %v3306, %v3304
    %v3325 = vpack.c.b16 %v3309, %v3307
    %v3326 = vpack.c.b16 %v3310, %v3308
    %3343 = vmatpush.bf16.msra.mxu0 %v3325
    %3344 = vmatpush.bf16.msra.mxu0 %v3323
    %3345 = vmatpush.bf16.msra.mxu0 %v3321
    %3346 = vmatpush.bf16.msra.mxu0 %v3319
    %3347 = vmatpush.bf16.msra.mxu0 %v3317
    %3348 = vmatpush.bf16.msra.mxu0 %v3315
    %3349 = vmatpush.bf16.msra.mxu0 %v3313
    %3350 = vmatpush.bf16.msra.mxu0 %v3311
    %3351 = vmatmul.bf16.gmra.mxu0 %v3261
    %v3352 = vpop.f32.mrf.mxu0
    %v3353 = vadd.f32 %v3239, %v3352
    %v3354 = vpop.f32.mrf.mxu0
    %v3355 = vadd.f32 %v3241, %v3354
    %3356 = vdwg.mxu0
    %3357 = vmatpush.bf16.msra.mxu0 %v3326
    %3358 = vmatpush.bf16.msra.mxu0 %v3324
    %3359 = vmatpush.bf16.msra.mxu0 %v3322
    %3360 = vmatpush.bf16.msra.mxu0 %v3320
    %3361 = vmatpush.bf16.msra.mxu0 %v3318
    %3362 = vmatpush.bf16.msra.mxu0 %v3316
    %3363 = vmatpush.bf16.msra.mxu0 %v3314
    %3364 = vmatpush.bf16.msra.mxu0 %v3312
    %3365 = vmatmul.bf16.gmra.mxu0 %v3261
    %v3366 = vpop.f32.mrf.mxu0
    %v3367 = vadd.f32 %v3253, %v3366
    %v3368 = vpop.f32.mrf.mxu0
    %v3369 = vadd.f32 %v3255, %v3368
    %3370 = vdwg.mxu0
    %v3371 = vld [vmem:[#allocation3] sm:$0xe]
    %s3372 = scalar_lea.vmem [#allocation8], 256
    %v3373 = vld [vmem:[%s3372] sm:$0xff]
    %v3374 = vld [vmem:[%s3372 + $0x8] sm:$0xff]
    %v3375 = vld [vmem:[%s3372 + $0x10] sm:$0xff]
    %v3376 = vld [vmem:[%s3372 + $0x18] sm:$0xff]
    %v3377 = vld [vmem:[%s3372 + $0x20] sm:$0xff]
    %v3378 = vld [vmem:[%s3372 + $0x28] sm:$0xff]
    %v3379 = vld [vmem:[%s3372 + $0x30] sm:$0xff]
    %v3380 = vld [vmem:[%s3372 + $0x38] sm:$0xff]
    %v3381 = vld [vmem:[%s3372 + $0x40] sm:$0xff]
    %v3382 = vld [vmem:[%s3372 + $0x48] sm:$0xff]
    %v3383 = vld [vmem:[%s3372 + $0x50] sm:$0xff]
    %v3384 = vld [vmem:[%s3372 + $0x58] sm:$0xff]
    %v3385 = vld [vmem:[%s3372 + $0x60] sm:$0xff]
    %v3386 = vld [vmem:[%s3372 + $0x68] sm:$0xff]
    %v3387 = vld [vmem:[%s3372 + $0x70] sm:$0xff]
    %v3388 = vld [vmem:[%s3372 + $0x78] sm:$0xff]
    %v3390 = vunpack.c.l.b16 %v3371
    %v3391 = vpack.c.b16 %v3132, %v3390
    %v3392 = vrot.slane %v3391, 1
    %v3393 = vrot.slane %v3135, 1
    %v3394 = vsel %vm657, %v3392, %v3393
    %v3412 = vunpack.c.l.b16 %v3373
    %v3413 = vunpack.c.h.b16 %v3373
    %v3414 = vunpack.c.l.b16 %v3374
    %v3415 = vunpack.c.h.b16 %v3374
    %v3416 = vunpack.c.l.b16 %v3375
    %v3417 = vunpack.c.h.b16 %v3375
    %v3418 = vunpack.c.l.b16 %v3376
    %v3419 = vunpack.c.h.b16 %v3376
    %v3420 = vunpack.c.l.b16 %v3377
    %v3421 = vunpack.c.h.b16 %v3377
    %v3422 = vunpack.c.l.b16 %v3378
    %v3423 = vunpack.c.h.b16 %v3378
    %v3424 = vunpack.c.l.b16 %v3379
    %v3425 = vunpack.c.h.b16 %v3379
    %v3426 = vunpack.c.l.b16 %v3380
    %v3427 = vunpack.c.h.b16 %v3380
    %v3428 = vunpack.c.l.b16 %v3381
    %v3429 = vunpack.c.h.b16 %v3381
    %v3430 = vunpack.c.l.b16 %v3382
    %v3431 = vunpack.c.h.b16 %v3382
    %v3432 = vunpack.c.l.b16 %v3383
    %v3433 = vunpack.c.h.b16 %v3383
    %v3434 = vunpack.c.l.b16 %v3384
    %v3435 = vunpack.c.h.b16 %v3384
    %v3436 = vunpack.c.l.b16 %v3385
    %v3437 = vunpack.c.h.b16 %v3385
    %v3438 = vunpack.c.l.b16 %v3386
    %v3439 = vunpack.c.h.b16 %v3386
    %v3440 = vunpack.c.l.b16 %v3387
    %v3441 = vunpack.c.h.b16 %v3387
    %v3442 = vunpack.c.l.b16 %v3388
    %v3443 = vunpack.c.h.b16 %v3388
    %v3444 = vpack.c.b16 %v3414, %v3412
    %v3445 = vpack.c.b16 %v3415, %v3413
    %v3446 = vpack.c.b16 %v3418, %v3416
    %v3447 = vpack.c.b16 %v3419, %v3417
    %v3448 = vpack.c.b16 %v3422, %v3420
    %v3449 = vpack.c.b16 %v3423, %v3421
    %v3450 = vpack.c.b16 %v3426, %v3424
    %v3451 = vpack.c.b16 %v3427, %v3425
    %v3452 = vpack.c.b16 %v3430, %v3428
    %v3453 = vpack.c.b16 %v3431, %v3429
    %v3454 = vpack.c.b16 %v3434, %v3432
    %v3455 = vpack.c.b16 %v3435, %v3433
    %v3456 = vpack.c.b16 %v3438, %v3436
    %v3457 = vpack.c.b16 %v3439, %v3437
    %v3458 = vpack.c.b16 %v3442, %v3440
    %v3459 = vpack.c.b16 %v3443, %v3441
    %3476 = vmatpush.bf16.msra.mxu0 %v3458
    %3477 = vmatpush.bf16.msra.mxu0 %v3456
    %3478 = vmatpush.bf16.msra.mxu0 %v3454
    %3479 = vmatpush.bf16.msra.mxu0 %v3452
    %3480 = vmatpush.bf16.msra.mxu0 %v3450
    %3481 = vmatpush.bf16.msra.mxu0 %v3448
    %3482 = vmatpush.bf16.msra.mxu0 %v3446
    %3483 = vmatpush.bf16.msra.mxu0 %v3444
    %3484 = vmatmul.bf16.gmra.mxu0 %v3394
    %v3485 = vpop.f32.mrf.mxu0
    %v3486 = vadd.f32 0.0, %v3485
    %v3487 = vpop.f32.mrf.mxu0
    %v3488 = vadd.f32 0.0, %v3487
    %3489 = vdwg.mxu0
    %3490 = vmatpush.bf16.msra.mxu0 %v3459
    %3491 = vmatpush.bf16.msra.mxu0 %v3457
    %3492 = vmatpush.bf16.msra.mxu0 %v3455
    %3493 = vmatpush.bf16.msra.mxu0 %v3453
    %3494 = vmatpush.bf16.msra.mxu0 %v3451
    %3495 = vmatpush.bf16.msra.mxu0 %v3449
    %3496 = vmatpush.bf16.msra.mxu0 %v3447
    %3497 = vmatpush.bf16.msra.mxu0 %v3445
    %3498 = vmatmul.bf16.gmra.mxu0 %v3394
    %v3499 = vpop.f32.mrf.mxu0
    %v3500 = vadd.f32 0.0, %v3499
    %v3501 = vpop.f32.mrf.mxu0
    %v3502 = vadd.f32 0.0, %v3501
    %3503 = vdwg.mxu0
    %v3504 = vadd.f32 %v3353, %v3486
    %v3505 = vadd.f32 %v3367, %v3500
    %v3506 = vadd.f32 %v3355, %v3488
    %v3507 = vadd.f32 %v3369, %v3502
    %s3508 = scalar_lea.vmem %s5, 1
    %v3509 = vld [vmem:[%s3508] ss:$4 sm:$0x3]
    %v3511 = vperm.slane %v3509, 0
    %v3512 = vperm.slane %v3509, 1
    %v3515 = vadd.f32 %v3504, %v3511
    %v3516 = vadd.f32 %v3505, %v3512
    %v3517 = vadd.f32 %v3506, %v3511
    %v3518 = vadd.f32 %v3507, %v3512
    %v3519 = vmax.f32 %v3515, 0.0
    %v3520 = vmax.f32 %v3516, 0.0
    %v3521 = vmax.f32 %v3517, 0.0
    %v3522 = vmax.f32 %v3518, 0.0
    %3527 = vrot.lane.b32.xlu0 %v3519, 96
    %v3528 = vpop.permute.xlu0 %3527
    %3529 = vrot.lane.b32.xlu0 %v3520, 96
    %v3530 = vpop.permute.xlu0 %3529
    %3531 = vrot.lane.b32.xlu0 %v3521, 96
    %v3532 = vpop.permute.xlu0 %3531
    %3533 = vrot.lane.b32.xlu0 %v3522, 96
    %v3534 = vpop.permute.xlu0 %3533
    %v3535 = vsel %vm2409, %v3528, %v3530
    %v3536 = vsel %vm2409, %v3532, %v3534
    %v3539 = vmax.f32 %v3519, %v3535
    %v3540 = vmax.f32 %v3521, %v3536
    %3541 = vrot.lane.b32.xlu0 %v3519, 64
    %v3542 = vpop.permute.xlu0 %3541
    %3543 = vrot.lane.b32.xlu0 %v3520, 64
    %v3544 = vpop.permute.xlu0 %3543
    %3545 = vrot.lane.b32.xlu0 %v3521, 64
    %v3546 = vpop.permute.xlu0 %3545
    %3547 = vrot.lane.b32.xlu0 %v3522, 64
    %v3548 = vpop.permute.xlu0 %3547
    %v3549 = vsel %vm2600, %v3542, %v3544
    %v3550 = vsel %vm2600, %v3546, %v3548
    %v3553 = vmax.f32 %v3539, %v3549
    %v3554 = vmax.f32 %v3540, %v3550
    %3557 = vrot.lane.b32.xlu0 %v3553, 64
    %v3558 = vpop.permute.xlu0 %3557
    %3559 = vrot.lane.b32.xlu0 %v3554, 64
    %v3560 = vpop.permute.xlu0 %3559
    %v3563 = vsel %vm306, %v3553, %v3558
    %v3564 = vsel %vm306, %v3554, %v3560
    %v3567 = vrot.slane %v3563, 1
    %v3568 = vrot.slane %v3564, 1
    %v3569 = vsel %vm2894, %v3567, %v3568
    %v3572 = vmax.f32 %v3563, %v3569
    %v3573 = vmax.f32 %v3564, %v3568
    %v3574 = vrot.slane %v3563, 2
    %v3575 = vrot.slane %v3564, 2
    %v3576 = vsel %vm2929, %v3574, %v3575
    %v3579 = vmax.f32 %v3572, %v3576
    %v3580 = vmax.f32 %v3573, %v3575
    %v3582 = vrot.slane %v3579, 1
    %v3584 = vrot.slane %v3579, 3
    %v3586 = vsel %vm3050, %v3582, %v3584
    %v3587 = vpack.c.bf16 %v3586, %v3586
    %v3589 = vrot.slane %v3587, 7
    %vm3591 = vcmask 517121
    %3592 = vst.msk [vmem:[#allocation4] sm:$0x2] %vm3591, %v3589
    %v3594 = vrot.slane %v3580, 1
    %v3596 = vrot.slane %v3580, 3
    %v3598 = vsel %vm3050, %v3594, %v3596
    %v3599 = vpack.c.bf16 %v3598, %v3598
    %v3601 = vrot.slane %v3599, 5
    %vm3603 = vcmask 519171
    %3604 = vst.msk [vmem:[#allocation4] sm:$0x8] %vm3603, %v3601
    %v3605 = vld [vmem:[#allocation4] sm:$0xf]
    %v3606 = vld [vmem:[#allocation10] sm:$0xf]
    %v3607 = vld [vmem:[#allocation10 + $0x4] sm:$0xf]
    %v3608 = vld [vmem:[#allocation10 + $0x8] sm:$0xf]
    %v3609 = vld [vmem:[#allocation10 + $0xc] sm:$0xf]
    %v3610 = vld [vmem:[#allocation10 + $0x10] sm:$0xf]
    %v3611 = vld [vmem:[#allocation10 + $0x14] sm:$0xf]
    %v3612 = vld [vmem:[#allocation10 + $0x18] sm:$0xf]
    %v3613 = vld [vmem:[#allocation10 + $0x1c] sm:$0xf]
    %v3614 = vld [vmem:[#allocation10 + $0x20] sm:$0xf]
    %v3615 = vld [vmem:[#allocation10 + $0x24] sm:$0xf]
    %v3616 = vld [vmem:[#allocation10 + $0x28] sm:$0xf]
    %v3617 = vld [vmem:[#allocation10 + $0x2c] sm:$0xf]
    %v3618 = vld [vmem:[#allocation10 + $0x30] sm:$0xf]
    %v3619 = vld [vmem:[#allocation10 + $0x34] sm:$0xf]
    %v3620 = vld [vmem:[#allocation10 + $0x38] sm:$0xf]
    %v3621 = vld [vmem:[#allocation10 + $0x3c] sm:$0xf]
    %v3622 = vld [vmem:[#allocation4] sm:$0xf]
    %v3623 = vld [vmem:[#allocation4 + $0x4] sm:$0x1]
    %s3624 = scalar_lea.vmem [#allocation10], 64
    %v3625 = vld [vmem:[%s3624] sm:$0xf]
    %v3626 = vld [vmem:[%s3624 + $0x4] sm:$0xf]
    %v3627 = vld [vmem:[%s3624 + $0x8] sm:$0xf]
    %v3628 = vld [vmem:[%s3624 + $0xc] sm:$0xf]
    %v3629 = vld [vmem:[%s3624 + $0x10] sm:$0xf]
    %v3630 = vld [vmem:[%s3624 + $0x14] sm:$0xf]
    %v3631 = vld [vmem:[%s3624 + $0x18] sm:$0xf]
    %v3632 = vld [vmem:[%s3624 + $0x1c] sm:$0xf]
    %v3633 = vld [vmem:[%s3624 + $0x20] sm:$0xf]
    %v3634 = vld [vmem:[%s3624 + $0x24] sm:$0xf]
    %v3635 = vld [vmem:[%s3624 + $0x28] sm:$0xf]
    %v3636 = vld [vmem:[%s3624 + $0x2c] sm:$0xf]
    %v3637 = vld [vmem:[%s3624 + $0x30] sm:$0xf]
    %v3638 = vld [vmem:[%s3624 + $0x34] sm:$0xf]
    %v3639 = vld [vmem:[%s3624 + $0x38] sm:$0xf]
    %v3640 = vld [vmem:[%s3624 + $0x3c] sm:$0xf]
    %v3643 = vunpack.c.l.b16 %v3622
    %v3644 = vunpack.c.l.b16 %v3623
    %v3645 = vpack.c.b16 %v3644, %v3643
    %v3647 = vshrl.u32 %v3645, 16
    %v3649 = vshll.u32 %v3645, 16
    %v3651 = vrot.slane %v3649, 1
    %v3652 = vor.u32 %v3647, %v3651
    %v3670 = vunpack.c.l.b16 %v3625
    %v3671 = vunpack.c.l.b16 %v3626
    %v3672 = vunpack.c.l.b16 %v3627
    %v3673 = vunpack.c.l.b16 %v3628
    %v3674 = vunpack.c.l.b16 %v3629
    %v3675 = vunpack.c.l.b16 %v3630
    %v3676 = vunpack.c.l.b16 %v3631
    %v3677 = vunpack.c.l.b16 %v3632
    %v3678 = vunpack.c.l.b16 %v3633
    %v3679 = vunpack.c.l.b16 %v3634
    %v3680 = vunpack.c.l.b16 %v3635
    %v3681 = vunpack.c.l.b16 %v3636
    %v3682 = vunpack.c.l.b16 %v3637
    %v3683 = vunpack.c.l.b16 %v3638
    %v3684 = vunpack.c.l.b16 %v3639
    %v3685 = vunpack.c.l.b16 %v3640
    %v3686 = vpack.c.b16 %v3671, %v3670
    %v3687 = vpack.c.b16 %v3673, %v3672
    %v3688 = vpack.c.b16 %v3675, %v3674
    %v3689 = vpack.c.b16 %v3677, %v3676
    %v3690 = vpack.c.b16 %v3679, %v3678
    %v3691 = vpack.c.b16 %v3681, %v3680
    %v3692 = vpack.c.b16 %v3683, %v3682
    %v3693 = vpack.c.b16 %v3685, %v3684
    %3702 = vmatpush.bf16.msra.mxu0 %v3693
    %3703 = vmatpush.bf16.msra.mxu0 %v3692
    %3704 = vmatpush.bf16.msra.mxu0 %v3691
    %3705 = vmatpush.bf16.msra.mxu0 %v3690
    %3706 = vmatpush.bf16.msra.mxu0 %v3689
    %3707 = vmatpush.bf16.msra.mxu0 %v3688
    %3708 = vmatpush.bf16.msra.mxu0 %v3687
    %3709 = vmatpush.bf16.msra.mxu0 %v3686
    %3710 = vmatmul.bf16.gmra.mxu0 %v3652
    %v3711 = vpop.f32.mrf.mxu0
    %v3712 = vadd.f32 0.0, %v3711
    %v3713 = vpop.f32.mrf.mxu0
    %3714 = vdwg.mxu0
    %v3731 = vunpack.c.l.b16 %v3606
    %v3732 = vunpack.c.l.b16 %v3607
    %v3733 = vunpack.c.l.b16 %v3608
    %v3734 = vunpack.c.l.b16 %v3609
    %v3735 = vunpack.c.l.b16 %v3610
    %v3736 = vunpack.c.l.b16 %v3611
    %v3737 = vunpack.c.l.b16 %v3612
    %v3738 = vunpack.c.l.b16 %v3613
    %v3739 = vunpack.c.l.b16 %v3614
    %v3740 = vunpack.c.l.b16 %v3615
    %v3741 = vunpack.c.l.b16 %v3616
    %v3742 = vunpack.c.l.b16 %v3617
    %v3743 = vunpack.c.l.b16 %v3618
    %v3744 = vunpack.c.l.b16 %v3619
    %v3745 = vunpack.c.l.b16 %v3620
    %v3746 = vunpack.c.l.b16 %v3621
    %v3747 = vpack.c.b16 %v3732, %v3731
    %v3748 = vpack.c.b16 %v3734, %v3733
    %v3749 = vpack.c.b16 %v3736, %v3735
    %v3750 = vpack.c.b16 %v3738, %v3737
    %v3751 = vpack.c.b16 %v3740, %v3739
    %v3752 = vpack.c.b16 %v3742, %v3741
    %v3753 = vpack.c.b16 %v3744, %v3743
    %v3754 = vpack.c.b16 %v3746, %v3745
    %3763 = vmatpush.bf16.msra.mxu0 %v3754
    %3764 = vmatpush.bf16.msra.mxu0 %v3753
    %3765 = vmatpush.bf16.msra.mxu0 %v3752
    %3766 = vmatpush.bf16.msra.mxu0 %v3751
    %3767 = vmatpush.bf16.msra.mxu0 %v3750
    %3768 = vmatpush.bf16.msra.mxu0 %v3749
    %3769 = vmatpush.bf16.msra.mxu0 %v3748
    %3770 = vmatpush.bf16.msra.mxu0 %v3747
    %3771 = vmatmul.bf16.gmra.mxu0 %v3605
    %v3772 = vpop.f32.mrf.mxu0
    %v3773 = vadd.f32 %v3712, %v3772
    %v3774 = vpop.f32.mrf.mxu0
    %3775 = vdwg.mxu0
    %v3776 = vld [vmem:[#allocation4] sm:$0xe]
    %s3777 = scalar_lea.vmem [#allocation10], 128
    %v3778 = vld [vmem:[%s3777] sm:$0xf]
    %v3779 = vld [vmem:[%s3777 + $0x4] sm:$0xf]
    %v3780 = vld [vmem:[%s3777 + $0x8] sm:$0xf]
    %v3781 = vld [vmem:[%s3777 + $0xc] sm:$0xf]
    %v3782 = vld [vmem:[%s3777 + $0x10] sm:$0xf]
    %v3783 = vld [vmem:[%s3777 + $0x14] sm:$0xf]
    %v3784 = vld [vmem:[%s3777 + $0x18] sm:$0xf]
    %v3785 = vld [vmem:[%s3777 + $0x1c] sm:$0xf]
    %v3786 = vld [vmem:[%s3777 + $0x20] sm:$0xf]
    %v3787 = vld [vmem:[%s3777 + $0x24] sm:$0xf]
    %v3788 = vld [vmem:[%s3777 + $0x28] sm:$0xf]
    %v3789 = vld [vmem:[%s3777 + $0x2c] sm:$0xf]
    %v3790 = vld [vmem:[%s3777 + $0x30] sm:$0xf]
    %v3791 = vld [vmem:[%s3777 + $0x34] sm:$0xf]
    %v3792 = vld [vmem:[%s3777 + $0x38] sm:$0xf]
    %v3793 = vld [vmem:[%s3777 + $0x3c] sm:$0xf]
    %v3795 = vunpack.c.l.b16 %v3776
    %v3796 = vpack.c.b16 %v3644, %v3795
    %v3797 = vrot.slane %v3796, 1
    %v3815 = vunpack.c.l.b16 %v3778
    %v3816 = vunpack.c.l.b16 %v3779
    %v3817 = vunpack.c.l.b16 %v3780
    %v3818 = vunpack.c.l.b16 %v3781
    %v3819 = vunpack.c.l.b16 %v3782
    %v3820 = vunpack.c.l.b16 %v3783
    %v3821 = vunpack.c.l.b16 %v3784
    %v3822 = vunpack.c.l.b16 %v3785
    %v3823 = vunpack.c.l.b16 %v3786
    %v3824 = vunpack.c.l.b16 %v3787
    %v3825 = vunpack.c.l.b16 %v3788
    %v3826 = vunpack.c.l.b16 %v3789
    %v3827 = vunpack.c.l.b16 %v3790
    %v3828 = vunpack.c.l.b16 %v3791
    %v3829 = vunpack.c.l.b16 %v3792
    %v3830 = vunpack.c.l.b16 %v3793
    %v3831 = vpack.c.b16 %v3816, %v3815
    %v3832 = vpack.c.b16 %v3818, %v3817
    %v3833 = vpack.c.b16 %v3820, %v3819
    %v3834 = vpack.c.b16 %v3822, %v3821
    %v3835 = vpack.c.b16 %v3824, %v3823
    %v3836 = vpack.c.b16 %v3826, %v3825
    %v3837 = vpack.c.b16 %v3828, %v3827
    %v3838 = vpack.c.b16 %v3830, %v3829
    %3847 = vmatpush.bf16.msra.mxu0 %v3838
    %3848 = vmatpush.bf16.msra.mxu0 %v3837
    %3849 = vmatpush.bf16.msra.mxu0 %v3836
    %3850 = vmatpush.bf16.msra.mxu0 %v3835
    %3851 = vmatpush.bf16.msra.mxu0 %v3834
    %3852 = vmatpush.bf16.msra.mxu0 %v3833
    %3853 = vmatpush.bf16.msra.mxu0 %v3832
    %3854 = vmatpush.bf16.msra.mxu0 %v3831
    %3855 = vmatmul.bf16.gmra.mxu0 %v3797
    %v3856 = vpop.f32.mrf.mxu0
    %v3857 = vadd.f32 0.0, %v3856
    %v3858 = vpop.f32.mrf.mxu0
    %3859 = vdwg.mxu0
    %v3860 = vadd.f32 %v3773, %v3857
    %v3861 = vld [vmem:[%s5 + $0x2] sm:$0x1]
    %v3862 = vperm.slane %v3861, 0
    %v3863 = vadd.f32 %v3860, %v3862
    %v3864 = vmax.f32 %v3863, 0.0
    %3866 = vrot.lane.b32.xlu0 %v3864, 64
    %v3867 = vpop.permute.xlu0 %3866
    %v3869 = vmax.f32 %v3864, %v3867
    %vm3870 = vcmask 518145
    %v3871 = vsel %vm3870, %v3869, -inf
    %v3872 = vrot.slane %v3871, 4
    %v3873 = vmax.f32 %v3871, %v3872
    %v3874 = vrot.slane %v3873, 2
    %v3875 = vmax.f32 %v3873, %v3874
    %v3876 = vrot.slane %v3875, 1
    %v3877 = vmax.f32 %v3875, %v3876
    %vm3878 = vcmask 522245
    %v3879 = vsel %vm3878, %v3869, -inf
    %v3880 = vrot.slane %v3879, 4
    %v3881 = vmax.f32 %v3879, %v3880
    %v3882 = vrot.slane %v3881, 2
    %v3883 = vmax.f32 %v3881, %v3882
    %v3884 = vrot.slane %v3883, 1
    %v3885 = vmax.f32 %v3883, %v3884
    %v3886 = vsel %vm3050, %v3877, %v3885
    %v3887 = vld [vmem:[%s6] sm:$0xff]
    %v3888 = vld [vmem:[%s6 + $0x8] sm:$0xff]
    %v3889 = vld [vmem:[%s6 + $0x10] sm:$0xff]
    %v3890 = vld [vmem:[%s6 + $0x18] sm:$0xff]
    %v3891 = vld [vmem:[%s6 + $0x20] sm:$0xff]
    %v3892 = vld [vmem:[%s6 + $0x28] sm:$0xff]
    %v3893 = vld [vmem:[%s6 + $0x30] sm:$0xff]
    %v3894 = vld [vmem:[%s6 + $0x38] sm:$0xff]
    %v3895 = vld [vmem:[%s6 + $0x40] sm:$0xff]
    %v3896 = vld [vmem:[%s6 + $0x48] sm:$0xff]
    %v3897 = vld [vmem:[%s6 + $0x50] sm:$0xff]
    %v3898 = vld [vmem:[%s1] sm:$0x3]
    %v3899 = vperm.slane %v3897, 4
    %vm3900 = vcmask 31744
    %v3902 = vsel %vm3900, %v3898, 0
    %v3905 = vsel %vm2999, %v3897, 0
    %3907 = vmatpush.msra.mxu0 0.0
    %3908 = vmatpush.msra.mxu0 0.0
    %3909 = vmatpush.msra.mxu0 0.0
    %3910 = vmatpush.msra.mxu0 0.0
    %3911 = vmatpush.msra.mxu0 0.0
    %3912 = vmatpush.msra.mxu0 0.0
    %3913 = vmatpush.msra.mxu0 0.0
    %3914 = vmatpush.msra.mxu0 0.0
    %3915 = vmatpush.msra.mxu0 0.0
    %3916 = vmatpush.msra.mxu0 0.0
    %3917 = vmatpush.msra.mxu0 0.0
    %3918 = vmatpush.msra.mxu0 0.0
    %3919 = vmatpush.msra.mxu0 0.0
    %3920 = vmatpush.msra.mxu0 0.0
    %3921 = vmatpush.msra.mxu0 0.0
    %3922 = vmatpush.msra.mxu0 %v3905
    %3923 = vmatmul.f32.gmra.mxu0 %v3902
    %v3924 = vpop.f32.mrf.mxu0
    %v3925 = vadd.f32 %v3899, %v3924
    %3926 = vdwg.mxu0
    %v3927 = vmax.f32 %v3925, 0.0
    %3929 = vrot.lane.b32.xlu0 %v3927, 64
    %v3930 = vpop.permute.xlu0 %3929
    %v3932 = vsel %vm2600, %v3886, %v3930
    %v3933 = vperm.slane %v3897, 5
    %3944 = vrot.lane.b32.xlu0 %v3887, 96
    %v3945 = vpop.permute.xlu0 %3944
    %3946 = vrot.lane.b32.xlu0 %v3888, 96
    %v3947 = vpop.permute.xlu0 %3946
    %3948 = vrot.lane.b32.xlu0 %v3889, 96
    %v3949 = vpop.permute.xlu0 %3948
    %3950 = vrot.lane.b32.xlu0 %v3890, 96
    %v3951 = vpop.permute.xlu0 %3950
    %3952 = vrot.lane.b32.xlu0 %v3891, 96
    %v3953 = vpop.permute.xlu0 %3952
    %3954 = vrot.lane.b32.xlu0 %v3892, 96
    %v3955 = vpop.permute.xlu0 %3954
    %3956 = vrot.lane.b32.xlu0 %v3893, 96
    %v3957 = vpop.permute.xlu0 %3956
    %3958 = vrot.lane.b32.xlu0 %v3894, 96
    %v3959 = vpop.permute.xlu0 %3958
    %3960 = vrot.lane.b32.xlu0 %v3895, 96
    %v3961 = vpop.permute.xlu0 %3960
    %3962 = vrot.lane.b32.xlu0 %v3896, 96
    %v3963 = vpop.permute.xlu0 %3962
    %3975 = vrot.lane.b32.xlu0 %v3933, 96
    %v3976 = vpop.permute.xlu0 %3975
    %v3979 = vsel %vm2873, %v3932, 0
    %3981 = vmatpush.msra.mxu0 0.0
    %3982 = vmatpush.msra.mxu0 0.0
    %3983 = vmatpush.msra.mxu0 0.0
    %3984 = vmatpush.msra.mxu0 0.0
    %3985 = vmatpush.msra.mxu0 0.0
    %3986 = vmatpush.msra.mxu0 0.0
    %3987 = vmatpush.msra.mxu0 %v3963
    %3988 = vmatpush.msra.mxu0 %v3961
    %3989 = vmatpush.msra.mxu0 %v3959
    %3990 = vmatpush.msra.mxu0 %v3957
    %3991 = vmatpush.msra.mxu0 %v3955
    %3992 = vmatpush.msra.mxu0 %v3953
    %3993 = vmatpush.msra.mxu0 %v3951
    %3994 = vmatpush.msra.mxu0 %v3949
    %3995 = vmatpush.msra.mxu0 %v3947
    %3996 = vmatpush.msra.mxu0 %v3945
    %3997 = vmatmul.f32.gmra.mxu0 %v3979
    %v3998 = vpop.f32.mrf.mxu0
    %v3999 = vadd.f32 %v3976, %v3998
    %4000 = vdwg.mxu0
    %v4001 = vmax.f32 %v3999, 0.0
    %v4002 = vperm.slane %v3897, 6
    %4003 = vrot.lane.b32.xlu0 %v3887, 64
    %v4004 = vpop.permute.xlu0 %4003
    %4005 = vrot.lane.b32.xlu0 %v3888, 64
    %v4006 = vpop.permute.xlu0 %4005
    %4007 = vrot.lane.b32.xlu0 %v3889, 64
    %v4008 = vpop.permute.xlu0 %4007
    %4009 = vrot.lane.b32.xlu0 %v3890, 64
    %v4010 = vpop.permute.xlu0 %4009
    %4016 = vrot.lane.b32.xlu0 %v4002, 64
    %v4017 = vpop.permute.xlu0 %4016
    %v4020 = vsel %vm306, %v4001, 0
    %4022 = vmatpush.msra.mxu0 0.0
    %4023 = vmatpush.msra.mxu0 0.0
    %4024 = vmatpush.msra.mxu0 0.0
    %4025 = vmatpush.msra.mxu0 0.0
    %4026 = vmatpush.msra.mxu0 0.0
    %4027 = vmatpush.msra.mxu0 0.0
    %4028 = vmatpush.msra.mxu0 0.0
    %4029 = vmatpush.msra.mxu0 0.0
    %4030 = vmatpush.msra.mxu0 0.0
    %4031 = vmatpush.msra.mxu0 0.0
    %4032 = vmatpush.msra.mxu0 0.0
    %4033 = vmatpush.msra.mxu0 0.0
    %4034 = vmatpush.msra.mxu0 %v4010
    %4035 = vmatpush.msra.mxu0 %v4008
    %4036 = vmatpush.msra.mxu0 %v4006
    %4037 = vmatpush.msra.mxu0 %v4004
    %4038 = vmatmul.f32.gmra.mxu0 %v4020
    %v4039 = vpop.f32.mrf.mxu0
    %v4040 = vadd.f32 %v4017, %v4039
    %4041 = vdwg.mxu0
    %vm4042 = vcmask 9216
    %4043 = vst.msk [vmem:[#allocation11] sm:$0x3] %vm4042, %v4040
    // Predicated region
    $region42: #{lie_detection_forward.1} parent=1 // pred_check
      _
    $region43: #{lie_detection_forward.1} parent=1 // pred_check_branch
      %4045 = sbr.rel (0) target = $region45
    $region44: #{lie_detection_forward.1} parent=1 // pred_region
      %4047 = vsyncadd [#allocation7], 0
      %s4049 = sshll.u32 [#allocation11], 4
      %s4050 = int_to_ptr.vmem [resolvable:$true] %s4049
      %s4051 = sshll.u32 %s7, 4
      %s4052 = int_to_ptr.hbm [resolvable:$true] %s4051
      %4054 = dma.vmem_to_hbm [thread:$0]  %s4050, 32, %s4052, [#allocation7]
    $region45: #{lie_detection_forward.1} parent=1 // pred_fallthru
      _
    // Predicated region
    $region46: #{lie_detection_forward.1} parent=1 // pred_check
      _
    $region47: #{lie_detection_forward.1} parent=1 // pred_check_branch
      %4056 = sbr.rel (0) target = $region49
    $region48: #{lie_detection_forward.1} parent=1 // pred_region
      %4058 = dma.done [#allocation7], 32
    $region49: #{lie_detection_forward.1} parent=1 // pred_fallthru
      _
    %4059 = vsyncpa [#allocation6], 1
    %4060 = vsyncpa [#allocation9], 1
    %4061 = vsyncpa [#allocation7], 1

</llo_original>
